<compile_context>
chip_gen: v5e
topology: v5e:2x2
jax: 0.10.0
libtpu: 0.0.40
codegen_flags: <defaults>
</compile_context>

<pallas_src>
import math
import numpy as np
import jax
import jax.numpy as jnp
from jax.experimental import pallas as pl
from jax.experimental.pallas import tpu as pltpu


# ----------------------------------------------------------------------------
# Host-side construction of the fused spatial operator (resize + avgpool)
# ----------------------------------------------------------------------------
def _bilinear_matrix(in_size: int, out_size: int) -> np.ndarray:
    """A (out,in): y = A @ x == F.interpolate(mode='bilinear', align_corners=False) on one axis."""
    A = np.zeros((out_size, in_size), dtype=np.float64)
    scale = in_size / out_size
    for i in range(out_size):
        src = max((i + 0.5) * scale - 0.5, 0.0)
        i0 = min(int(math.floor(src)), in_size - 1)
        i1 = min(i0 + 1, in_size - 1)
        lam = src - i0
        A[i, i0] += 1.0 - lam
        A[i, i1] += lam
    return A


def _avgpool3_matrix(size: int) -> np.ndarray:
    """P (size,size): y = P @ x == AvgPool1d(k=3, stride=1, pad=1, count_include_pad=True)."""
    P = np.zeros((size, size), dtype=np.float64)
    for i in range(size):
        for k in (i - 1, i, i + 1):
            if 0 <= k < size:
                P[i, k] = 1.0 / 3.0
    return P


def _spatial_kron(h: int, w: int, S: int) -> np.ndarray:
    """T (h*w, S*S): y.reshape(S*S) = x.reshape(h*w) @ T == avgpool3(bilinear_resize(x, S))."""
    Mh = _avgpool3_matrix(S) @ _bilinear_matrix(h, S)    # (S, h)
    Mw = _avgpool3_matrix(S) @ _bilinear_matrix(w, S)    # (S, w)
    T = np.einsum('pi,qj->ijpq', Mh, Mw).reshape(h * w, S * S)
    return T.astype(np.float32)


# ----------------------------------------------------------------------------
# Pallas kernel: one (batch element, Cout tile) per grid step
# ----------------------------------------------------------------------------
def _teacher_head_kernel(f2_ref, f3_ref, w2_ref, w3_ref, t2_ref, t3_ref, b_ref, o_ref):
    # (1) 1x1-conv channel projection FIRST, at the low input resolution:
    #     one MXU matmul per branch, bf16 x bf16 -> f32 accumulation.
    g2 = jnp.dot(w2_ref[...], f2_ref[0], preferred_element_type=jnp.float32)   # (cout_t, h2*w2)
    g3 = jnp.dot(w3_ref[...], f3_ref[0], preferred_element_type=jnp.float32)   # (cout_t, h3*w3)

    # (2) Fused [bilinear resize -> 3x3 avgpool] as ONE Kronecker matmul per branch:
    #     lane-dense (cout_t, S*S) result straight off the MXU, accumulator written once,
    #     no in-kernel loops / slices / transposes.  Kept in f32 (no re-rounding of g).
    acc = jnp.dot(g2, t2_ref[...], preferred_element_type=jnp.float32)          # (cout_t, S*S)
    acc = acc + jnp.dot(g3, t3_ref[...], preferred_element_type=jnp.float32)

    # (3) Bias fused with the final cast/store (cheap VPU op under the store).
    o_ref[0] = (acc + b_ref[...]).astype(o_ref.dtype)


def resnet_teacher_head(feat2, feat3, proj_w, proj_b, feat_size, *,
                        cout_tile=256, out_dtype=jnp.float32):
    """feat2: (N,512,h2,w2), feat3: (N,1024,h3,w3); returns (N, out_dim, S, S)."""
    N, C2, h2, w2 = feat2.shape
    _, C3, h3, w3 = feat3.shape
    Cout = proj_w.shape[0]
    S = int(feat_size)
    S2 = S * S
    h2w2, h3w3 = h2 * w2, h3 * w3

    if Cout % cout_tile != 0 or cout_tile % 8 != 0:
        cout_tile = Cout
    n_co = Cout // cout_tile

    # Fused (resize -> pool) operators, one per branch, grid-invariant (resident in VMEM).
    # Kept f32 for accuracy; at module-default feat_size=64 these could be cast to bf16 for
    # ~3-4x more MXU throughput if the tolerance budget allows.
    T2 = jnp.asarray(_spatial_kron(h2, w2, S))       # (h2*w2, S*S)
    T3 = jnp.asarray(_spatial_kron(h3, w3, S))       # (h3*w3, S*S)

    # bf16 operands for the DMA-heavy inputs (f32 accumulation in-kernel).
    f2 = feat2.reshape(N, C2, h2w2).astype(jnp.bfloat16)
    f3 = feat3.reshape(N, C3, h3w3).astype(jnp.bfloat16)
    w2m = proj_w[:, :C2].astype(jnp.bfloat16)        # channels 0..C2-1   of the concat
    w3m = proj_w[:, C2:].astype(jnp.bfloat16)        # channels C2..C2+C3 of the concat
    b = proj_b.reshape(Cout, 1).astype(jnp.float32)

    # Explicit VMEM budget: double-buffered pipeline blocks + matmul temporaries + headroom,
    # capped at 48 MiB so v7x (64 MiB/TC) keeps room for compiler internal scratch.
    def _padded_bytes(shape, dtype):
        s = list(shape)
        if len(s) >= 2:
            s[-2] = -(-s[-2] // 8) * 8
        s[-1] = -(-s[-1] // 128) * 128
        return int(np.prod(s)) * jnp.dtype(dtype).itemsize

    pipeline_blocks = [
        ((1, C2, h2w2), jnp.bfloat16), ((1, C3, h3w3), jnp.bfloat16),
        ((cout_tile, C2), jnp.bfloat16), ((cout_tile, C3), jnp.bfloat16),
        ((h2w2, S2), jnp.float32), ((h3w3, S2), jnp.float32),
        ((cout_tile, 1), jnp.float32), ((1, cout_tile, S2), out_dtype),
    ]
    vmem_limit = 2 * sum(_padded_bytes(s, d) for s, d in pipeline_blocks)
    vmem_limit += 3 * _padded_bytes((cout_tile, S2), jnp.float32)                 # matmul results
    vmem_limit += 2 * _padded_bytes((cout_tile, max(h2w2, h3w3)), jnp.float32)    # g2 / g3
    vmem_limit += 4 << 20                                                          # scratch headroom
    vmem_limit = int(min(vmem_limit, 48 << 20))

    # Grid order matters: n OUTER, co inner.  The f2/f3 index_maps depend only on n, so the
    # feature blocks stay resident across all co steps (no re-DMA of the heaviest operands).
    # TODO(synk): for very small h*w (< 256 lanes) multiple batch elements could be folded into
    # one grid step to fill the MXU; skipped here to keep the block structure simple and robust.
    in_specs = [
        pl.BlockSpec((1, C2, h2w2), lambda n, co: (n, 0, 0)),
        pl.BlockSpec((1, C3, h3w3), lambda n, co: (n, 0, 0)),
        pl.BlockSpec((cout_tile, C2), lambda n, co: (co, 0)),
        pl.BlockSpec((cout_tile, C3), lambda n, co: (co, 0)),
        pl.BlockSpec((h2w2, S2), lambda n, co: (0, 0)),
        pl.BlockSpec((h3w3, S2), lambda n, co: (0, 0)),
        pl.BlockSpec((cout_tile, 1), lambda n, co: (co, 0)),
    ]
    out_specs = pl.BlockSpec((1, cout_tile, S2), lambda n, co: (n, co, 0))

    out = pl.pallas_call(
        _teacher_head_kernel,
        out_shape=jax.ShapeDtypeStruct((N, Cout, S2), out_dtype),
        grid_spec=pltpu.PrefetchScalarGridSpec(
            num_scalar_prefetch=0,
            grid=(N, n_co),
            in_specs=in_specs,
            out_specs=out_specs,
        ),
        compiler_params=pltpu.CompilerParams(
            dimension_semantics=("parallel", "parallel"),
            vmem_limit_bytes=vmem_limit,
        ),
    )(f2, f3, w2m, w3m, T2, T3, b)

    # Free metadata reshape back to the module's (N, Cout, S, S) layout.
    return out.reshape(N, Cout, S, S)


# ----------------------------------------------------------------------------
# Deterministic encoder stub (shapes/strides of wide_resnet50_2 out_indices=[2,3])
# ----------------------------------------------------------------------------
def _stub_encoder(x, params):
    # TODO(synk): the frozen pretrained timm wide_resnet50_2 backbone is not reproduced; it is
    # replaced by a deterministic space-to-depth + linear stub emitting features with exactly
    # the shapes the real encoder yields (C=512 @ stride 8, C=1024 @ stride 16).
    def patchify(x, p):
        N, C, H, W = x.shape
        x = x.reshape(N, C, H // p, p, W // p, p)
        return x.transpose(0, 1, 3, 5, 2, 4).reshape(N, C * p * p, H // p, W // p)

    f2 = jnp.einsum('oc,nchw->nohw', params['enc2_w'], patchify(x, 8))    # (N, 512,  H/8,  W/8)
    f3 = jnp.einsum('oc,nchw->nohw', params['enc3_w'], patchify(x, 16))   # (N, 1024, H/16, W/16)
    return f2, f3


def init_params(key, out_dim=512):
    k1, k2, k3, k4 = jax.random.split(key, 4)
    return {
        'enc2_w': 0.05 * jax.random.normal(k1, (512, 3 * 8 * 8), jnp.float32),
        'enc3_w': 0.05 * jax.random.normal(k2, (1024, 3 * 16 * 16), jnp.float32),
        'proj_w': 0.02 * jax.random.normal(k3, (out_dim, 1024 + 512), jnp.float32),
        'proj_b': 0.01 * jax.random.normal(k4, (out_dim,), jnp.float32),
    }


def resnet_teacher_forward(x, params, feat_size=16):
    f2, f3 = _stub_encoder(x, params)
    return resnet_teacher_head(f2, f3, params['proj_w'], params['proj_b'], feat_size)


# ----------------------------------------------------------------------------
# Pure-JAX f32 reference of the head (independent contraction order) for a sanity check
# ----------------------------------------------------------------------------
def _reference_head(feat2, feat3, proj_w, proj_b, S):
    N, C2, h2, w2 = feat2.shape
    _, C3, h3, w3 = feat3.shape
    P = _avgpool3_matrix(S)

    def spatial(f, h, w):
        Mh = jnp.asarray(P @ _bilinear_matrix(h, S), dtype=jnp.float32)
        Mw = jnp.asarray(P @ _bilinear_matrix(w, S), dtype=jnp.float32)
        y = jnp.einsum('pi,ncij->ncpj', Mh, f)
        return jnp.einsum('qj,ncpj->ncpq', Mw, y)

    y2 = spatial(feat2, h2, w2)
    y3 = spatial(feat3, h3, w3)
    out = (jnp.einsum('oc,ncpq->nopq', proj_w[:, :C2], y2)
           + jnp.einsum('oc,ncpq->nopq', proj_w[:, C2:], y3)
           + proj_b[None, :, None, None])
    return out


if __name__ == "__main__":
    key = jax.random.PRNGKey(0)
    kx, kp = jax.random.split(key)

    # small demo shapes: batch=2, 3x64x64 image, feat_size=16 (module default is 64)
    x = jax.random.normal(kx, (2, 3, 64, 64), jnp.float32)
    params = init_params(kp, out_dim=512)

    out = resnet_teacher_forward(x, params, feat_size=16)
    out = jax.block_until_ready(out)
    assert out.shape == (2, 512, 16, 16), out.shape

    # cross-check the Pallas head (bf16 projection operands, f32 spatial/accumulation)
    # against a pure-f32 reference
    f2, f3 = _stub_encoder(x, params)
    ref = jax.block_until_ready(_reference_head(f2, f3, params['proj_w'], params['proj_b'], 16))
    np.testing.assert_allclose(np.asarray(out), np.asarray(ref), rtol=3e-2, atol=3e-2)

    print("KERNEL_OK")
</pallas_src>

<mosaic_0001>
module attributes {stable_mosaic.version = 11 : i64} {
  func.func @_teacher_head_kernel(%arg0: i32, %arg1: i32, %arg2: memref<1x512x64xbf16, #tpu.memory_space<vmem>>, %arg3: memref<1x1024x16xbf16, #tpu.memory_space<vmem>>, %arg4: memref<256x512xbf16, #tpu.memory_space<vmem>>, %arg5: memref<256x1024xbf16, #tpu.memory_space<vmem>>, %arg6: memref<64x256xf32, #tpu.memory_space<vmem>>, %arg7: memref<16x256xf32, #tpu.memory_space<vmem>>, %arg8: memref<256x1xf32, #tpu.memory_space<vmem>>, %arg9: memref<1x256x256xf32, #tpu.memory_space<vmem>>) attributes {dimension_semantics = [#tpu.dimension_semantics<parallel>, #tpu.dimension_semantics<parallel>], iteration_bounds = array<i64: 2, 2>, scalar_prefetch = 0 : i64, scratch_operands = 0 : i64, tpu.core_type = #tpu.core_type<tc>, window_params = [{transform_indices = @transform_0, window_bounds = array<i64: 1, 512, 64>}, {transform_indices = @transform_1, window_bounds = array<i64: 1, 1024, 16>}, {transform_indices = @transform_2, window_bounds = array<i64: 256, 512>}, {transform_indices = @transform_3, window_bounds = array<i64: 256, 1024>}, {pipeline_mode = #tpu.pipeline_mode<synchronous>, transform_indices = @transform_4, window_bounds = array<i64: 64, 256>}, {pipeline_mode = #tpu.pipeline_mode<synchronous>, transform_indices = @transform_5, window_bounds = array<i64: 16, 256>}, {transform_indices = @transform_6, window_bounds = array<i64: 256, 1>}, {transform_indices = @transform_7, window_bounds = array<i64: 1, 256, 256>}]} {
    %c0 = arith.constant 0 : index
    %c0_0 = arith.constant 0 : index
    %0 = vector.load %arg4[%c0, %c0_0] : memref<256x512xbf16, #tpu.memory_space<vmem>>, vector<256x512xbf16>
    %c0_1 = arith.constant 0 : index
    %c0_2 = arith.constant 0 : index
    %c0_3 = arith.constant 0 : index
    %1 = vector.load %arg2[%c0_1, %c0_2, %c0_3] : memref<1x512x64xbf16, #tpu.memory_space<vmem>>, vector<1x512x64xbf16>
    %2 = vector.shape_cast %1 : vector<1x512x64xbf16> to vector<512x64xbf16>
    %cst = arith.constant dense<0.000000e+00> : vector<256x64xf32>
    %3 = tpu.matmul %0, %2, %cst {dimension_numbers = #tpu.dot_dimension_numbers<[1], [0], [0], [1], [0, 0, 1, 1], [], []>} : vector<256x512xbf16>, vector<512x64xbf16>, vector<256x64xf32> -> vector<256x64xf32>
    %c0_4 = arith.constant 0 : index
    %c0_5 = arith.constant 0 : index
    %4 = vector.load %arg5[%c0_4, %c0_5] : memref<256x1024xbf16, #tpu.memory_space<vmem>>, vector<256x1024xbf16>
    %c0_6 = arith.constant 0 : index
    %c0_7 = arith.constant 0 : index
    %c0_8 = arith.constant 0 : index
    %5 = vector.load %arg3[%c0_6, %c0_7, %c0_8] : memref<1x1024x16xbf16, #tpu.memory_space<vmem>>, vector<1x1024x16xbf16>
    %6 = vector.shape_cast %5 : vector<1x1024x16xbf16> to vector<1024x16xbf16>
    %cst_9 = arith.constant dense<0.000000e+00> : vector<256x16xf32>
    %7 = tpu.matmul %4, %6, %cst_9 {dimension_numbers = #tpu.dot_dimension_numbers<[1], [0], [0], [1], [0, 0, 1, 1], [], []>} : vector<256x1024xbf16>, vector<1024x16xbf16>, vector<256x16xf32> -> vector<256x16xf32>
    %c0_10 = arith.constant 0 : index
    %c0_11 = arith.constant 0 : index
    %8 = vector.load %arg6[%c0_10, %c0_11] : memref<64x256xf32, #tpu.memory_space<vmem>>, vector<64x256xf32>
    %cst_12 = arith.constant dense<0.000000e+00> : vector<256x256xf32>
    %9 = tpu.matmul %3, %8, %cst_12 {dimension_numbers = #tpu.dot_dimension_numbers<[1], [0], [0], [1], [0, 0, 1, 1], [], []>} : vector<256x64xf32>, vector<64x256xf32>, vector<256x256xf32> -> vector<256x256xf32>
    %c0_13 = arith.constant 0 : index
    %c0_14 = arith.constant 0 : index
    %10 = vector.load %arg7[%c0_13, %c0_14] : memref<16x256xf32, #tpu.memory_space<vmem>>, vector<16x256xf32>
    %cst_15 = arith.constant dense<0.000000e+00> : vector<256x256xf32>
    %11 = tpu.matmul %7, %10, %cst_15 {dimension_numbers = #tpu.dot_dimension_numbers<[1], [0], [0], [1], [0, 0, 1, 1], [], []>} : vector<256x16xf32>, vector<16x256xf32>, vector<256x256xf32> -> vector<256x256xf32>
    %12 = arith.addf %9, %11 : vector<256x256xf32>
    %c0_16 = arith.constant 0 : index
    %c0_17 = arith.constant 0 : index
    %13 = vector.load %arg8[%c0_16, %c0_17] : memref<256x1xf32, #tpu.memory_space<vmem>>, vector<256x1xf32>
    %14 = vector.broadcast %13 : vector<256x1xf32> to vector<256x256xf32>
    %15 = arith.addf %12, %14 : vector<256x256xf32>
    %c0_18 = arith.constant 0 : index
    %c0_19 = arith.constant 0 : index
    %c0_20 = arith.constant 0 : index
    %16 = vector.load %arg9[%c0_18, %c0_19, %c0_20] : memref<1x256x256xf32, #tpu.memory_space<vmem>>, vector<1x256x256xf32>
    %17 = vector.shape_cast %16 : vector<1x256x256xf32> to vector<256x256xf32>
    %18 = vector.shape_cast %15 : vector<256x256xf32> to vector<1x256x256xf32>
    tpu.vector_store %arg9[%c0_18, %c0_19, %c0_20], %18 {strides = array<i32>} : memref<1x256x256xf32, #tpu.memory_space<vmem>>, vector<1x256x256xf32>,
    return
  }
  func.func @transform_0(%arg0: i32, %arg1: i32) -> (i32, i32, i32) {
    %c0_i32 = arith.constant 0 : i32
    %c0_i32_0 = arith.constant 0 : i32
    %c0_i32_1 = arith.constant 0 : i32
    return %arg0, %c0_i32, %c0_i32_0 : i32, i32, i32
  }
  func.func @transform_1(%arg0: i32, %arg1: i32) -> (i32, i32, i32) {
    %c0_i32 = arith.constant 0 : i32
    %c0_i32_0 = arith.constant 0 : i32
    %c0_i32_1 = arith.constant 0 : i32
    return %arg0, %c0_i32, %c0_i32_0 : i32, i32, i32
  }
  func.func @transform_2(%arg0: i32, %arg1: i32) -> (i32, i32) {
    %c0_i32 = arith.constant 0 : i32
    %c0_i32_0 = arith.constant 0 : i32
    return %arg1, %c0_i32 : i32, i32
  }
  func.func @transform_3(%arg0: i32, %arg1: i32) -> (i32, i32) {
    %c0_i32 = arith.constant 0 : i32
    %c0_i32_0 = arith.constant 0 : i32
    return %arg1, %c0_i32 : i32, i32
  }
  func.func @transform_4(%arg0: i32, %arg1: i32) -> (i32, i32) {
    %c0_i32 = arith.constant 0 : i32
    %c0_i32_0 = arith.constant 0 : i32
    %c0_i32_1 = arith.constant 0 : i32
    return %c0_i32, %c0_i32_0 : i32, i32
  }
  func.func @transform_5(%arg0: i32, %arg1: i32) -> (i32, i32) {
    %c0_i32 = arith.constant 0 : i32
    %c0_i32_0 = arith.constant 0 : i32
    %c0_i32_1 = arith.constant 0 : i32
    return %c0_i32, %c0_i32_0 : i32, i32
  }
  func.func @transform_6(%arg0: i32, %arg1: i32) -> (i32, i32) {
    %c0_i32 = arith.constant 0 : i32
    %c0_i32_0 = arith.constant 0 : i32
    return %arg1, %c0_i32 : i32, i32
  }
  func.func @transform_7(%arg0: i32, %arg1: i32) -> (i32, i32, i32) {
    %c0_i32 = arith.constant 0 : i32
    %c0_i32_0 = arith.constant 0 : i32
    return %arg0, %arg1, %c0_i32 : i32, i32, i32
  }
}

</mosaic_0001>

<llo_original>
// kernel: tpu_custom_call.1
$region0: #{tpu_custom_call.1}
  #allocation0 [shape = 'u32[]', space=smem, size = 0x4, offset = 0x4, fixed_abs, tag = 'smem constant byte address 0x4 - core index']
  #allocation1 [shape = 'u32[72,128]{1,0:T(1,128)}', space=vmem, size = 0x9000, scoped, tag = 'internal scratch']
  %s0 = inlined_call_operand.vmem [shape: bf16[2,512,64], index: 0, kind: input, shape index: {}]
  %s1 = inlined_call_operand.vmem [shape: bf16[2,1024,16], index: 1, kind: input, shape index: {}]
  %s2 = inlined_call_operand.vmem [shape: bf16[512,512], index: 2, kind: input, shape index: {}]
  %s3 = inlined_call_operand.hbm [shape: bf16[512,1024], index: 3, kind: input, shape index: {}]
  %s4 = inlined_call_operand.vmem [shape: f32[64,256], index: 4, kind: input, shape index: {}]
  %s5 = inlined_call_operand.vmem [shape: f32[16,256], index: 5, kind: input, shape index: {}]
  %s6 = inlined_call_operand.vmem [shape: f32[512,1], index: 6, kind: input, shape index: {}]
  %s7 = inlined_call_operand.hbm [shape: f32[2,512,256], index: 7, kind: output, shape index: {}]
  %s8 = sld [smem:[#allocation0]]
  $region65: #{tpu_custom_call.1} parent=0
    _
  %s10 = ssub.s32 1, %s8
  %s11 = scalar_select 0, %s10, %s8
  $region1: #{tpu_custom_call.1} parent=0
    #allocation2 [shape = 'u8[1048576]{0}', space=vmem, size = 0x100000, scoped, tag = 'input window, operand 3']
    #allocation3 [shape = 's32[2]{0}', space=sflag, size = 0x8, scoped, tag = 'scoped memory for tpu_custom_call.1']
    #allocation4 [shape = 's32[2]{0}', space=sflag, size = 0x8, scoped, tag = 'scoped memory for tpu_custom_call.1']
    #allocation5 [shape = 'u8[524288]{0}', space=vmem, size = 0x80000, scoped, tag = 'output window, operand 0']
    %12 = vsyncpa [#allocation3], 0
    %s13 = scalar_lea.sflag [#allocation3], 1
    %14 = vsyncpa %s13, 0
    %15 = vsyncpa [#allocation4], 0
    %s16 = scalar_lea.sflag [#allocation4], 1
    %17 = vsyncpa %s16, 0
    loop: start=0, step=1, limit=6
    $region2: #{tpu_custom_call.1} parent=1 // loop_pre_header
      _
    $region3: #{tpu_custom_call.1} parent=1 // loop_header
      %s19 = sphi 0, %s23
      %p20 = scmp.ge.s32.totalorder %s19, 6
      %s26 = sphi 0, %s38
      %s27 = sphi 0, %s34
      %s28 = sphi 0, %s26
      %s29 = sphi 0, %s27
      %s30 = sphi 0, %s28
      %s31 = sphi 0, %s29
      %s41 = sphi 0, %s43
      %s44 = sphi 0, %s41
      %s45 = sphi 0, %s44
      %s61 = sphi 0, %s45
      %s67 = sphi 0, %s69
      %s70 = sphi 0, %s67
      %s71 = sphi 0, %s70
      %s87 = sphi 0, %s71
      %s93 = sphi 0, %s95
      %s96 = sphi 0, %s93
      %s97 = sphi 0, %s96
      %s113 = sphi 0, %s97
      %s119 = sphi 0, %s121
      %s122 = sphi 0, %s119
      %s123 = sphi 0, %s122
      %s139 = sphi 0, %s123
      %s143 = sphi 0, %s143
      %s145 = sphi 0, %s143
      %s146 = sphi 0, %s145
      %s160 = sphi 0, %s146
      %s164 = sphi 0, %s164
      %s166 = sphi 0, %s164
      %s167 = sphi 0, %s166
      %s181 = sphi 0, %s167
      %s187 = sphi 0, %s189
      %s190 = sphi 0, %s187
      %s191 = sphi 0, %s190
      %s207 = sphi 0, %s191
      %s215 = sphi 0, %s217
      %s218 = sphi 0, %s215
      %s219 = sphi 0, %s218
      %s235 = sphi 0, %s219
    $region4: #{tpu_custom_call.1} parent=1 // loop_header_branch
      %22 = sbr.rel (%p20) target = $region8
    $region5: #{tpu_custom_call.1} parent=1 // loop_body
      %s24 = ssub.s32 %s19, 1
      %s25 = ssub.s32 %s19, 2
      %s32 = sadd.s32 1, %s27
      %p33 = scmp.ge.s32.totalorder %s32, 2
      %s34 = scalar_select %p33, 0, %s32
      %s35 = sadd.s32 1, %s26
      %s36 = scalar_select %p33, %s35, %s26
      %p37 = scmp.ge.s32.totalorder %s36, 2
      %s38 = scalar_select %p37, 0, %s36
      %s39 = ssub.s32 %s26, %s38
      %p40 = scmp.eq.s32.totalorder %s39, 0
      %s42 = sadd.s32 %s41, 1
      %s43 = scalar_select %p40, %s41, %s42
      %p46 = pneg %p40
      %p47 = scmp.eq.s32.totalorder %s19, 3
      %p48 = por %p46, %p47
      %p49 = scmp.ne.s32.totalorder %s41, %s44
      %p50 = scmp.eq.s32.totalorder %s19, 0
      %p51 = por %p49, %p50
      %p52 = scmp.ne.s32.totalorder %s41, %s44
      %p53 = scmp.eq.s32.totalorder %s24, 3
      %p54 = por %p52, %p53
      %p55 = scmp.ne.s32.totalorder %s44, %s45
      %p56 = scmp.eq.s32.totalorder %s24, 0
      %p57 = por %p55, %p56
      %p58 = scmp.ne.s32.totalorder %s44, %s45
      %p59 = scmp.eq.s32.totalorder %s25, 3
      %p60 = por %p58, %p59
      %p62 = scmp.ne.s32.totalorder %s45, %s61
      %p63 = scmp.eq.s32.totalorder %s25, 0
      %p64 = por %p62, %p63
      %s65 = ssub.s32 %s26, %s38
      %p66 = scmp.eq.s32.totalorder %s65, 0
      %s68 = sadd.s32 %s67, 1
      %s69 = scalar_select %p66, %s67, %s68
      %p72 = pneg %p66
      %p73 = scmp.eq.s32.totalorder %s19, 3
      %p74 = por %p72, %p73
      %p75 = scmp.ne.s32.totalorder %s67, %s70
      %p76 = scmp.eq.s32.totalorder %s19, 0
      %p77 = por %p75, %p76
      %p78 = scmp.ne.s32.totalorder %s67, %s70
      %p79 = scmp.eq.s32.totalorder %s24, 3
      %p80 = por %p78, %p79
      %p81 = scmp.ne.s32.totalorder %s70, %s71
      %p82 = scmp.eq.s32.totalorder %s24, 0
      %p83 = por %p81, %p82
      %p84 = scmp.ne.s32.totalorder %s70, %s71
      %p85 = scmp.eq.s32.totalorder %s25, 3
      %p86 = por %p84, %p85
      %p88 = scmp.ne.s32.totalorder %s71, %s87
      %p89 = scmp.eq.s32.totalorder %s25, 0
      %p90 = por %p88, %p89
      %s91 = ssub.s32 %s27, %s34
      %p92 = scmp.eq.s32.totalorder %s91, 0
      %s94 = sadd.s32 %s93, 1
      %s95 = scalar_select %p92, %s93, %s94
      %p98 = pneg %p92
      %p99 = scmp.eq.s32.totalorder %s19, 3
      %p100 = por %p98, %p99
      %p101 = scmp.ne.s32.totalorder %s93, %s96
      %p102 = scmp.eq.s32.totalorder %s19, 0
      %p103 = por %p101, %p102
      %p104 = scmp.ne.s32.totalorder %s93, %s96
      %p105 = scmp.eq.s32.totalorder %s24, 3
      %p106 = por %p104, %p105
      %p107 = scmp.ne.s32.totalorder %s96, %s97
      %p108 = scmp.eq.s32.totalorder %s24, 0
      %p109 = por %p107, %p108
      %p110 = scmp.ne.s32.totalorder %s96, %s97
      %p111 = scmp.eq.s32.totalorder %s25, 3
      %p112 = por %p110, %p111
      %p114 = scmp.ne.s32.totalorder %s97, %s113
      %p115 = scmp.eq.s32.totalorder %s25, 0
      %p116 = por %p114, %p115
      %s117 = ssub.s32 %s27, %s34
      %p118 = scmp.eq.s32.totalorder %s117, 0
      %s120 = sadd.s32 %s119, 1
      %s121 = scalar_select %p118, %s119, %s120
      %p124 = pneg %p118
      %p125 = scmp.eq.s32.totalorder %s19, 3
      %p126 = por %p124, %p125
      %p127 = scmp.ne.s32.totalorder %s119, %s122
      %p128 = scmp.eq.s32.totalorder %s19, 0
      %p129 = por %p127, %p128
      %p130 = scmp.ne.s32.totalorder %s119, %s122
      %p131 = scmp.eq.s32.totalorder %s24, 3
      %p132 = por %p130, %p131
      %p133 = scmp.ne.s32.totalorder %s122, %s123
      %p134 = scmp.eq.s32.totalorder %s24, 0
      %p135 = por %p133, %p134
      %p136 = scmp.ne.s32.totalorder %s122, %s123
      %p137 = scmp.eq.s32.totalorder %s25, 3
      %p138 = por %p136, %p137
      %p140 = scmp.ne.s32.totalorder %s123, %s139
      %p141 = scmp.eq.s32.totalorder %s25, 0
      %p142 = por %p140, %p141
      %s144 = sadd.s32 %s143, 1
      %p147 = scmp.eq.s32.totalorder %s19, 3
      %p148 = scmp.ne.s32.totalorder %s143, %s145
      %p149 = scmp.eq.s32.totalorder %s19, 0
      %p150 = por %p148, %p149
      %p151 = scmp.ne.s32.totalorder %s143, %s145
      %p152 = scmp.eq.s32.totalorder %s24, 3
      %p153 = por %p151, %p152
      %p154 = scmp.ne.s32.totalorder %s145, %s146
      %p155 = scmp.eq.s32.totalorder %s24, 0
      %p156 = por %p154, %p155
      %p157 = scmp.ne.s32.totalorder %s145, %s146
      %p158 = scmp.eq.s32.totalorder %s25, 3
      %p159 = por %p157, %p158
      %p161 = scmp.ne.s32.totalorder %s146, %s160
      %p162 = scmp.eq.s32.totalorder %s25, 0
      %p163 = por %p161, %p162
      %s165 = sadd.s32 %s164, 1
      %p168 = scmp.eq.s32.totalorder %s19, 3
      %p169 = scmp.ne.s32.totalorder %s164, %s166
      %p170 = scmp.eq.s32.totalorder %s19, 0
      %p171 = por %p169, %p170
      %p172 = scmp.ne.s32.totalorder %s164, %s166
      %p173 = scmp.eq.s32.totalorder %s24, 3
      %p174 = por %p172, %p173
      %p175 = scmp.ne.s32.totalorder %s166, %s167
      %p176 = scmp.eq.s32.totalorder %s24, 0
      %p177 = por %p175, %p176
      %p178 = scmp.ne.s32.totalorder %s166, %s167
      %p179 = scmp.eq.s32.totalorder %s25, 3
      %p180 = por %p178, %p179
      %p182 = scmp.ne.s32.totalorder %s167, %s181
      %p183 = scmp.eq.s32.totalorder %s25, 0
      %p184 = por %p182, %p183
      %s185 = ssub.s32 %s27, %s34
      %p186 = scmp.eq.s32.totalorder %s185, 0
      %s188 = sadd.s32 %s187, 1
      %s189 = scalar_select %p186, %s187, %s188
      %p192 = pneg %p186
      %p193 = scmp.eq.s32.totalorder %s19, 3
      %p194 = por %p192, %p193
      %p195 = scmp.ne.s32.totalorder %s187, %s190
      %p196 = scmp.eq.s32.totalorder %s19, 0
      %p197 = por %p195, %p196
      %p198 = scmp.ne.s32.totalorder %s187, %s190
      %p199 = scmp.eq.s32.totalorder %s24, 3
      %p200 = por %p198, %p199
      %p201 = scmp.ne.s32.totalorder %s190, %s191
      %p202 = scmp.eq.s32.totalorder %s24, 0
      %p203 = por %p201, %p202
      %p204 = scmp.ne.s32.totalorder %s190, %s191
      %p205 = scmp.eq.s32.totalorder %s25, 3
      %p206 = por %p204, %p205
      %p208 = scmp.ne.s32.totalorder %s191, %s207
      %p209 = scmp.eq.s32.totalorder %s25, 0
      %p210 = por %p208, %p209
      %s211 = ssub.s32 %s26, %s38
      %s212 = ssub.s32 %s27, %s34
      %s213 = sor.u32 %s211, %s212
      %p214 = scmp.eq.s32.totalorder %s213, 0
      %s216 = sadd.s32 %s215, 1
      %s217 = scalar_select %p214, %s215, %s216
      %p220 = pneg %p214
      %p221 = scmp.eq.s32.totalorder %s19, 3
      %p222 = por %p220, %p221
      %p223 = scmp.ne.s32.totalorder %s215, %s218
      %p224 = scmp.eq.s32.totalorder %s19, 0
      %p225 = por %p223, %p224
      %p226 = scmp.ne.s32.totalorder %s215, %s218
      %p227 = scmp.eq.s32.totalorder %s24, 3
      %p228 = por %p226, %p227
      %p229 = scmp.ne.s32.totalorder %s218, %s219
      %p230 = scmp.eq.s32.totalorder %s24, 0
      %p231 = por %p229, %p230
      %p232 = scmp.ne.s32.totalorder %s218, %s219
      %p233 = scmp.eq.s32.totalorder %s25, 3
      %p234 = por %p232, %p233
      %p236 = scmp.ne.s32.totalorder %s219, %s235
      %p237 = scmp.eq.s32.totalorder %s25, 0
      %p238 = por %p236, %p237
      %p239 = scmp.le.s32.totalorder 1, %s19
      %p240 = scmp.lt.s32.totalorder %s19, 5
      %p241 = pnand %p239, %p240
      %p242 = pneg %p241
      // Predicated region
      $region9: #{tpu_custom_call.1} parent=5 // pred_check
        _
      $region10: #{tpu_custom_call.1} parent=5 // pred_check_branch
        %244 = sbr.rel (%p241) target = $region12
      $region11: #{tpu_custom_call.1} parent=5 // pred_region
        %s245 = ssub.s32 %s19, 1
        // Predicated region
        $region13: #{tpu_custom_call.1} parent=11 // pred_check
          %p246 = pneg %p156
        $region14: #{tpu_custom_call.1} parent=11 // pred_check_branch
          %248 = sbr.rel (%p246) target = $region16
        $region15: #{tpu_custom_call.1} parent=11 // pred_region
          _
        $region16: #{tpu_custom_call.1} parent=11 // pred_fallthru
          _
        // Predicated region
        $region17: #{tpu_custom_call.1} parent=11 // pred_check
          %p249 = pneg %p177
        $region18: #{tpu_custom_call.1} parent=11 // pred_check_branch
          %251 = sbr.rel (%p249) target = $region20
        $region19: #{tpu_custom_call.1} parent=11 // pred_region
          _
        $region20: #{tpu_custom_call.1} parent=11 // pred_fallthru
          _
      $region12: #{tpu_custom_call.1} parent=5 // pred_fallthru
        _
      %p252 = scmp.lt.s32.totalorder %s19, 4
      // Predicated region
      $region21: #{tpu_custom_call.1} parent=5 // pred_check
        %p253 = pneg %p252
      $region22: #{tpu_custom_call.1} parent=5 // pred_check_branch
        %255 = sbr.rel (%p253) target = $region24
      $region23: #{tpu_custom_call.1} parent=5 // pred_region
        // Predicated region
        $region25: #{tpu_custom_call.1} parent=23 // pred_check
          %p256 = pneg %p51
        $region26: #{tpu_custom_call.1} parent=23 // pred_check_branch
          %258 = sbr.rel (%p256) target = $region28
        $region27: #{tpu_custom_call.1} parent=23 // pred_region
          %p259 = scmp.lt.s32.totalorder %s26, 1
          %s260 = scalar_select %p259, %s26, 1
          %s261 = smul.addr %s260, 64
          %s262 = smul.addr %s261, 4
          %s263 = scalar_lea.vmem %s0, %s262
        $region28: #{tpu_custom_call.1} parent=23 // pred_fallthru
          _
        // Predicated region
        $region29: #{tpu_custom_call.1} parent=23 // pred_check
          %p264 = pneg %p77
        $region30: #{tpu_custom_call.1} parent=23 // pred_check_branch
          %266 = sbr.rel (%p264) target = $region32
        $region31: #{tpu_custom_call.1} parent=23 // pred_region
          %p267 = scmp.lt.s32.totalorder %s26, 1
          %s268 = scalar_select %p267, %s26, 1
          %s269 = smul.addr %s268, 128
          %s270 = smul.addr %s269, 4
          %s271 = scalar_lea.vmem %s1, %s270
        $region32: #{tpu_custom_call.1} parent=23 // pred_fallthru
          _
        // Predicated region
        $region33: #{tpu_custom_call.1} parent=23 // pred_check
          %p272 = pneg %p103
        $region34: #{tpu_custom_call.1} parent=23 // pred_check_branch
          %274 = sbr.rel (%p272) target = $region36
        $region35: #{tpu_custom_call.1} parent=23 // pred_region
          %s275 = smul.u32 32, %s27
          %p276 = scmp.lt.s32.totalorder %s275, 63
          %s277 = scalar_select %p276, %s275, 63
          %s278 = smul.addr %s277, 4
          %s279 = smul.addr %s278, 4
          %s280 = scalar_lea.vmem %s2, %s279
          %s281 = smul.u32 32, %s27
        $region36: #{tpu_custom_call.1} parent=23 // pred_fallthru
          _
        // Predicated region
        $region37: #{tpu_custom_call.1} parent=23 // pred_check
          %p282 = pneg %p129
        $region38: #{tpu_custom_call.1} parent=23 // pred_check_branch
          %284 = sbr.rel (%p282) target = $region40
        $region39: #{tpu_custom_call.1} parent=23 // pred_region
          %s285 = sand.u32 %s119, 1
          %s286 = scalar_lea.sflag [#allocation3], %s285
          %s287 = sand.u32 %s119, 1
          %s288 = smul.addr %s287, 1024
          %s289 = scalar_lea.vmem [#allocation2], %s288
          %s290 = smul.u32 32, %s27
          %292 = vsyncadd %s286, 0
          %s293 = smul.addr %s290, 8
          %s294 = smul.addr %s293, 4
          %s295 = scalar_lea.hbm %s3, %s294
          %s296 = sshll.u32 %s295, 4
          %s297 = int_to_ptr.hbm [resolvable:$true] %s296
          %s298 = sshll.u32 %s289, 4
          %s299 = int_to_ptr.vmem [resolvable:$true] %s298
          %304 = dma.hbm_to_vmem [thread:$0]  %s297, 16384, %s299, %s286, 512, 512, 32
        $region40: #{tpu_custom_call.1} parent=23 // pred_fallthru
          _
        // Predicated region
        $region41: #{tpu_custom_call.1} parent=23 // pred_check
          %p305 = pneg %p197
        $region42: #{tpu_custom_call.1} parent=23 // pred_check_branch
          %307 = sbr.rel (%p305) target = $region44
        $region43: #{tpu_custom_call.1} parent=23 // pred_region
          %s308 = smul.u32 32, %s27
          %p309 = scmp.lt.s32.totalorder %s308, 63
          %s310 = scalar_select %p309, %s308, 63
          %s311 = smul.addr %s310, 8
          %s312 = scalar_lea.vmem %s6, %s311
          %s313 = smul.u32 32, %s27
        $region44: #{tpu_custom_call.1} parent=23 // pred_fallthru
          _
      $region24: #{tpu_custom_call.1} parent=5 // pred_fallthru
        _
      %p314 = scmp.le.s32.totalorder 1, %s19
      %p315 = scmp.lt.s32.totalorder %s19, 5
      %p316 = pnand %p314, %p315
      %p317 = pneg %p316
      // Predicated region
      $region45: #{tpu_custom_call.1} parent=5 // pred_check
        _
      $region46: #{tpu_custom_call.1} parent=5 // pred_check_branch
        %319 = sbr.rel (%p316) target = $region48
      $region47: #{tpu_custom_call.1} parent=5 // pred_region
        %s320 = ssub.s32 %s19, 1
        %s321 = sand.u32 %s122, 1
        %s322 = scalar_lea.sflag [#allocation3], %s321
        %s323 = sand.u32 %s122, 1
        %s324 = smul.addr %s323, 1024
        %s325 = scalar_lea.vmem [#allocation2], %s324
        // Predicated region
        $region49: #{tpu_custom_call.1} parent=47 // pred_check
          %p326 = pneg %p135
        $region50: #{tpu_custom_call.1} parent=47 // pred_check_branch
          %328 = sbr.rel (%p326) target = $region52
        $region51: #{tpu_custom_call.1} parent=47 // pred_region
          %330 = dma.done %s322, 16384
        $region52: #{tpu_custom_call.1} parent=47 // pred_fallthru
          _
        %p331 = scmp.lt.s32.totalorder %s28, 1
        %s332 = scalar_select %p331, %s28, 1
        %s333 = smul.addr %s332, 64
        %s334 = smul.addr %s333, 4
        %s335 = scalar_lea.vmem %s0, %s334
        %p336 = pneg %p57
        %p337 = pneg %p54
        %p338 = scmp.lt.s32.totalorder %s28, 1
        %s339 = scalar_select %p338, %s28, 1
        %s340 = smul.addr %s339, 128
        %s341 = smul.addr %s340, 4
        %s342 = scalar_lea.vmem %s1, %s341
        %p343 = pneg %p83
        %p344 = pneg %p80
        %s345 = smul.u32 32, %s29
        %p346 = scmp.lt.s32.totalorder %s345, 63
        %s347 = scalar_select %p346, %s345, 63
        %s348 = smul.addr %s347, 4
        %s349 = smul.addr %s348, 4
        %s350 = scalar_lea.vmem %s2, %s349
        %p351 = pneg %p109
        %p352 = pneg %p106
        %s353 = sand.u32 %s122, 1
        %s354 = scalar_lea.sflag [#allocation3], %s353
        %s355 = sand.u32 %s122, 1
        %s356 = smul.addr %s355, 1024
        %s357 = scalar_lea.vmem [#allocation2], %s356
        %p358 = pneg %p135
        %p359 = pneg %p132
        %p360 = pneg %p156
        %p361 = pneg %p153
        %p362 = pneg %p177
        %p363 = pneg %p174
        %s364 = smul.u32 32, %s29
        %p365 = scmp.lt.s32.totalorder %s364, 63
        %s366 = scalar_select %p365, %s364, 63
        %s367 = smul.addr %s366, 8
        %s368 = scalar_lea.vmem %s6, %s367
        %p369 = pneg %p203
        %p370 = pneg %p200
        %p371 = pneg %p231
        %p372 = pneg %p228
        %s373 = sand.u32 %s218, 1
        %s374 = scalar_lea.sflag [#allocation4], %s373
        %s375 = sand.u32 %s218, 1
        %s376 = smul.addr %s375, 512
        %s377 = scalar_lea.vmem [#allocation5], %s376
        %p378 = scmp.lt.s32.totalorder %s28, 1
        %s379 = scalar_select %p378, %s28, 1
        %s380 = smul.addr %s379, 64
        %s381 = smul.addr %s380, 4
        %s382 = scalar_lea.vmem %s0, %s381
        %p383 = scmp.lt.s32.totalorder %s28, 1
        %s384 = scalar_select %p383, %s28, 1
        %s385 = smul.addr %s384, 128
        %s386 = smul.addr %s385, 4
        %s387 = scalar_lea.vmem %s1, %s386
        %s388 = smul.u32 32, %s29
        %p389 = scmp.lt.s32.totalorder %s388, 63
        %s390 = scalar_select %p389, %s388, 63
        %s391 = smul.addr %s390, 4
        %s392 = smul.addr %s391, 4
        %s393 = scalar_lea.vmem %s2, %s392
        %s394 = smul.u32 32, %s29
        %s395 = smul.u32 32, %s29
        %s396 = smul.u32 32, %s29
        %p397 = scmp.lt.s32.totalorder %s396, 63
        %s398 = scalar_select %p397, %s396, 63
        %s399 = smul.addr %s398, 8
        %s400 = scalar_lea.vmem %s6, %s399
        %s401 = smul.u32 32, %s29
        %s402 = smul.u32 32, %s29
        %v403 = vld [vmem:[%s393] sm:$0xff]
        %v404 = vld [vmem:[%s393 + $0x8] sm:$0xff]
        %v405 = vld [vmem:[%s393 + $0x10] sm:$0xff]
        %v406 = vld [vmem:[%s393 + $0x18] sm:$0xff]
        %v407 = vld [vmem:[%s393 + $0x20] sm:$0xff]
        %v408 = vld [vmem:[%s393 + $0x28] sm:$0xff]
        %v409 = vld [vmem:[%s393 + $0x30] sm:$0xff]
        %v410 = vld [vmem:[%s393 + $0x38] sm:$0xff]
        %v411 = vld [vmem:[%s393 + $0x40] sm:$0xff]
        %v412 = vld [vmem:[%s393 + $0x48] sm:$0xff]
        %v413 = vld [vmem:[%s393 + $0x50] sm:$0xff]
        %v414 = vld [vmem:[%s393 + $0x58] sm:$0xff]
        %v415 = vld [vmem:[%s393 + $0x60] sm:$0xff]
        %v416 = vld [vmem:[%s393 + $0x68] sm:$0xff]
        %v417 = vld [vmem:[%s393 + $0x70] sm:$0xff]
        %v418 = vld [vmem:[%s393 + $0x78] sm:$0xff]
        %v419 = vld [vmem:[%s393 + $0x80] sm:$0xff]
        %v420 = vld [vmem:[%s393 + $0x88] sm:$0xff]
        %v421 = vld [vmem:[%s393 + $0x90] sm:$0xff]
        %v422 = vld [vmem:[%s393 + $0x98] sm:$0xff]
        %v423 = vld [vmem:[%s393 + $0xa0] sm:$0xff]
        %v424 = vld [vmem:[%s393 + $0xa8] sm:$0xff]
        %v425 = vld [vmem:[%s393 + $0xb0] sm:$0xff]
        %v426 = vld [vmem:[%s393 + $0xb8] sm:$0xff]
        %v427 = vld [vmem:[%s393 + $0xc0] sm:$0xff]
        %v428 = vld [vmem:[%s393 + $0xc8] sm:$0xff]
        %v429 = vld [vmem:[%s393 + $0xd0] sm:$0xff]
        %v430 = vld [vmem:[%s393 + $0xd8] sm:$0xff]
        %v431 = vld [vmem:[%s393 + $0xe0] sm:$0xff]
        %v432 = vld [vmem:[%s393 + $0xe8] sm:$0xff]
        %v433 = vld [vmem:[%s393 + $0xf0] sm:$0xff]
        %v434 = vld [vmem:[%s393 + $0xf8] sm:$0xff]
        %v435 = vld [vmem:[%s393 + $0x100] sm:$0xff]
        %v436 = vld [vmem:[%s393 + $0x108] sm:$0xff]
        %v437 = vld [vmem:[%s393 + $0x110] sm:$0xff]
        %v438 = vld [vmem:[%s393 + $0x118] sm:$0xff]
        %v439 = vld [vmem:[%s393 + $0x120] sm:$0xff]
        %v440 = vld [vmem:[%s393 + $0x128] sm:$0xff]
        %v441 = vld [vmem:[%s393 + $0x130] sm:$0xff]
        %v442 = vld [vmem:[%s393 + $0x138] sm:$0xff]
        %v443 = vld [vmem:[%s393 + $0x140] sm:$0xff]
        %v444 = vld [vmem:[%s393 + $0x148] sm:$0xff]
        %v445 = vld [vmem:[%s393 + $0x150] sm:$0xff]
        %v446 = vld [vmem:[%s393 + $0x158] sm:$0xff]
        %v447 = vld [vmem:[%s393 + $0x160] sm:$0xff]
        %v448 = vld [vmem:[%s393 + $0x168] sm:$0xff]
        %v449 = vld [vmem:[%s393 + $0x170] sm:$0xff]
        %v450 = vld [vmem:[%s393 + $0x178] sm:$0xff]
        %v451 = vld [vmem:[%s393 + $0x180] sm:$0xff]
        %v452 = vld [vmem:[%s393 + $0x188] sm:$0xff]
        %v453 = vld [vmem:[%s393 + $0x190] sm:$0xff]
        %v454 = vld [vmem:[%s393 + $0x198] sm:$0xff]
        %v455 = vld [vmem:[%s393 + $0x1a0] sm:$0xff]
        %v456 = vld [vmem:[%s393 + $0x1a8] sm:$0xff]
        %v457 = vld [vmem:[%s393 + $0x1b0] sm:$0xff]
        %v458 = vld [vmem:[%s393 + $0x1b8] sm:$0xff]
        %v459 = vld [vmem:[%s393 + $0x1c0] sm:$0xff]
        %v460 = vld [vmem:[%s393 + $0x1c8] sm:$0xff]
        %v461 = vld [vmem:[%s393 + $0x1d0] sm:$0xff]
        %v462 = vld [vmem:[%s393 + $0x1d8] sm:$0xff]
        %v463 = vld [vmem:[%s393 + $0x1e0] sm:$0xff]
        %v464 = vld [vmem:[%s393 + $0x1e8] sm:$0xff]
        %v465 = vld [vmem:[%s393 + $0x1f0] sm:$0xff]
        %v466 = vld [vmem:[%s393 + $0x1f8] sm:$0xff]
        %v467 = vld [vmem:[%s382] sm:$0xf]
        %v468 = vld [vmem:[%s382 + $0x4] sm:$0xf]
        %v469 = vld [vmem:[%s382 + $0x8] sm:$0xf]
        %v470 = vld [vmem:[%s382 + $0xc] sm:$0xf]
        %v471 = vld [vmem:[%s382 + $0x10] sm:$0xf]
        %v472 = vld [vmem:[%s382 + $0x14] sm:$0xf]
        %v473 = vld [vmem:[%s382 + $0x18] sm:$0xf]
        %v474 = vld [vmem:[%s382 + $0x1c] sm:$0xf]
        %v475 = vld [vmem:[%s382 + $0x20] sm:$0xf]
        %v476 = vld [vmem:[%s382 + $0x24] sm:$0xf]
        %v477 = vld [vmem:[%s382 + $0x28] sm:$0xf]
        %v478 = vld [vmem:[%s382 + $0x2c] sm:$0xf]
        %v479 = vld [vmem:[%s382 + $0x30] sm:$0xf]
        %v480 = vld [vmem:[%s382 + $0x34] sm:$0xf]
        %v481 = vld [vmem:[%s382 + $0x38] sm:$0xf]
        %v482 = vld [vmem:[%s382 + $0x3c] sm:$0xf]
        %v483 = vld [vmem:[%s382 + $0x40] sm:$0xf]
        %v484 = vld [vmem:[%s382 + $0x44] sm:$0xf]
        %v485 = vld [vmem:[%s382 + $0x48] sm:$0xf]
        %v486 = vld [vmem:[%s382 + $0x4c] sm:$0xf]
        %v487 = vld [vmem:[%s382 + $0x50] sm:$0xf]
        %v488 = vld [vmem:[%s382 + $0x54] sm:$0xf]
        %v489 = vld [vmem:[%s382 + $0x58] sm:$0xf]
        %v490 = vld [vmem:[%s382 + $0x5c] sm:$0xf]
        %v491 = vld [vmem:[%s382 + $0x60] sm:$0xf]
        %v492 = vld [vmem:[%s382 + $0x64] sm:$0xf]
        %v493 = vld [vmem:[%s382 + $0x68] sm:$0xf]
        %v494 = vld [vmem:[%s382 + $0x6c] sm:$0xf]
        %v495 = vld [vmem:[%s382 + $0x70] sm:$0xf]
        %v496 = vld [vmem:[%s382 + $0x74] sm:$0xf]
        %v497 = vld [vmem:[%s382 + $0x78] sm:$0xf]
        %v498 = vld [vmem:[%s382 + $0x7c] sm:$0xf]
        %v499 = vld [vmem:[%s382 + $0x80] sm:$0xf]
        %v500 = vld [vmem:[%s382 + $0x84] sm:$0xf]
        %v501 = vld [vmem:[%s382 + $0x88] sm:$0xf]
        %v502 = vld [vmem:[%s382 + $0x8c] sm:$0xf]
        %v503 = vld [vmem:[%s382 + $0x90] sm:$0xf]
        %v504 = vld [vmem:[%s382 + $0x94] sm:$0xf]
        %v505 = vld [vmem:[%s382 + $0x98] sm:$0xf]
        %v506 = vld [vmem:[%s382 + $0x9c] sm:$0xf]
        %v507 = vld [vmem:[%s382 + $0xa0] sm:$0xf]
        %v508 = vld [vmem:[%s382 + $0xa4] sm:$0xf]
        %v509 = vld [vmem:[%s382 + $0xa8] sm:$0xf]
        %v510 = vld [vmem:[%s382 + $0xac] sm:$0xf]
        %v511 = vld [vmem:[%s382 + $0xb0] sm:$0xf]
        %v512 = vld [vmem:[%s382 + $0xb4] sm:$0xf]
        %v513 = vld [vmem:[%s382 + $0xb8] sm:$0xf]
        %v514 = vld [vmem:[%s382 + $0xbc] sm:$0xf]
        %v515 = vld [vmem:[%s382 + $0xc0] sm:$0xf]
        %v516 = vld [vmem:[%s382 + $0xc4] sm:$0xf]
        %v517 = vld [vmem:[%s382 + $0xc8] sm:$0xf]
        %v518 = vld [vmem:[%s382 + $0xcc] sm:$0xf]
        %v519 = vld [vmem:[%s382 + $0xd0] sm:$0xf]
        %v520 = vld [vmem:[%s382 + $0xd4] sm:$0xf]
        %v521 = vld [vmem:[%s382 + $0xd8] sm:$0xf]
        %v522 = vld [vmem:[%s382 + $0xdc] sm:$0xf]
        %v523 = vld [vmem:[%s382 + $0xe0] sm:$0xf]
        %v524 = vld [vmem:[%s382 + $0xe4] sm:$0xf]
        %v525 = vld [vmem:[%s382 + $0xe8] sm:$0xf]
        %v526 = vld [vmem:[%s382 + $0xec] sm:$0xf]
        %v527 = vld [vmem:[%s382 + $0xf0] sm:$0xf]
        %v528 = vld [vmem:[%s382 + $0xf4] sm:$0xf]
        %v529 = vld [vmem:[%s382 + $0xf8] sm:$0xf]
        %v530 = vld [vmem:[%s382 + $0xfc] sm:$0xf]
        %v595 = vunpack.c.l.b16 %v403
        %v596 = vunpack.c.h.b16 %v403
        %v597 = vunpack.c.l.b16 %v404
        %v598 = vunpack.c.h.b16 %v404
        %v599 = vunpack.c.l.b16 %v405
        %v600 = vunpack.c.h.b16 %v405
        %v601 = vunpack.c.l.b16 %v406
        %v602 = vunpack.c.h.b16 %v406
        %v603 = vunpack.c.l.b16 %v407
        %v604 = vunpack.c.h.b16 %v407
        %v605 = vunpack.c.l.b16 %v408
        %v606 = vunpack.c.h.b16 %v408
        %v607 = vunpack.c.l.b16 %v409
        %v608 = vunpack.c.h.b16 %v409
        %v609 = vunpack.c.l.b16 %v410
        %v610 = vunpack.c.h.b16 %v410
        %v611 = vunpack.c.l.b16 %v411
        %v612 = vunpack.c.h.b16 %v411
        %v613 = vunpack.c.l.b16 %v412
        %v614 = vunpack.c.h.b16 %v412
        %v615 = vunpack.c.l.b16 %v413
        %v616 = vunpack.c.h.b16 %v413
        %v617 = vunpack.c.l.b16 %v414
        %v618 = vunpack.c.h.b16 %v414
        %v619 = vunpack.c.l.b16 %v415
        %v620 = vunpack.c.h.b16 %v415
        %v621 = vunpack.c.l.b16 %v416
        %v622 = vunpack.c.h.b16 %v416
        %v623 = vunpack.c.l.b16 %v417
        %v624 = vunpack.c.h.b16 %v417
        %v625 = vunpack.c.l.b16 %v418
        %v626 = vunpack.c.h.b16 %v418
        %v627 = vunpack.c.l.b16 %v419
        %v628 = vunpack.c.h.b16 %v419
        %v629 = vunpack.c.l.b16 %v420
        %v630 = vunpack.c.h.b16 %v420
        %v631 = vunpack.c.l.b16 %v421
        %v632 = vunpack.c.h.b16 %v421
        %v633 = vunpack.c.l.b16 %v422
        %v634 = vunpack.c.h.b16 %v422
        %v635 = vunpack.c.l.b16 %v423
        %v636 = vunpack.c.h.b16 %v423
        %v637 = vunpack.c.l.b16 %v424
        %v638 = vunpack.c.h.b16 %v424
        %v639 = vunpack.c.l.b16 %v425
        %v640 = vunpack.c.h.b16 %v425
        %v641 = vunpack.c.l.b16 %v426
        %v642 = vunpack.c.h.b16 %v426
        %v643 = vunpack.c.l.b16 %v427
        %v644 = vunpack.c.h.b16 %v427
        %v645 = vunpack.c.l.b16 %v428
        %v646 = vunpack.c.h.b16 %v428
        %v647 = vunpack.c.l.b16 %v429
        %v648 = vunpack.c.h.b16 %v429
        %v649 = vunpack.c.l.b16 %v430
        %v650 = vunpack.c.h.b16 %v430
        %v651 = vunpack.c.l.b16 %v431
        %v652 = vunpack.c.h.b16 %v431
        %v653 = vunpack.c.l.b16 %v432
        %v654 = vunpack.c.h.b16 %v432
        %v655 = vunpack.c.l.b16 %v433
        %v656 = vunpack.c.h.b16 %v433
        %v657 = vunpack.c.l.b16 %v434
        %v658 = vunpack.c.h.b16 %v434
        %v659 = vunpack.c.l.b16 %v435
        %v660 = vunpack.c.h.b16 %v435
        %v661 = vunpack.c.l.b16 %v436
        %v662 = vunpack.c.h.b16 %v436
        %v663 = vunpack.c.l.b16 %v437
        %v664 = vunpack.c.h.b16 %v437
        %v665 = vunpack.c.l.b16 %v438
        %v666 = vunpack.c.h.b16 %v438
        %v667 = vunpack.c.l.b16 %v439
        %v668 = vunpack.c.h.b16 %v439
        %v669 = vunpack.c.l.b16 %v440
        %v670 = vunpack.c.h.b16 %v440
        %v671 = vunpack.c.l.b16 %v441
        %v672 = vunpack.c.h.b16 %v441
        %v673 = vunpack.c.l.b16 %v442
        %v674 = vunpack.c.h.b16 %v442
        %v675 = vunpack.c.l.b16 %v443
        %v676 = vunpack.c.h.b16 %v443
        %v677 = vunpack.c.l.b16 %v444
        %v678 = vunpack.c.h.b16 %v444
        %v679 = vunpack.c.l.b16 %v445
        %v680 = vunpack.c.h.b16 %v445
        %v681 = vunpack.c.l.b16 %v446
        %v682 = vunpack.c.h.b16 %v446
        %v683 = vunpack.c.l.b16 %v447
        %v684 = vunpack.c.h.b16 %v447
        %v685 = vunpack.c.l.b16 %v448
        %v686 = vunpack.c.h.b16 %v448
        %v687 = vunpack.c.l.b16 %v449
        %v688 = vunpack.c.h.b16 %v449
        %v689 = vunpack.c.l.b16 %v450
        %v690 = vunpack.c.h.b16 %v450
        %v691 = vunpack.c.l.b16 %v451
        %v692 = vunpack.c.h.b16 %v451
        %v693 = vunpack.c.l.b16 %v452
        %v694 = vunpack.c.h.b16 %v452
        %v695 = vunpack.c.l.b16 %v453
        %v696 = vunpack.c.h.b16 %v453
        %v697 = vunpack.c.l.b16 %v454
        %v698 = vunpack.c.h.b16 %v454
        %v699 = vunpack.c.l.b16 %v455
        %v700 = vunpack.c.h.b16 %v455
        %v701 = vunpack.c.l.b16 %v456
        %v702 = vunpack.c.h.b16 %v456
        %v703 = vunpack.c.l.b16 %v457
        %v704 = vunpack.c.h.b16 %v457
        %v705 = vunpack.c.l.b16 %v458
        %v706 = vunpack.c.h.b16 %v458
        %v707 = vunpack.c.l.b16 %v459
        %v708 = vunpack.c.h.b16 %v459
        %v709 = vunpack.c.l.b16 %v460
        %v710 = vunpack.c.h.b16 %v460
        %v711 = vunpack.c.l.b16 %v461
        %v712 = vunpack.c.h.b16 %v461
        %v713 = vunpack.c.l.b16 %v462
        %v714 = vunpack.c.h.b16 %v462
        %v715 = vunpack.c.l.b16 %v463
        %v716 = vunpack.c.h.b16 %v463
        %v717 = vunpack.c.l.b16 %v464
        %v718 = vunpack.c.h.b16 %v464
        %v719 = vunpack.c.l.b16 %v465
        %v720 = vunpack.c.h.b16 %v465
        %v721 = vunpack.c.l.b16 %v466
        %v722 = vunpack.c.h.b16 %v466
        %v723 = vpack.c.b16 %v599, %v595
        %v724 = vpack.c.b16 %v600, %v596
        %v725 = vpack.c.b16 %v601, %v597
        %v726 = vpack.c.b16 %v602, %v598
        %v727 = vpack.c.b16 %v607, %v603
        %v728 = vpack.c.b16 %v608, %v604
        %v729 = vpack.c.b16 %v609, %v605
        %v730 = vpack.c.b16 %v610, %v606
        %v731 = vpack.c.b16 %v615, %v611
        %v732 = vpack.c.b16 %v616, %v612
        %v733 = vpack.c.b16 %v617, %v613
        %v734 = vpack.c.b16 %v618, %v614
        %v735 = vpack.c.b16 %v623, %v619
        %v736 = vpack.c.b16 %v624, %v620
        %v737 = vpack.c.b16 %v625, %v621
        %v738 = vpack.c.b16 %v626, %v622
        %v739 = vpack.c.b16 %v631, %v627
        %v740 = vpack.c.b16 %v632, %v628
        %v741 = vpack.c.b16 %v633, %v629
        %v742 = vpack.c.b16 %v634, %v630
        %v743 = vpack.c.b16 %v639, %v635
        %v744 = vpack.c.b16 %v640, %v636
        %v745 = vpack.c.b16 %v641, %v637
        %v746 = vpack.c.b16 %v642, %v638
        %v747 = vpack.c.b16 %v647, %v643
        %v748 = vpack.c.b16 %v648, %v644
        %v749 = vpack.c.b16 %v649, %v645
        %v750 = vpack.c.b16 %v650, %v646
        %v751 = vpack.c.b16 %v655, %v651
        %v752 = vpack.c.b16 %v656, %v652
        %v753 = vpack.c.b16 %v657, %v653
        %v754 = vpack.c.b16 %v658, %v654
        %v755 = vpack.c.b16 %v663, %v659
        %v756 = vpack.c.b16 %v664, %v660
        %v757 = vpack.c.b16 %v665, %v661
        %v758 = vpack.c.b16 %v666, %v662
        %v759 = vpack.c.b16 %v671, %v667
        %v760 = vpack.c.b16 %v672, %v668
        %v761 = vpack.c.b16 %v673, %v669
        %v762 = vpack.c.b16 %v674, %v670
        %v763 = vpack.c.b16 %v679, %v675
        %v764 = vpack.c.b16 %v680, %v676
        %v765 = vpack.c.b16 %v681, %v677
        %v766 = vpack.c.b16 %v682, %v678
        %v767 = vpack.c.b16 %v687, %v683
        %v768 = vpack.c.b16 %v688, %v684
        %v769 = vpack.c.b16 %v689, %v685
        %v770 = vpack.c.b16 %v690, %v686
        %v771 = vpack.c.b16 %v695, %v691
        %v772 = vpack.c.b16 %v696, %v692
        %v773 = vpack.c.b16 %v697, %v693
        %v774 = vpack.c.b16 %v698, %v694
        %v775 = vpack.c.b16 %v703, %v699
        %v776 = vpack.c.b16 %v704, %v700
        %v777 = vpack.c.b16 %v705, %v701
        %v778 = vpack.c.b16 %v706, %v702
        %v779 = vpack.c.b16 %v711, %v707
        %v780 = vpack.c.b16 %v712, %v708
        %v781 = vpack.c.b16 %v713, %v709
        %v782 = vpack.c.b16 %v714, %v710
        %v783 = vpack.c.b16 %v719, %v715
        %v784 = vpack.c.b16 %v720, %v716
        %v785 = vpack.c.b16 %v721, %v717
        %v786 = vpack.c.b16 %v722, %v718
        %v915 = vunpack.c.l.b16 %v467
        %v916 = vunpack.c.l.b16 %v468
        %v917 = vunpack.c.l.b16 %v469
        %v918 = vunpack.c.l.b16 %v470
        %v919 = vunpack.c.l.b16 %v471
        %v920 = vunpack.c.l.b16 %v472
        %v921 = vunpack.c.l.b16 %v473
        %v922 = vunpack.c.l.b16 %v474
        %v923 = vunpack.c.l.b16 %v475
        %v924 = vunpack.c.l.b16 %v476
        %v925 = vunpack.c.l.b16 %v477
        %v926 = vunpack.c.l.b16 %v478
        %v927 = vunpack.c.l.b16 %v479
        %v928 = vunpack.c.l.b16 %v480
        %v929 = vunpack.c.l.b16 %v481
        %v930 = vunpack.c.l.b16 %v482
        %v931 = vunpack.c.l.b16 %v483
        %v932 = vunpack.c.l.b16 %v484
        %v933 = vunpack.c.l.b16 %v485
        %v934 = vunpack.c.l.b16 %v486
        %v935 = vunpack.c.l.b16 %v487
        %v936 = vunpack.c.l.b16 %v488
        %v937 = vunpack.c.l.b16 %v489
        %v938 = vunpack.c.l.b16 %v490
        %v939 = vunpack.c.l.b16 %v491
        %v940 = vunpack.c.l.b16 %v492
        %v941 = vunpack.c.l.b16 %v493
        %v942 = vunpack.c.l.b16 %v494
        %v943 = vunpack.c.l.b16 %v495
        %v944 = vunpack.c.l.b16 %v496
        %v945 = vunpack.c.l.b16 %v497
        %v946 = vunpack.c.l.b16 %v498
        %v947 = vunpack.c.l.b16 %v499
        %v948 = vunpack.c.l.b16 %v500
        %v949 = vunpack.c.l.b16 %v501
        %v950 = vunpack.c.l.b16 %v502
        %v951 = vunpack.c.l.b16 %v503
        %v952 = vunpack.c.l.b16 %v504
        %v953 = vunpack.c.l.b16 %v505
        %v954 = vunpack.c.l.b16 %v506
        %v955 = vunpack.c.l.b16 %v507
        %v956 = vunpack.c.l.b16 %v508
        %v957 = vunpack.c.l.b16 %v509
        %v958 = vunpack.c.l.b16 %v510
        %v959 = vunpack.c.l.b16 %v511
        %v960 = vunpack.c.l.b16 %v512
        %v961 = vunpack.c.l.b16 %v513
        %v962 = vunpack.c.l.b16 %v514
        %v963 = vunpack.c.l.b16 %v515
        %v964 = vunpack.c.l.b16 %v516
        %v965 = vunpack.c.l.b16 %v517
        %v966 = vunpack.c.l.b16 %v518
        %v967 = vunpack.c.l.b16 %v519
        %v968 = vunpack.c.l.b16 %v520
        %v969 = vunpack.c.l.b16 %v521
        %v970 = vunpack.c.l.b16 %v522
        %v971 = vunpack.c.l.b16 %v523
        %v972 = vunpack.c.l.b16 %v524
        %v973 = vunpack.c.l.b16 %v525
        %v974 = vunpack.c.l.b16 %v526
        %v975 = vunpack.c.l.b16 %v527
        %v976 = vunpack.c.l.b16 %v528
        %v977 = vunpack.c.l.b16 %v529
        %v978 = vunpack.c.l.b16 %v530
        %v979 = vpack.c.b16 %v916, %v915
        %v980 = vpack.c.b16 %v918, %v917
        %v981 = vpack.c.b16 %v920, %v919
        %v982 = vpack.c.b16 %v922, %v921
        %v983 = vpack.c.b16 %v924, %v923
        %v984 = vpack.c.b16 %v926, %v925
        %v985 = vpack.c.b16 %v928, %v927
        %v986 = vpack.c.b16 %v930, %v929
        %v987 = vpack.c.b16 %v932, %v931
        %v988 = vpack.c.b16 %v934, %v933
        %v989 = vpack.c.b16 %v936, %v935
        %v990 = vpack.c.b16 %v938, %v937
        %v991 = vpack.c.b16 %v940, %v939
        %v992 = vpack.c.b16 %v942, %v941
        %v993 = vpack.c.b16 %v944, %v943
        %v994 = vpack.c.b16 %v946, %v945
        %v995 = vpack.c.b16 %v948, %v947
        %v996 = vpack.c.b16 %v950, %v949
        %v997 = vpack.c.b16 %v952, %v951
        %v998 = vpack.c.b16 %v954, %v953
        %v999 = vpack.c.b16 %v956, %v955
        %v1000 = vpack.c.b16 %v958, %v957
        %v1001 = vpack.c.b16 %v960, %v959
        %v1002 = vpack.c.b16 %v962, %v961
        %v1003 = vpack.c.b16 %v964, %v963
        %v1004 = vpack.c.b16 %v966, %v965
        %v1005 = vpack.c.b16 %v968, %v967
        %v1006 = vpack.c.b16 %v970, %v969
        %v1007 = vpack.c.b16 %v972, %v971
        %v1008 = vpack.c.b16 %v974, %v973
        %v1009 = vpack.c.b16 %v976, %v975
        %v1010 = vpack.c.b16 %v978, %v977
        %1043 = vmatpush.bf16.msra.mxu0 %v986
        %1044 = vmatpush.bf16.msra.mxu0 %v985
        %1045 = vmatpush.bf16.msra.mxu0 %v984
        %1046 = vmatpush.bf16.msra.mxu0 %v983
        %1047 = vmatpush.bf16.msra.mxu0 %v982
        %1048 = vmatpush.bf16.msra.mxu0 %v981
        %1049 = vmatpush.bf16.msra.mxu0 %v980
        %1050 = vmatpush.bf16.msra.mxu0 %v979
        %1051 = vmatmul.bf16.gmra.mxu0 %v723
        %v1052 = vpop.f32.mrf.mxu0
        %v1053 = vadd.f32 0.0, %v1052
        %v1054 = vpop.f32.mrf.mxu0
        %v1055 = vadd.f32 0.0, %v1054
        %1056 = vmatmul.bf16.gmra.mxu0 %v727
        %v1057 = vpop.f32.mrf.mxu0
        %v1058 = vadd.f32 0.0, %v1057
        %v1059 = vpop.f32.mrf.mxu0
        %v1060 = vadd.f32 0.0, %v1059
        %1061 = vmatmul.bf16.gmra.mxu0 %v731
        %v1062 = vpop.f32.mrf.mxu0
        %v1063 = vadd.f32 0.0, %v1062
        %v1064 = vpop.f32.mrf.mxu0
        %v1065 = vadd.f32 0.0, %v1064
        %1066 = vmatmul.bf16.gmra.mxu0 %v735
        %v1067 = vpop.f32.mrf.mxu0
        %v1068 = vadd.f32 0.0, %v1067
        %v1069 = vpop.f32.mrf.mxu0
        %v1070 = vadd.f32 0.0, %v1069
        %1071 = vmatmul.bf16.gmra.mxu0 %v739
        %v1072 = vpop.f32.mrf.mxu0
        %v1073 = vadd.f32 0.0, %v1072
        %v1074 = vpop.f32.mrf.mxu0
        %v1075 = vadd.f32 0.0, %v1074
        %1076 = vmatmul.bf16.gmra.mxu0 %v743
        %v1077 = vpop.f32.mrf.mxu0
        %v1078 = vadd.f32 0.0, %v1077
        %v1079 = vpop.f32.mrf.mxu0
        %v1080 = vadd.f32 0.0, %v1079
        %1081 = vmatmul.bf16.gmra.mxu0 %v747
        %v1082 = vpop.f32.mrf.mxu0
        %v1083 = vadd.f32 0.0, %v1082
        %v1084 = vpop.f32.mrf.mxu0
        %v1085 = vadd.f32 0.0, %v1084
        %1086 = vmatmul.bf16.gmra.mxu0 %v751
        %v1087 = vpop.f32.mrf.mxu0
        %v1088 = vadd.f32 0.0, %v1087
        %v1089 = vpop.f32.mrf.mxu0
        %v1090 = vadd.f32 0.0, %v1089
        %1091 = vmatmul.bf16.gmra.mxu0 %v755
        %v1092 = vpop.f32.mrf.mxu0
        %v1093 = vadd.f32 0.0, %v1092
        %v1094 = vpop.f32.mrf.mxu0
        %v1095 = vadd.f32 0.0, %v1094
        %1096 = vmatmul.bf16.gmra.mxu0 %v759
        %v1097 = vpop.f32.mrf.mxu0
        %v1098 = vadd.f32 0.0, %v1097
        %v1099 = vpop.f32.mrf.mxu0
        %v1100 = vadd.f32 0.0, %v1099
        %1101 = vmatmul.bf16.gmra.mxu0 %v763
        %v1102 = vpop.f32.mrf.mxu0
        %v1103 = vadd.f32 0.0, %v1102
        %v1104 = vpop.f32.mrf.mxu0
        %v1105 = vadd.f32 0.0, %v1104
        %1106 = vmatmul.bf16.gmra.mxu0 %v767
        %v1107 = vpop.f32.mrf.mxu0
        %v1108 = vadd.f32 0.0, %v1107
        %v1109 = vpop.f32.mrf.mxu0
        %v1110 = vadd.f32 0.0, %v1109
        %1111 = vmatmul.bf16.gmra.mxu0 %v771
        %v1112 = vpop.f32.mrf.mxu0
        %v1113 = vadd.f32 0.0, %v1112
        %v1114 = vpop.f32.mrf.mxu0
        %v1115 = vadd.f32 0.0, %v1114
        %1116 = vmatmul.bf16.gmra.mxu0 %v775
        %v1117 = vpop.f32.mrf.mxu0
        %v1118 = vadd.f32 0.0, %v1117
        %v1119 = vpop.f32.mrf.mxu0
        %v1120 = vadd.f32 0.0, %v1119
        %1121 = vmatmul.bf16.gmra.mxu0 %v779
        %v1122 = vpop.f32.mrf.mxu0
        %v1123 = vadd.f32 0.0, %v1122
        %v1124 = vpop.f32.mrf.mxu0
        %v1125 = vadd.f32 0.0, %v1124
        %1126 = vmatmul.bf16.gmra.mxu0 %v783
        %v1127 = vpop.f32.mrf.mxu0
        %v1128 = vadd.f32 0.0, %v1127
        %v1129 = vpop.f32.mrf.mxu0
        %v1130 = vadd.f32 0.0, %v1129
        %1131 = vdwg.mxu0
        %1132 = vmatpush.bf16.msra.mxu0 %v994
        %1133 = vmatpush.bf16.msra.mxu0 %v993
        %1134 = vmatpush.bf16.msra.mxu0 %v992
        %1135 = vmatpush.bf16.msra.mxu0 %v991
        %1136 = vmatpush.bf16.msra.mxu0 %v990
        %1137 = vmatpush.bf16.msra.mxu0 %v989
        %1138 = vmatpush.bf16.msra.mxu0 %v988
        %1139 = vmatpush.bf16.msra.mxu0 %v987
        %1140 = vmatmul.bf16.gmra.mxu0 %v724
        %v1141 = vpop.f32.mrf.mxu0
        %v1142 = vadd.f32 %v1053, %v1141
        %v1143 = vpop.f32.mrf.mxu0
        %v1144 = vadd.f32 %v1055, %v1143
        %1145 = vmatmul.bf16.gmra.mxu0 %v728
        %v1146 = vpop.f32.mrf.mxu0
        %v1147 = vadd.f32 %v1058, %v1146
        %v1148 = vpop.f32.mrf.mxu0
        %v1149 = vadd.f32 %v1060, %v1148
        %1150 = vmatmul.bf16.gmra.mxu0 %v732
        %v1151 = vpop.f32.mrf.mxu0
        %v1152 = vadd.f32 %v1063, %v1151
        %v1153 = vpop.f32.mrf.mxu0
        %v1154 = vadd.f32 %v1065, %v1153
        %1155 = vmatmul.bf16.gmra.mxu0 %v736
        %v1156 = vpop.f32.mrf.mxu0
        %v1157 = vadd.f32 %v1068, %v1156
        %v1158 = vpop.f32.mrf.mxu0
        %v1159 = vadd.f32 %v1070, %v1158
        %1160 = vmatmul.bf16.gmra.mxu0 %v740
        %v1161 = vpop.f32.mrf.mxu0
        %v1162 = vadd.f32 %v1073, %v1161
        %v1163 = vpop.f32.mrf.mxu0
        %v1164 = vadd.f32 %v1075, %v1163
        %1165 = vmatmul.bf16.gmra.mxu0 %v744
        %v1166 = vpop.f32.mrf.mxu0
        %v1167 = vadd.f32 %v1078, %v1166
        %v1168 = vpop.f32.mrf.mxu0
        %v1169 = vadd.f32 %v1080, %v1168
        %1170 = vmatmul.bf16.gmra.mxu0 %v748
        %v1171 = vpop.f32.mrf.mxu0
        %v1172 = vadd.f32 %v1083, %v1171
        %v1173 = vpop.f32.mrf.mxu0
        %v1174 = vadd.f32 %v1085, %v1173
        %1175 = vmatmul.bf16.gmra.mxu0 %v752
        %v1176 = vpop.f32.mrf.mxu0
        %v1177 = vadd.f32 %v1088, %v1176
        %v1178 = vpop.f32.mrf.mxu0
        %v1179 = vadd.f32 %v1090, %v1178
        %1180 = vmatmul.bf16.gmra.mxu0 %v756
        %v1181 = vpop.f32.mrf.mxu0
        %v1182 = vadd.f32 %v1093, %v1181
        %v1183 = vpop.f32.mrf.mxu0
        %v1184 = vadd.f32 %v1095, %v1183
        %1185 = vmatmul.bf16.gmra.mxu0 %v760
        %v1186 = vpop.f32.mrf.mxu0
        %v1187 = vadd.f32 %v1098, %v1186
        %v1188 = vpop.f32.mrf.mxu0
        %v1189 = vadd.f32 %v1100, %v1188
        %1190 = vmatmul.bf16.gmra.mxu0 %v764
        %v1191 = vpop.f32.mrf.mxu0
        %v1192 = vadd.f32 %v1103, %v1191
        %v1193 = vpop.f32.mrf.mxu0
        %v1194 = vadd.f32 %v1105, %v1193
        %1195 = vmatmul.bf16.gmra.mxu0 %v768
        %v1196 = vpop.f32.mrf.mxu0
        %v1197 = vadd.f32 %v1108, %v1196
        %v1198 = vpop.f32.mrf.mxu0
        %v1199 = vadd.f32 %v1110, %v1198
        %1200 = vmatmul.bf16.gmra.mxu0 %v772
        %v1201 = vpop.f32.mrf.mxu0
        %v1202 = vadd.f32 %v1113, %v1201
        %v1203 = vpop.f32.mrf.mxu0
        %v1204 = vadd.f32 %v1115, %v1203
        %1205 = vmatmul.bf16.gmra.mxu0 %v776
        %v1206 = vpop.f32.mrf.mxu0
        %v1207 = vadd.f32 %v1118, %v1206
        %v1208 = vpop.f32.mrf.mxu0
        %v1209 = vadd.f32 %v1120, %v1208
        %1210 = vmatmul.bf16.gmra.mxu0 %v780
        %v1211 = vpop.f32.mrf.mxu0
        %v1212 = vadd.f32 %v1123, %v1211
        %v1213 = vpop.f32.mrf.mxu0
        %v1214 = vadd.f32 %v1125, %v1213
        %1215 = vmatmul.bf16.gmra.mxu0 %v784
        %v1216 = vpop.f32.mrf.mxu0
        %v1217 = vadd.f32 %v1128, %v1216
        %v1218 = vpop.f32.mrf.mxu0
        %v1219 = vadd.f32 %v1130, %v1218
        %1220 = vdwg.mxu0
        %1221 = vmatpush.bf16.msra.mxu0 %v1002
        %1222 = vmatpush.bf16.msra.mxu0 %v1001
        %1223 = vmatpush.bf16.msra.mxu0 %v1000
        %1224 = vmatpush.bf16.msra.mxu0 %v999
        %1225 = vmatpush.bf16.msra.mxu0 %v998
        %1226 = vmatpush.bf16.msra.mxu0 %v997
        %1227 = vmatpush.bf16.msra.mxu0 %v996
        %1228 = vmatpush.bf16.msra.mxu0 %v995
        %1229 = vmatmul.bf16.gmra.mxu0 %v725
        %v1230 = vpop.f32.mrf.mxu0
        %v1231 = vadd.f32 %v1142, %v1230
        %v1232 = vpop.f32.mrf.mxu0
        %v1233 = vadd.f32 %v1144, %v1232
        %1234 = vmatmul.bf16.gmra.mxu0 %v729
        %v1235 = vpop.f32.mrf.mxu0
        %v1236 = vadd.f32 %v1147, %v1235
        %v1237 = vpop.f32.mrf.mxu0
        %v1238 = vadd.f32 %v1149, %v1237
        %1239 = vmatmul.bf16.gmra.mxu0 %v733
        %v1240 = vpop.f32.mrf.mxu0
        %v1241 = vadd.f32 %v1152, %v1240
        %v1242 = vpop.f32.mrf.mxu0
        %v1243 = vadd.f32 %v1154, %v1242
        %1244 = vmatmul.bf16.gmra.mxu0 %v737
        %v1245 = vpop.f32.mrf.mxu0
        %v1246 = vadd.f32 %v1157, %v1245
        %v1247 = vpop.f32.mrf.mxu0
        %v1248 = vadd.f32 %v1159, %v1247
        %1249 = vmatmul.bf16.gmra.mxu0 %v741
        %v1250 = vpop.f32.mrf.mxu0
        %v1251 = vadd.f32 %v1162, %v1250
        %v1252 = vpop.f32.mrf.mxu0
        %v1253 = vadd.f32 %v1164, %v1252
        %1254 = vmatmul.bf16.gmra.mxu0 %v745
        %v1255 = vpop.f32.mrf.mxu0
        %v1256 = vadd.f32 %v1167, %v1255
        %v1257 = vpop.f32.mrf.mxu0
        %v1258 = vadd.f32 %v1169, %v1257
        %1259 = vmatmul.bf16.gmra.mxu0 %v749
        %v1260 = vpop.f32.mrf.mxu0
        %v1261 = vadd.f32 %v1172, %v1260
        %v1262 = vpop.f32.mrf.mxu0
        %v1263 = vadd.f32 %v1174, %v1262
        %1264 = vmatmul.bf16.gmra.mxu0 %v753
        %v1265 = vpop.f32.mrf.mxu0
        %v1266 = vadd.f32 %v1177, %v1265
        %v1267 = vpop.f32.mrf.mxu0
        %v1268 = vadd.f32 %v1179, %v1267
        %1269 = vmatmul.bf16.gmra.mxu0 %v757
        %v1270 = vpop.f32.mrf.mxu0
        %v1271 = vadd.f32 %v1182, %v1270
        %v1272 = vpop.f32.mrf.mxu0
        %v1273 = vadd.f32 %v1184, %v1272
        %1274 = vmatmul.bf16.gmra.mxu0 %v761
        %v1275 = vpop.f32.mrf.mxu0
        %v1276 = vadd.f32 %v1187, %v1275
        %v1277 = vpop.f32.mrf.mxu0
        %v1278 = vadd.f32 %v1189, %v1277
        %1279 = vmatmul.bf16.gmra.mxu0 %v765
        %v1280 = vpop.f32.mrf.mxu0
        %v1281 = vadd.f32 %v1192, %v1280
        %v1282 = vpop.f32.mrf.mxu0
        %v1283 = vadd.f32 %v1194, %v1282
        %1284 = vmatmul.bf16.gmra.mxu0 %v769
        %v1285 = vpop.f32.mrf.mxu0
        %v1286 = vadd.f32 %v1197, %v1285
        %v1287 = vpop.f32.mrf.mxu0
        %v1288 = vadd.f32 %v1199, %v1287
        %1289 = vmatmul.bf16.gmra.mxu0 %v773
        %v1290 = vpop.f32.mrf.mxu0
        %v1291 = vadd.f32 %v1202, %v1290
        %v1292 = vpop.f32.mrf.mxu0
        %v1293 = vadd.f32 %v1204, %v1292
        %1294 = vmatmul.bf16.gmra.mxu0 %v777
        %v1295 = vpop.f32.mrf.mxu0
        %v1296 = vadd.f32 %v1207, %v1295
        %v1297 = vpop.f32.mrf.mxu0
        %v1298 = vadd.f32 %v1209, %v1297
        %1299 = vmatmul.bf16.gmra.mxu0 %v781
        %v1300 = vpop.f32.mrf.mxu0
        %v1301 = vadd.f32 %v1212, %v1300
        %v1302 = vpop.f32.mrf.mxu0
        %v1303 = vadd.f32 %v1214, %v1302
        %1304 = vmatmul.bf16.gmra.mxu0 %v785
        %v1305 = vpop.f32.mrf.mxu0
        %v1306 = vadd.f32 %v1217, %v1305
        %v1307 = vpop.f32.mrf.mxu0
        %v1308 = vadd.f32 %v1219, %v1307
        %1309 = vdwg.mxu0
        %1310 = vmatpush.bf16.msra.mxu0 %v1010
        %1311 = vmatpush.bf16.msra.mxu0 %v1009
        %1312 = vmatpush.bf16.msra.mxu0 %v1008
        %1313 = vmatpush.bf16.msra.mxu0 %v1007
        %1314 = vmatpush.bf16.msra.mxu0 %v1006
        %1315 = vmatpush.bf16.msra.mxu0 %v1005
        %1316 = vmatpush.bf16.msra.mxu0 %v1004
        %1317 = vmatpush.bf16.msra.mxu0 %v1003
        %1318 = vmatmul.bf16.gmra.mxu0 %v726
        %v1319 = vpop.f32.mrf.mxu0
        %v1320 = vadd.f32 %v1231, %v1319
        %v1321 = vpop.f32.mrf.mxu0
        %v1322 = vadd.f32 %v1233, %v1321
        %1323 = vmatmul.bf16.gmra.mxu0 %v730
        %v1324 = vpop.f32.mrf.mxu0
        %v1325 = vadd.f32 %v1236, %v1324
        %v1326 = vpop.f32.mrf.mxu0
        %v1327 = vadd.f32 %v1238, %v1326
        %1328 = vmatmul.bf16.gmra.mxu0 %v734
        %v1329 = vpop.f32.mrf.mxu0
        %v1330 = vadd.f32 %v1241, %v1329
        %v1331 = vpop.f32.mrf.mxu0
        %v1332 = vadd.f32 %v1243, %v1331
        %1333 = vmatmul.bf16.gmra.mxu0 %v738
        %v1334 = vpop.f32.mrf.mxu0
        %v1335 = vadd.f32 %v1246, %v1334
        %v1336 = vpop.f32.mrf.mxu0
        %v1337 = vadd.f32 %v1248, %v1336
        %1338 = vmatmul.bf16.gmra.mxu0 %v742
        %v1339 = vpop.f32.mrf.mxu0
        %v1340 = vadd.f32 %v1251, %v1339
        %v1341 = vpop.f32.mrf.mxu0
        %v1342 = vadd.f32 %v1253, %v1341
        %1343 = vmatmul.bf16.gmra.mxu0 %v746
        %v1344 = vpop.f32.mrf.mxu0
        %v1345 = vadd.f32 %v1256, %v1344
        %v1346 = vpop.f32.mrf.mxu0
        %v1347 = vadd.f32 %v1258, %v1346
        %1348 = vmatmul.bf16.gmra.mxu0 %v750
        %v1349 = vpop.f32.mrf.mxu0
        %v1350 = vadd.f32 %v1261, %v1349
        %v1351 = vpop.f32.mrf.mxu0
        %v1352 = vadd.f32 %v1263, %v1351
        %1353 = vmatmul.bf16.gmra.mxu0 %v754
        %v1354 = vpop.f32.mrf.mxu0
        %v1355 = vadd.f32 %v1266, %v1354
        %v1356 = vpop.f32.mrf.mxu0
        %v1357 = vadd.f32 %v1268, %v1356
        %1358 = vmatmul.bf16.gmra.mxu0 %v758
        %v1359 = vpop.f32.mrf.mxu0
        %v1360 = vadd.f32 %v1271, %v1359
        %v1361 = vpop.f32.mrf.mxu0
        %v1362 = vadd.f32 %v1273, %v1361
        %1363 = vmatmul.bf16.gmra.mxu0 %v762
        %v1364 = vpop.f32.mrf.mxu0
        %v1365 = vadd.f32 %v1276, %v1364
        %v1366 = vpop.f32.mrf.mxu0
        %v1367 = vadd.f32 %v1278, %v1366
        %1368 = vmatmul.bf16.gmra.mxu0 %v766
        %v1369 = vpop.f32.mrf.mxu0
        %v1370 = vadd.f32 %v1281, %v1369
        %v1371 = vpop.f32.mrf.mxu0
        %v1372 = vadd.f32 %v1283, %v1371
        %1373 = vmatmul.bf16.gmra.mxu0 %v770
        %v1374 = vpop.f32.mrf.mxu0
        %v1375 = vadd.f32 %v1286, %v1374
        %v1376 = vpop.f32.mrf.mxu0
        %v1377 = vadd.f32 %v1288, %v1376
        %1378 = vmatmul.bf16.gmra.mxu0 %v774
        %v1379 = vpop.f32.mrf.mxu0
        %v1380 = vadd.f32 %v1291, %v1379
        %v1381 = vpop.f32.mrf.mxu0
        %v1382 = vadd.f32 %v1293, %v1381
        %1383 = vmatmul.bf16.gmra.mxu0 %v778
        %v1384 = vpop.f32.mrf.mxu0
        %v1385 = vadd.f32 %v1296, %v1384
        %v1386 = vpop.f32.mrf.mxu0
        %v1387 = vadd.f32 %v1298, %v1386
        %1388 = vmatmul.bf16.gmra.mxu0 %v782
        %v1389 = vpop.f32.mrf.mxu0
        %v1390 = vadd.f32 %v1301, %v1389
        %v1391 = vpop.f32.mrf.mxu0
        %v1392 = vadd.f32 %v1303, %v1391
        %1393 = vmatmul.bf16.gmra.mxu0 %v786
        %v1394 = vpop.f32.mrf.mxu0
        %v1395 = vadd.f32 %v1306, %v1394
        %v1396 = vpop.f32.mrf.mxu0
        %v1397 = vadd.f32 %v1308, %v1396
        %1398 = vdwg.mxu0
        %v1399 = vld [vmem:[%s325] sm:$0xff]
        %v1400 = vld [vmem:[%s325 + $0x8] sm:$0xff]
        %v1401 = vld [vmem:[%s325 + $0x10] sm:$0xff]
        %v1402 = vld [vmem:[%s325 + $0x18] sm:$0xff]
        %v1403 = vld [vmem:[%s325 + $0x20] sm:$0xff]
        %v1404 = vld [vmem:[%s325 + $0x28] sm:$0xff]
        %v1405 = vld [vmem:[%s325 + $0x30] sm:$0xff]
        %v1406 = vld [vmem:[%s325 + $0x38] sm:$0xff]
        %v1407 = vld [vmem:[%s325 + $0x40] sm:$0xff]
        %v1408 = vld [vmem:[%s325 + $0x48] sm:$0xff]
        %v1409 = vld [vmem:[%s325 + $0x50] sm:$0xff]
        %v1410 = vld [vmem:[%s325 + $0x58] sm:$0xff]
        %v1411 = vld [vmem:[%s325 + $0x60] sm:$0xff]
        %v1412 = vld [vmem:[%s325 + $0x68] sm:$0xff]
        %v1413 = vld [vmem:[%s325 + $0x70] sm:$0xff]
        %v1414 = vld [vmem:[%s325 + $0x78] sm:$0xff]
        %v1415 = vld [vmem:[%s325 + $0x80] sm:$0xff]
        %v1416 = vld [vmem:[%s325 + $0x88] sm:$0xff]
        %v1417 = vld [vmem:[%s325 + $0x90] sm:$0xff]
        %v1418 = vld [vmem:[%s325 + $0x98] sm:$0xff]
        %v1419 = vld [vmem:[%s325 + $0xa0] sm:$0xff]
        %v1420 = vld [vmem:[%s325 + $0xa8] sm:$0xff]
        %v1421 = vld [vmem:[%s325 + $0xb0] sm:$0xff]
        %v1422 = vld [vmem:[%s325 + $0xb8] sm:$0xff]
        %v1423 = vld [vmem:[%s325 + $0xc0] sm:$0xff]
        %v1424 = vld [vmem:[%s325 + $0xc8] sm:$0xff]
        %v1425 = vld [vmem:[%s325 + $0xd0] sm:$0xff]
        %v1426 = vld [vmem:[%s325 + $0xd8] sm:$0xff]
        %v1427 = vld [vmem:[%s325 + $0xe0] sm:$0xff]
        %v1428 = vld [vmem:[%s325 + $0xe8] sm:$0xff]
        %v1429 = vld [vmem:[%s325 + $0xf0] sm:$0xff]
        %v1430 = vld [vmem:[%s325 + $0xf8] sm:$0xff]
        %v1431 = vld [vmem:[%s325 + $0x100] sm:$0xff]
        %v1432 = vld [vmem:[%s325 + $0x108] sm:$0xff]
        %v1433 = vld [vmem:[%s325 + $0x110] sm:$0xff]
        %v1434 = vld [vmem:[%s325 + $0x118] sm:$0xff]
        %v1435 = vld [vmem:[%s325 + $0x120] sm:$0xff]
        %v1436 = vld [vmem:[%s325 + $0x128] sm:$0xff]
        %v1437 = vld [vmem:[%s325 + $0x130] sm:$0xff]
        %v1438 = vld [vmem:[%s325 + $0x138] sm:$0xff]
        %v1439 = vld [vmem:[%s325 + $0x140] sm:$0xff]
        %v1440 = vld [vmem:[%s325 + $0x148] sm:$0xff]
        %v1441 = vld [vmem:[%s325 + $0x150] sm:$0xff]
        %v1442 = vld [vmem:[%s325 + $0x158] sm:$0xff]
        %v1443 = vld [vmem:[%s325 + $0x160] sm:$0xff]
        %v1444 = vld [vmem:[%s325 + $0x168] sm:$0xff]
        %v1445 = vld [vmem:[%s325 + $0x170] sm:$0xff]
        %v1446 = vld [vmem:[%s325 + $0x178] sm:$0xff]
        %v1447 = vld [vmem:[%s325 + $0x180] sm:$0xff]
        %v1448 = vld [vmem:[%s325 + $0x188] sm:$0xff]
        %v1449 = vld [vmem:[%s325 + $0x190] sm:$0xff]
        %v1450 = vld [vmem:[%s325 + $0x198] sm:$0xff]
        %v1451 = vld [vmem:[%s325 + $0x1a0] sm:$0xff]
        %v1452 = vld [vmem:[%s325 + $0x1a8] sm:$0xff]
        %v1453 = vld [vmem:[%s325 + $0x1b0] sm:$0xff]
        %v1454 = vld [vmem:[%s325 + $0x1b8] sm:$0xff]
        %v1455 = vld [vmem:[%s325 + $0x1c0] sm:$0xff]
        %v1456 = vld [vmem:[%s325 + $0x1c8] sm:$0xff]
        %v1457 = vld [vmem:[%s325 + $0x1d0] sm:$0xff]
        %v1458 = vld [vmem:[%s325 + $0x1d8] sm:$0xff]
        %v1459 = vld [vmem:[%s325 + $0x1e0] sm:$0xff]
        %v1460 = vld [vmem:[%s325 + $0x1e8] sm:$0xff]
        %v1461 = vld [vmem:[%s325 + $0x1f0] sm:$0xff]
        %v1462 = vld [vmem:[%s325 + $0x1f8] sm:$0xff]
        %v1463 = vld [vmem:[%s325 + $0x200] sm:$0xff]
        %v1464 = vld [vmem:[%s325 + $0x208] sm:$0xff]
        %v1465 = vld [vmem:[%s325 + $0x210] sm:$0xff]
        %v1466 = vld [vmem:[%s325 + $0x218] sm:$0xff]
        %v1467 = vld [vmem:[%s325 + $0x220] sm:$0xff]
        %v1468 = vld [vmem:[%s325 + $0x228] sm:$0xff]
        %v1469 = vld [vmem:[%s325 + $0x230] sm:$0xff]
        %v1470 = vld [vmem:[%s325 + $0x238] sm:$0xff]
        %v1471 = vld [vmem:[%s325 + $0x240] sm:$0xff]
        %v1472 = vld [vmem:[%s325 + $0x248] sm:$0xff]
        %v1473 = vld [vmem:[%s325 + $0x250] sm:$0xff]
        %v1474 = vld [vmem:[%s325 + $0x258] sm:$0xff]
        %v1475 = vld [vmem:[%s325 + $0x260] sm:$0xff]
        %v1476 = vld [vmem:[%s325 + $0x268] sm:$0xff]
        %v1477 = vld [vmem:[%s325 + $0x270] sm:$0xff]
        %v1478 = vld [vmem:[%s325 + $0x278] sm:$0xff]
        %v1479 = vld [vmem:[%s325 + $0x280] sm:$0xff]
        %v1480 = vld [vmem:[%s325 + $0x288] sm:$0xff]
        %v1481 = vld [vmem:[%s325 + $0x290] sm:$0xff]
        %v1482 = vld [vmem:[%s325 + $0x298] sm:$0xff]
        %v1483 = vld [vmem:[%s325 + $0x2a0] sm:$0xff]
        %v1484 = vld [vmem:[%s325 + $0x2a8] sm:$0xff]
        %v1485 = vld [vmem:[%s325 + $0x2b0] sm:$0xff]
        %v1486 = vld [vmem:[%s325 + $0x2b8] sm:$0xff]
        %v1487 = vld [vmem:[%s325 + $0x2c0] sm:$0xff]
        %v1488 = vld [vmem:[%s325 + $0x2c8] sm:$0xff]
        %v1489 = vld [vmem:[%s325 + $0x2d0] sm:$0xff]
        %v1490 = vld [vmem:[%s325 + $0x2d8] sm:$0xff]
        %v1491 = vld [vmem:[%s325 + $0x2e0] sm:$0xff]
        %v1492 = vld [vmem:[%s325 + $0x2e8] sm:$0xff]
        %v1493 = vld [vmem:[%s325 + $0x2f0] sm:$0xff]
        %v1494 = vld [vmem:[%s325 + $0x2f8] sm:$0xff]
        %v1495 = vld [vmem:[%s325 + $0x300] sm:$0xff]
        %v1496 = vld [vmem:[%s325 + $0x308] sm:$0xff]
        %v1497 = vld [vmem:[%s325 + $0x310] sm:$0xff]
        %v1498 = vld [vmem:[%s325 + $0x318] sm:$0xff]
        %v1499 = vld [vmem:[%s325 + $0x320] sm:$0xff]
        %v1500 = vld [vmem:[%s325 + $0x328] sm:$0xff]
        %v1501 = vld [vmem:[%s325 + $0x330] sm:$0xff]
        %v1502 = vld [vmem:[%s325 + $0x338] sm:$0xff]
        %v1503 = vld [vmem:[%s325 + $0x340] sm:$0xff]
        %v1504 = vld [vmem:[%s325 + $0x348] sm:$0xff]
        %v1505 = vld [vmem:[%s325 + $0x350] sm:$0xff]
        %v1506 = vld [vmem:[%s325 + $0x358] sm:$0xff]
        %v1507 = vld [vmem:[%s325 + $0x360] sm:$0xff]
        %v1508 = vld [vmem:[%s325 + $0x368] sm:$0xff]
        %v1509 = vld [vmem:[%s325 + $0x370] sm:$0xff]
        %v1510 = vld [vmem:[%s325 + $0x378] sm:$0xff]
        %v1511 = vld [vmem:[%s325 + $0x380] sm:$0xff]
        %v1512 = vld [vmem:[%s325 + $0x388] sm:$0xff]
        %v1513 = vld [vmem:[%s325 + $0x390] sm:$0xff]
        %v1514 = vld [vmem:[%s325 + $0x398] sm:$0xff]
        %v1515 = vld [vmem:[%s325 + $0x3a0] sm:$0xff]
        %v1516 = vld [vmem:[%s325 + $0x3a8] sm:$0xff]
        %v1517 = vld [vmem:[%s325 + $0x3b0] sm:$0xff]
        %v1518 = vld [vmem:[%s325 + $0x3b8] sm:$0xff]
        %v1519 = vld [vmem:[%s325 + $0x3c0] sm:$0xff]
        %v1520 = vld [vmem:[%s325 + $0x3c8] sm:$0xff]
        %v1521 = vld [vmem:[%s325 + $0x3d0] sm:$0xff]
        %v1522 = vld [vmem:[%s325 + $0x3d8] sm:$0xff]
        %v1523 = vld [vmem:[%s325 + $0x3e0] sm:$0xff]
        %v1524 = vld [vmem:[%s325 + $0x3e8] sm:$0xff]
        %v1525 = vld [vmem:[%s325 + $0x3f0] sm:$0xff]
        %v1526 = vld [vmem:[%s325 + $0x3f8] sm:$0xff]
        %v1527 = vld [vmem:[%s387] sm:$0xf]
        %v1528 = vld [vmem:[%s387 + $0x4] sm:$0xf]
        %v1529 = vld [vmem:[%s387 + $0x8] sm:$0xf]
        %v1530 = vld [vmem:[%s387 + $0xc] sm:$0xf]
        %v1531 = vld [vmem:[%s387 + $0x10] sm:$0xf]
        %v1532 = vld [vmem:[%s387 + $0x14] sm:$0xf]
        %v1533 = vld [vmem:[%s387 + $0x18] sm:$0xf]
        %v1534 = vld [vmem:[%s387 + $0x1c] sm:$0xf]
        %v1535 = vld [vmem:[%s387 + $0x20] sm:$0xf]
        %v1536 = vld [vmem:[%s387 + $0x24] sm:$0xf]
        %v1537 = vld [vmem:[%s387 + $0x28] sm:$0xf]
        %v1538 = vld [vmem:[%s387 + $0x2c] sm:$0xf]
        %v1539 = vld [vmem:[%s387 + $0x30] sm:$0xf]
        %v1540 = vld [vmem:[%s387 + $0x34] sm:$0xf]
        %v1541 = vld [vmem:[%s387 + $0x38] sm:$0xf]
        %v1542 = vld [vmem:[%s387 + $0x3c] sm:$0xf]
        %v1543 = vld [vmem:[%s387 + $0x40] sm:$0xf]
        %v1544 = vld [vmem:[%s387 + $0x44] sm:$0xf]
        %v1545 = vld [vmem:[%s387 + $0x48] sm:$0xf]
        %v1546 = vld [vmem:[%s387 + $0x4c] sm:$0xf]
        %v1547 = vld [vmem:[%s387 + $0x50] sm:$0xf]
        %v1548 = vld [vmem:[%s387 + $0x54] sm:$0xf]
        %v1549 = vld [vmem:[%s387 + $0x58] sm:$0xf]
        %v1550 = vld [vmem:[%s387 + $0x5c] sm:$0xf]
        %v1551 = vld [vmem:[%s387 + $0x60] sm:$0xf]
        %v1552 = vld [vmem:[%s387 + $0x64] sm:$0xf]
        %v1553 = vld [vmem:[%s387 + $0x68] sm:$0xf]
        %v1554 = vld [vmem:[%s387 + $0x6c] sm:$0xf]
        %v1555 = vld [vmem:[%s387 + $0x70] sm:$0xf]
        %v1556 = vld [vmem:[%s387 + $0x74] sm:$0xf]
        %v1557 = vld [vmem:[%s387 + $0x78] sm:$0xf]
        %v1558 = vld [vmem:[%s387 + $0x7c] sm:$0xf]
        %v1559 = vld [vmem:[%s387 + $0x80] sm:$0xf]
        %v1560 = vld [vmem:[%s387 + $0x84] sm:$0xf]
        %v1561 = vld [vmem:[%s387 + $0x88] sm:$0xf]
        %v1562 = vld [vmem:[%s387 + $0x8c] sm:$0xf]
        %v1563 = vld [vmem:[%s387 + $0x90] sm:$0xf]
        %v1564 = vld [vmem:[%s387 + $0x94] sm:$0xf]
        %v1565 = vld [vmem:[%s387 + $0x98] sm:$0xf]
        %v1566 = vld [vmem:[%s387 + $0x9c] sm:$0xf]
        %v1567 = vld [vmem:[%s387 + $0xa0] sm:$0xf]
        %v1568 = vld [vmem:[%s387 + $0xa4] sm:$0xf]
        %v1569 = vld [vmem:[%s387 + $0xa8] sm:$0xf]
        %v1570 = vld [vmem:[%s387 + $0xac] sm:$0xf]
        %v1571 = vld [vmem:[%s387 + $0xb0] sm:$0xf]
        %v1572 = vld [vmem:[%s387 + $0xb4] sm:$0xf]
        %v1573 = vld [vmem:[%s387 + $0xb8] sm:$0xf]
        %v1574 = vld [vmem:[%s387 + $0xbc] sm:$0xf]
        %v1575 = vld [vmem:[%s387 + $0xc0] sm:$0xf]
        %v1576 = vld [vmem:[%s387 + $0xc4] sm:$0xf]
        %v1577 = vld [vmem:[%s387 + $0xc8] sm:$0xf]
        %v1578 = vld [vmem:[%s387 + $0xcc] sm:$0xf]
        %v1579 = vld [vmem:[%s387 + $0xd0] sm:$0xf]
        %v1580 = vld [vmem:[%s387 + $0xd4] sm:$0xf]
        %v1581 = vld [vmem:[%s387 + $0xd8] sm:$0xf]
        %v1582 = vld [vmem:[%s387 + $0xdc] sm:$0xf]
        %v1583 = vld [vmem:[%s387 + $0xe0] sm:$0xf]
        %v1584 = vld [vmem:[%s387 + $0xe4] sm:$0xf]
        %v1585 = vld [vmem:[%s387 + $0xe8] sm:$0xf]
        %v1586 = vld [vmem:[%s387 + $0xec] sm:$0xf]
        %v1587 = vld [vmem:[%s387 + $0xf0] sm:$0xf]
        %v1588 = vld [vmem:[%s387 + $0xf4] sm:$0xf]
        %v1589 = vld [vmem:[%s387 + $0xf8] sm:$0xf]
        %v1590 = vld [vmem:[%s387 + $0xfc] sm:$0xf]
        %v1591 = vld [vmem:[%s387 + $0x100] sm:$0xf]
        %v1592 = vld [vmem:[%s387 + $0x104] sm:$0xf]
        %v1593 = vld [vmem:[%s387 + $0x108] sm:$0xf]
        %v1594 = vld [vmem:[%s387 + $0x10c] sm:$0xf]
        %v1595 = vld [vmem:[%s387 + $0x110] sm:$0xf]
        %v1596 = vld [vmem:[%s387 + $0x114] sm:$0xf]
        %v1597 = vld [vmem:[%s387 + $0x118] sm:$0xf]
        %v1598 = vld [vmem:[%s387 + $0x11c] sm:$0xf]
        %v1599 = vld [vmem:[%s387 + $0x120] sm:$0xf]
        %v1600 = vld [vmem:[%s387 + $0x124] sm:$0xf]
        %v1601 = vld [vmem:[%s387 + $0x128] sm:$0xf]
        %v1602 = vld [vmem:[%s387 + $0x12c] sm:$0xf]
        %v1603 = vld [vmem:[%s387 + $0x130] sm:$0xf]
        %v1604 = vld [vmem:[%s387 + $0x134] sm:$0xf]
        %v1605 = vld [vmem:[%s387 + $0x138] sm:$0xf]
        %v1606 = vld [vmem:[%s387 + $0x13c] sm:$0xf]
        %v1607 = vld [vmem:[%s387 + $0x140] sm:$0xf]
        %v1608 = vld [vmem:[%s387 + $0x144] sm:$0xf]
        %v1609 = vld [vmem:[%s387 + $0x148] sm:$0xf]
        %v1610 = vld [vmem:[%s387 + $0x14c] sm:$0xf]
        %v1611 = vld [vmem:[%s387 + $0x150] sm:$0xf]
        %v1612 = vld [vmem:[%s387 + $0x154] sm:$0xf]
        %v1613 = vld [vmem:[%s387 + $0x158] sm:$0xf]
        %v1614 = vld [vmem:[%s387 + $0x15c] sm:$0xf]
        %v1615 = vld [vmem:[%s387 + $0x160] sm:$0xf]
        %v1616 = vld [vmem:[%s387 + $0x164] sm:$0xf]
        %v1617 = vld [vmem:[%s387 + $0x168] sm:$0xf]
        %v1618 = vld [vmem:[%s387 + $0x16c] sm:$0xf]
        %v1619 = vld [vmem:[%s387 + $0x170] sm:$0xf]
        %v1620 = vld [vmem:[%s387 + $0x174] sm:$0xf]
        %v1621 = vld [vmem:[%s387 + $0x178] sm:$0xf]
        %v1622 = vld [vmem:[%s387 + $0x17c] sm:$0xf]
        %v1623 = vld [vmem:[%s387 + $0x180] sm:$0xf]
        %v1624 = vld [vmem:[%s387 + $0x184] sm:$0xf]
        %v1625 = vld [vmem:[%s387 + $0x188] sm:$0xf]
        %v1626 = vld [vmem:[%s387 + $0x18c] sm:$0xf]
        %v1627 = vld [vmem:[%s387 + $0x190] sm:$0xf]
        %v1628 = vld [vmem:[%s387 + $0x194] sm:$0xf]
        %v1629 = vld [vmem:[%s387 + $0x198] sm:$0xf]
        %v1630 = vld [vmem:[%s387 + $0x19c] sm:$0xf]
        %v1631 = vld [vmem:[%s387 + $0x1a0] sm:$0xf]
        %v1632 = vld [vmem:[%s387 + $0x1a4] sm:$0xf]
        %v1633 = vld [vmem:[%s387 + $0x1a8] sm:$0xf]
        %v1634 = vld [vmem:[%s387 + $0x1ac] sm:$0xf]
        %v1635 = vld [vmem:[%s387 + $0x1b0] sm:$0xf]
        %v1636 = vld [vmem:[%s387 + $0x1b4] sm:$0xf]
        %v1637 = vld [vmem:[%s387 + $0x1b8] sm:$0xf]
        %v1638 = vld [vmem:[%s387 + $0x1bc] sm:$0xf]
        %v1639 = vld [vmem:[%s387 + $0x1c0] sm:$0xf]
        %v1640 = vld [vmem:[%s387 + $0x1c4] sm:$0xf]
        %v1641 = vld [vmem:[%s387 + $0x1c8] sm:$0xf]
        %v1642 = vld [vmem:[%s387 + $0x1cc] sm:$0xf]
        %v1643 = vld [vmem:[%s387 + $0x1d0] sm:$0xf]
        %v1644 = vld [vmem:[%s387 + $0x1d4] sm:$0xf]
        %v1645 = vld [vmem:[%s387 + $0x1d8] sm:$0xf]
        %v1646 = vld [vmem:[%s387 + $0x1dc] sm:$0xf]
        %v1647 = vld [vmem:[%s387 + $0x1e0] sm:$0xf]
        %v1648 = vld [vmem:[%s387 + $0x1e4] sm:$0xf]
        %v1649 = vld [vmem:[%s387 + $0x1e8] sm:$0xf]
        %v1650 = vld [vmem:[%s387 + $0x1ec] sm:$0xf]
        %v1651 = vld [vmem:[%s387 + $0x1f0] sm:$0xf]
        %v1652 = vld [vmem:[%s387 + $0x1f4] sm:$0xf]
        %v1653 = vld [vmem:[%s387 + $0x1f8] sm:$0xf]
        %v1654 = vld [vmem:[%s387 + $0x1fc] sm:$0xf]
        %v1783 = vunpack.c.l.b16 %v1399
        %v1784 = vunpack.c.h.b16 %v1399
        %v1785 = vunpack.c.l.b16 %v1400
        %v1786 = vunpack.c.h.b16 %v1400
        %v1787 = vunpack.c.l.b16 %v1401
        %v1788 = vunpack.c.h.b16 %v1401
        %v1789 = vunpack.c.l.b16 %v1402
        %v1790 = vunpack.c.h.b16 %v1402
        %v1791 = vunpack.c.l.b16 %v1403
        %v1792 = vunpack.c.h.b16 %v1403
        %v1793 = vunpack.c.l.b16 %v1404
        %v1794 = vunpack.c.h.b16 %v1404
        %v1795 = vunpack.c.l.b16 %v1405
        %v1796 = vunpack.c.h.b16 %v1405
        %v1797 = vunpack.c.l.b16 %v1406
        %v1798 = vunpack.c.h.b16 %v1406
        %v1799 = vunpack.c.l.b16 %v1407
        %v1800 = vunpack.c.h.b16 %v1407
        %v1801 = vunpack.c.l.b16 %v1408
        %v1802 = vunpack.c.h.b16 %v1408
        %v1803 = vunpack.c.l.b16 %v1409
        %v1804 = vunpack.c.h.b16 %v1409
        %v1805 = vunpack.c.l.b16 %v1410
        %v1806 = vunpack.c.h.b16 %v1410
        %v1807 = vunpack.c.l.b16 %v1411
        %v1808 = vunpack.c.h.b16 %v1411
        %v1809 = vunpack.c.l.b16 %v1412
        %v1810 = vunpack.c.h.b16 %v1412
        %v1811 = vunpack.c.l.b16 %v1413
        %v1812 = vunpack.c.h.b16 %v1413
        %v1813 = vunpack.c.l.b16 %v1414
        %v1814 = vunpack.c.h.b16 %v1414
        %v1815 = vunpack.c.l.b16 %v1415
        %v1816 = vunpack.c.h.b16 %v1415
        %v1817 = vunpack.c.l.b16 %v1416
        %v1818 = vunpack.c.h.b16 %v1416
        %v1819 = vunpack.c.l.b16 %v1417
        %v1820 = vunpack.c.h.b16 %v1417
        %v1821 = vunpack.c.l.b16 %v1418
        %v1822 = vunpack.c.h.b16 %v1418
        %v1823 = vunpack.c.l.b16 %v1419
        %v1824 = vunpack.c.h.b16 %v1419
        %v1825 = vunpack.c.l.b16 %v1420
        %v1826 = vunpack.c.h.b16 %v1420
        %v1827 = vunpack.c.l.b16 %v1421
        %v1828 = vunpack.c.h.b16 %v1421
        %v1829 = vunpack.c.l.b16 %v1422
        %v1830 = vunpack.c.h.b16 %v1422
        %v1831 = vunpack.c.l.b16 %v1423
        %v1832 = vunpack.c.h.b16 %v1423
        %v1833 = vunpack.c.l.b16 %v1424
        %v1834 = vunpack.c.h.b16 %v1424
        %v1835 = vunpack.c.l.b16 %v1425
        %v1836 = vunpack.c.h.b16 %v1425
        %v1837 = vunpack.c.l.b16 %v1426
        %v1838 = vunpack.c.h.b16 %v1426
        %v1839 = vunpack.c.l.b16 %v1427
        %v1840 = vunpack.c.h.b16 %v1427
        %v1841 = vunpack.c.l.b16 %v1428
        %v1842 = vunpack.c.h.b16 %v1428
        %v1843 = vunpack.c.l.b16 %v1429
        %v1844 = vunpack.c.h.b16 %v1429
        %v1845 = vunpack.c.l.b16 %v1430
        %v1846 = vunpack.c.h.b16 %v1430
        %v1847 = vunpack.c.l.b16 %v1431
        %v1848 = vunpack.c.h.b16 %v1431
        %v1849 = vunpack.c.l.b16 %v1432
        %v1850 = vunpack.c.h.b16 %v1432
        %v1851 = vunpack.c.l.b16 %v1433
        %v1852 = vunpack.c.h.b16 %v1433
        %v1853 = vunpack.c.l.b16 %v1434
        %v1854 = vunpack.c.h.b16 %v1434
        %v1855 = vunpack.c.l.b16 %v1435
        %v1856 = vunpack.c.h.b16 %v1435
        %v1857 = vunpack.c.l.b16 %v1436
        %v1858 = vunpack.c.h.b16 %v1436
        %v1859 = vunpack.c.l.b16 %v1437
        %v1860 = vunpack.c.h.b16 %v1437
        %v1861 = vunpack.c.l.b16 %v1438
        %v1862 = vunpack.c.h.b16 %v1438
        %v1863 = vunpack.c.l.b16 %v1439
        %v1864 = vunpack.c.h.b16 %v1439
        %v1865 = vunpack.c.l.b16 %v1440
        %v1866 = vunpack.c.h.b16 %v1440
        %v1867 = vunpack.c.l.b16 %v1441
        %v1868 = vunpack.c.h.b16 %v1441
        %v1869 = vunpack.c.l.b16 %v1442
        %v1870 = vunpack.c.h.b16 %v1442
        %v1871 = vunpack.c.l.b16 %v1443
        %v1872 = vunpack.c.h.b16 %v1443
        %v1873 = vunpack.c.l.b16 %v1444
        %v1874 = vunpack.c.h.b16 %v1444
        %v1875 = vunpack.c.l.b16 %v1445
        %v1876 = vunpack.c.h.b16 %v1445
        %v1877 = vunpack.c.l.b16 %v1446
        %v1878 = vunpack.c.h.b16 %v1446
        %v1879 = vunpack.c.l.b16 %v1447
        %v1880 = vunpack.c.h.b16 %v1447
        %v1881 = vunpack.c.l.b16 %v1448
        %v1882 = vunpack.c.h.b16 %v1448
        %v1883 = vunpack.c.l.b16 %v1449
        %v1884 = vunpack.c.h.b16 %v1449
        %v1885 = vunpack.c.l.b16 %v1450
        %v1886 = vunpack.c.h.b16 %v1450
        %v1887 = vunpack.c.l.b16 %v1451
        %v1888 = vunpack.c.h.b16 %v1451
        %v1889 = vunpack.c.l.b16 %v1452
        %v1890 = vunpack.c.h.b16 %v1452
        %v1891 = vunpack.c.l.b16 %v1453
        %v1892 = vunpack.c.h.b16 %v1453
        %v1893 = vunpack.c.l.b16 %v1454
        %v1894 = vunpack.c.h.b16 %v1454
        %v1895 = vunpack.c.l.b16 %v1455
        %v1896 = vunpack.c.h.b16 %v1455
        %v1897 = vunpack.c.l.b16 %v1456
        %v1898 = vunpack.c.h.b16 %v1456
        %v1899 = vunpack.c.l.b16 %v1457
        %v1900 = vunpack.c.h.b16 %v1457
        %v1901 = vunpack.c.l.b16 %v1458
        %v1902 = vunpack.c.h.b16 %v1458
        %v1903 = vunpack.c.l.b16 %v1459
        %v1904 = vunpack.c.h.b16 %v1459
        %v1905 = vunpack.c.l.b16 %v1460
        %v1906 = vunpack.c.h.b16 %v1460
        %v1907 = vunpack.c.l.b16 %v1461
        %v1908 = vunpack.c.h.b16 %v1461
        %v1909 = vunpack.c.l.b16 %v1462
        %v1910 = vunpack.c.h.b16 %v1462
        %v1911 = vunpack.c.l.b16 %v1463
        %v1912 = vunpack.c.h.b16 %v1463
        %v1913 = vunpack.c.l.b16 %v1464
        %v1914 = vunpack.c.h.b16 %v1464
        %v1915 = vunpack.c.l.b16 %v1465
        %v1916 = vunpack.c.h.b16 %v1465
        %v1917 = vunpack.c.l.b16 %v1466
        %v1918 = vunpack.c.h.b16 %v1466
        %v1919 = vunpack.c.l.b16 %v1467
        %v1920 = vunpack.c.h.b16 %v1467
        %v1921 = vunpack.c.l.b16 %v1468
        %v1922 = vunpack.c.h.b16 %v1468
        %v1923 = vunpack.c.l.b16 %v1469
        %v1924 = vunpack.c.h.b16 %v1469
        %v1925 = vunpack.c.l.b16 %v1470
        %v1926 = vunpack.c.h.b16 %v1470
        %v1927 = vunpack.c.l.b16 %v1471
        %v1928 = vunpack.c.h.b16 %v1471
        %v1929 = vunpack.c.l.b16 %v1472
        %v1930 = vunpack.c.h.b16 %v1472
        %v1931 = vunpack.c.l.b16 %v1473
        %v1932 = vunpack.c.h.b16 %v1473
        %v1933 = vunpack.c.l.b16 %v1474
        %v1934 = vunpack.c.h.b16 %v1474
        %v1935 = vunpack.c.l.b16 %v1475
        %v1936 = vunpack.c.h.b16 %v1475
        %v1937 = vunpack.c.l.b16 %v1476
        %v1938 = vunpack.c.h.b16 %v1476
        %v1939 = vunpack.c.l.b16 %v1477
        %v1940 = vunpack.c.h.b16 %v1477
        %v1941 = vunpack.c.l.b16 %v1478
        %v1942 = vunpack.c.h.b16 %v1478
        %v1943 = vunpack.c.l.b16 %v1479
        %v1944 = vunpack.c.h.b16 %v1479
        %v1945 = vunpack.c.l.b16 %v1480
        %v1946 = vunpack.c.h.b16 %v1480
        %v1947 = vunpack.c.l.b16 %v1481
        %v1948 = vunpack.c.h.b16 %v1481
        %v1949 = vunpack.c.l.b16 %v1482
        %v1950 = vunpack.c.h.b16 %v1482
        %v1951 = vunpack.c.l.b16 %v1483
        %v1952 = vunpack.c.h.b16 %v1483
        %v1953 = vunpack.c.l.b16 %v1484
        %v1954 = vunpack.c.h.b16 %v1484
        %v1955 = vunpack.c.l.b16 %v1485
        %v1956 = vunpack.c.h.b16 %v1485
        %v1957 = vunpack.c.l.b16 %v1486
        %v1958 = vunpack.c.h.b16 %v1486
        %v1959 = vunpack.c.l.b16 %v1487
        %v1960 = vunpack.c.h.b16 %v1487
        %v1961 = vunpack.c.l.b16 %v1488
        %v1962 = vunpack.c.h.b16 %v1488
        %v1963 = vunpack.c.l.b16 %v1489
        %v1964 = vunpack.c.h.b16 %v1489
        %v1965 = vunpack.c.l.b16 %v1490
        %v1966 = vunpack.c.h.b16 %v1490
        %v1967 = vunpack.c.l.b16 %v1491
        %v1968 = vunpack.c.h.b16 %v1491
        %v1969 = vunpack.c.l.b16 %v1492
        %v1970 = vunpack.c.h.b16 %v1492
        %v1971 = vunpack.c.l.b16 %v1493
        %v1972 = vunpack.c.h.b16 %v1493
        %v1973 = vunpack.c.l.b16 %v1494
        %v1974 = vunpack.c.h.b16 %v1494
        %v1975 = vunpack.c.l.b16 %v1495
        %v1976 = vunpack.c.h.b16 %v1495
        %v1977 = vunpack.c.l.b16 %v1496
        %v1978 = vunpack.c.h.b16 %v1496
        %v1979 = vunpack.c.l.b16 %v1497
        %v1980 = vunpack.c.h.b16 %v1497
        %v1981 = vunpack.c.l.b16 %v1498
        %v1982 = vunpack.c.h.b16 %v1498
        %v1983 = vunpack.c.l.b16 %v1499
        %v1984 = vunpack.c.h.b16 %v1499
        %v1985 = vunpack.c.l.b16 %v1500
        %v1986 = vunpack.c.h.b16 %v1500
        %v1987 = vunpack.c.l.b16 %v1501
        %v1988 = vunpack.c.h.b16 %v1501
        %v1989 = vunpack.c.l.b16 %v1502
        %v1990 = vunpack.c.h.b16 %v1502
        %v1991 = vunpack.c.l.b16 %v1503
        %v1992 = vunpack.c.h.b16 %v1503
        %v1993 = vunpack.c.l.b16 %v1504
        %v1994 = vunpack.c.h.b16 %v1504
        %v1995 = vunpack.c.l.b16 %v1505
        %v1996 = vunpack.c.h.b16 %v1505
        %v1997 = vunpack.c.l.b16 %v1506
        %v1998 = vunpack.c.h.b16 %v1506
        %v1999 = vunpack.c.l.b16 %v1507
        %v2000 = vunpack.c.h.b16 %v1507
        %v2001 = vunpack.c.l.b16 %v1508
        %v2002 = vunpack.c.h.b16 %v1508
        %v2003 = vunpack.c.l.b16 %v1509
        %v2004 = vunpack.c.h.b16 %v1509
        %v2005 = vunpack.c.l.b16 %v1510
        %v2006 = vunpack.c.h.b16 %v1510
        %v2007 = vunpack.c.l.b16 %v1511
        %v2008 = vunpack.c.h.b16 %v1511
        %v2009 = vunpack.c.l.b16 %v1512
        %v2010 = vunpack.c.h.b16 %v1512
        %v2011 = vunpack.c.l.b16 %v1513
        %v2012 = vunpack.c.h.b16 %v1513
        %v2013 = vunpack.c.l.b16 %v1514
        %v2014 = vunpack.c.h.b16 %v1514
        %v2015 = vunpack.c.l.b16 %v1515
        %v2016 = vunpack.c.h.b16 %v1515
        %v2017 = vunpack.c.l.b16 %v1516
        %v2018 = vunpack.c.h.b16 %v1516
        %v2019 = vunpack.c.l.b16 %v1517
        %v2020 = vunpack.c.h.b16 %v1517
        %v2021 = vunpack.c.l.b16 %v1518
        %v2022 = vunpack.c.h.b16 %v1518
        %v2023 = vunpack.c.l.b16 %v1519
        %v2024 = vunpack.c.h.b16 %v1519
        %v2025 = vunpack.c.l.b16 %v1520
        %v2026 = vunpack.c.h.b16 %v1520
        %v2027 = vunpack.c.l.b16 %v1521
        %v2028 = vunpack.c.h.b16 %v1521
        %v2029 = vunpack.c.l.b16 %v1522
        %v2030 = vunpack.c.h.b16 %v1522
        %v2031 = vunpack.c.l.b16 %v1523
        %v2032 = vunpack.c.h.b16 %v1523
        %v2033 = vunpack.c.l.b16 %v1524
        %v2034 = vunpack.c.h.b16 %v1524
        %v2035 = vunpack.c.l.b16 %v1525
        %v2036 = vunpack.c.h.b16 %v1525
        %v2037 = vunpack.c.l.b16 %v1526
        %v2038 = vunpack.c.h.b16 %v1526
        %v2039 = vpack.c.b16 %v1791, %v1783
        %v2040 = vpack.c.b16 %v1792, %v1784
        %v2041 = vpack.c.b16 %v1793, %v1785
        %v2042 = vpack.c.b16 %v1794, %v1786
        %v2043 = vpack.c.b16 %v1795, %v1787
        %v2044 = vpack.c.b16 %v1796, %v1788
        %v2045 = vpack.c.b16 %v1797, %v1789
        %v2046 = vpack.c.b16 %v1798, %v1790
        %v2047 = vpack.c.b16 %v1807, %v1799
        %v2048 = vpack.c.b16 %v1808, %v1800
        %v2049 = vpack.c.b16 %v1809, %v1801
        %v2050 = vpack.c.b16 %v1810, %v1802
        %v2051 = vpack.c.b16 %v1811, %v1803
        %v2052 = vpack.c.b16 %v1812, %v1804
        %v2053 = vpack.c.b16 %v1813, %v1805
        %v2054 = vpack.c.b16 %v1814, %v1806
        %v2055 = vpack.c.b16 %v1823, %v1815
        %v2056 = vpack.c.b16 %v1824, %v1816
        %v2057 = vpack.c.b16 %v1825, %v1817
        %v2058 = vpack.c.b16 %v1826, %v1818
        %v2059 = vpack.c.b16 %v1827, %v1819
        %v2060 = vpack.c.b16 %v1828, %v1820
        %v2061 = vpack.c.b16 %v1829, %v1821
        %v2062 = vpack.c.b16 %v1830, %v1822
        %v2063 = vpack.c.b16 %v1839, %v1831
        %v2064 = vpack.c.b16 %v1840, %v1832
        %v2065 = vpack.c.b16 %v1841, %v1833
        %v2066 = vpack.c.b16 %v1842, %v1834
        %v2067 = vpack.c.b16 %v1843, %v1835
        %v2068 = vpack.c.b16 %v1844, %v1836
        %v2069 = vpack.c.b16 %v1845, %v1837
        %v2070 = vpack.c.b16 %v1846, %v1838
        %v2071 = vpack.c.b16 %v1855, %v1847
        %v2072 = vpack.c.b16 %v1856, %v1848
        %v2073 = vpack.c.b16 %v1857, %v1849
        %v2074 = vpack.c.b16 %v1858, %v1850
        %v2075 = vpack.c.b16 %v1859, %v1851
        %v2076 = vpack.c.b16 %v1860, %v1852
        %v2077 = vpack.c.b16 %v1861, %v1853
        %v2078 = vpack.c.b16 %v1862, %v1854
        %v2079 = vpack.c.b16 %v1871, %v1863
        %v2080 = vpack.c.b16 %v1872, %v1864
        %v2081 = vpack.c.b16 %v1873, %v1865
        %v2082 = vpack.c.b16 %v1874, %v1866
        %v2083 = vpack.c.b16 %v1875, %v1867
        %v2084 = vpack.c.b16 %v1876, %v1868
        %v2085 = vpack.c.b16 %v1877, %v1869
        %v2086 = vpack.c.b16 %v1878, %v1870
        %v2087 = vpack.c.b16 %v1887, %v1879
        %v2088 = vpack.c.b16 %v1888, %v1880
        %v2089 = vpack.c.b16 %v1889, %v1881
        %v2090 = vpack.c.b16 %v1890, %v1882
        %v2091 = vpack.c.b16 %v1891, %v1883
        %v2092 = vpack.c.b16 %v1892, %v1884
        %v2093 = vpack.c.b16 %v1893, %v1885
        %v2094 = vpack.c.b16 %v1894, %v1886
        %v2095 = vpack.c.b16 %v1903, %v1895
        %v2096 = vpack.c.b16 %v1904, %v1896
        %v2097 = vpack.c.b16 %v1905, %v1897
        %v2098 = vpack.c.b16 %v1906, %v1898
        %v2099 = vpack.c.b16 %v1907, %v1899
        %v2100 = vpack.c.b16 %v1908, %v1900
        %v2101 = vpack.c.b16 %v1909, %v1901
        %v2102 = vpack.c.b16 %v1910, %v1902
        %v2103 = vpack.c.b16 %v1919, %v1911
        %v2104 = vpack.c.b16 %v1920, %v1912
        %v2105 = vpack.c.b16 %v1921, %v1913
        %v2106 = vpack.c.b16 %v1922, %v1914
        %v2107 = vpack.c.b16 %v1923, %v1915
        %v2108 = vpack.c.b16 %v1924, %v1916
        %v2109 = vpack.c.b16 %v1925, %v1917
        %v2110 = vpack.c.b16 %v1926, %v1918
        %v2111 = vpack.c.b16 %v1935, %v1927
        %v2112 = vpack.c.b16 %v1936, %v1928
        %v2113 = vpack.c.b16 %v1937, %v1929
        %v2114 = vpack.c.b16 %v1938, %v1930
        %v2115 = vpack.c.b16 %v1939, %v1931
        %v2116 = vpack.c.b16 %v1940, %v1932
        %v2117 = vpack.c.b16 %v1941, %v1933
        %v2118 = vpack.c.b16 %v1942, %v1934
        %v2119 = vpack.c.b16 %v1951, %v1943
        %v2120 = vpack.c.b16 %v1952, %v1944
        %v2121 = vpack.c.b16 %v1953, %v1945
        %v2122 = vpack.c.b16 %v1954, %v1946
        %v2123 = vpack.c.b16 %v1955, %v1947
        %v2124 = vpack.c.b16 %v1956, %v1948
        %v2125 = vpack.c.b16 %v1957, %v1949
        %v2126 = vpack.c.b16 %v1958, %v1950
        %v2127 = vpack.c.b16 %v1967, %v1959
        %v2128 = vpack.c.b16 %v1968, %v1960
        %v2129 = vpack.c.b16 %v1969, %v1961
        %v2130 = vpack.c.b16 %v1970, %v1962
        %v2131 = vpack.c.b16 %v1971, %v1963
        %v2132 = vpack.c.b16 %v1972, %v1964
        %v2133 = vpack.c.b16 %v1973, %v1965
        %v2134 = vpack.c.b16 %v1974, %v1966
        %v2135 = vpack.c.b16 %v1983, %v1975
        %v2136 = vpack.c.b16 %v1984, %v1976
        %v2137 = vpack.c.b16 %v1985, %v1977
        %v2138 = vpack.c.b16 %v1986, %v1978
        %v2139 = vpack.c.b16 %v1987, %v1979
        %v2140 = vpack.c.b16 %v1988, %v1980
        %v2141 = vpack.c.b16 %v1989, %v1981
        %v2142 = vpack.c.b16 %v1990, %v1982
        %v2143 = vpack.c.b16 %v1999, %v1991
        %v2144 = vpack.c.b16 %v2000, %v1992
        %v2145 = vpack.c.b16 %v2001, %v1993
        %v2146 = vpack.c.b16 %v2002, %v1994
        %v2147 = vpack.c.b16 %v2003, %v1995
        %v2148 = vpack.c.b16 %v2004, %v1996
        %v2149 = vpack.c.b16 %v2005, %v1997
        %v2150 = vpack.c.b16 %v2006, %v1998
        %v2151 = vpack.c.b16 %v2015, %v2007
        %v2152 = vpack.c.b16 %v2016, %v2008
        %v2153 = vpack.c.b16 %v2017, %v2009
        %v2154 = vpack.c.b16 %v2018, %v2010
        %v2155 = vpack.c.b16 %v2019, %v2011
        %v2156 = vpack.c.b16 %v2020, %v2012
        %v2157 = vpack.c.b16 %v2021, %v2013
        %v2158 = vpack.c.b16 %v2022, %v2014
        %v2159 = vpack.c.b16 %v2031, %v2023
        %v2160 = vpack.c.b16 %v2032, %v2024
        %v2161 = vpack.c.b16 %v2033, %v2025
        %v2162 = vpack.c.b16 %v2034, %v2026
        %v2163 = vpack.c.b16 %v2035, %v2027
        %v2164 = vpack.c.b16 %v2036, %v2028
        %v2165 = vpack.c.b16 %v2037, %v2029
        %v2166 = vpack.c.b16 %v2038, %v2030
        %v2423 = vunpack.c.l.b16 %v1527
        %v2424 = vunpack.c.l.b16 %v1528
        %v2425 = vunpack.c.l.b16 %v1529
        %v2426 = vunpack.c.l.b16 %v1530
        %v2427 = vunpack.c.l.b16 %v1531
        %v2428 = vunpack.c.l.b16 %v1532
        %v2429 = vunpack.c.l.b16 %v1533
        %v2430 = vunpack.c.l.b16 %v1534
        %v2431 = vunpack.c.l.b16 %v1535
        %v2432 = vunpack.c.l.b16 %v1536
        %v2433 = vunpack.c.l.b16 %v1537
        %v2434 = vunpack.c.l.b16 %v1538
        %v2435 = vunpack.c.l.b16 %v1539
        %v2436 = vunpack.c.l.b16 %v1540
        %v2437 = vunpack.c.l.b16 %v1541
        %v2438 = vunpack.c.l.b16 %v1542
        %v2439 = vunpack.c.l.b16 %v1543
        %v2440 = vunpack.c.l.b16 %v1544
        %v2441 = vunpack.c.l.b16 %v1545
        %v2442 = vunpack.c.l.b16 %v1546
        %v2443 = vunpack.c.l.b16 %v1547
        %v2444 = vunpack.c.l.b16 %v1548
        %v2445 = vunpack.c.l.b16 %v1549
        %v2446 = vunpack.c.l.b16 %v1550
        %v2447 = vunpack.c.l.b16 %v1551
        %v2448 = vunpack.c.l.b16 %v1552
        %v2449 = vunpack.c.l.b16 %v1553
        %v2450 = vunpack.c.l.b16 %v1554
        %v2451 = vunpack.c.l.b16 %v1555
        %v2452 = vunpack.c.l.b16 %v1556
        %v2453 = vunpack.c.l.b16 %v1557
        %v2454 = vunpack.c.l.b16 %v1558
        %v2455 = vunpack.c.l.b16 %v1559
        %v2456 = vunpack.c.l.b16 %v1560
        %v2457 = vunpack.c.l.b16 %v1561
        %v2458 = vunpack.c.l.b16 %v1562
        %v2459 = vunpack.c.l.b16 %v1563
        %v2460 = vunpack.c.l.b16 %v1564
        %v2461 = vunpack.c.l.b16 %v1565
        %v2462 = vunpack.c.l.b16 %v1566
        %v2463 = vunpack.c.l.b16 %v1567
        %v2464 = vunpack.c.l.b16 %v1568
        %v2465 = vunpack.c.l.b16 %v1569
        %v2466 = vunpack.c.l.b16 %v1570
        %v2467 = vunpack.c.l.b16 %v1571
        %v2468 = vunpack.c.l.b16 %v1572
        %v2469 = vunpack.c.l.b16 %v1573
        %v2470 = vunpack.c.l.b16 %v1574
        %v2471 = vunpack.c.l.b16 %v1575
        %v2472 = vunpack.c.l.b16 %v1576
        %v2473 = vunpack.c.l.b16 %v1577
        %v2474 = vunpack.c.l.b16 %v1578
        %v2475 = vunpack.c.l.b16 %v1579
        %v2476 = vunpack.c.l.b16 %v1580
        %v2477 = vunpack.c.l.b16 %v1581
        %v2478 = vunpack.c.l.b16 %v1582
        %v2479 = vunpack.c.l.b16 %v1583
        %v2480 = vunpack.c.l.b16 %v1584
        %v2481 = vunpack.c.l.b16 %v1585
        %v2482 = vunpack.c.l.b16 %v1586
        %v2483 = vunpack.c.l.b16 %v1587
        %v2484 = vunpack.c.l.b16 %v1588
        %v2485 = vunpack.c.l.b16 %v1589
        %v2486 = vunpack.c.l.b16 %v1590
        %v2487 = vunpack.c.l.b16 %v1591
        %v2488 = vunpack.c.l.b16 %v1592
        %v2489 = vunpack.c.l.b16 %v1593
        %v2490 = vunpack.c.l.b16 %v1594
        %v2491 = vunpack.c.l.b16 %v1595
        %v2492 = vunpack.c.l.b16 %v1596
        %v2493 = vunpack.c.l.b16 %v1597
        %v2494 = vunpack.c.l.b16 %v1598
        %v2495 = vunpack.c.l.b16 %v1599
        %v2496 = vunpack.c.l.b16 %v1600
        %v2497 = vunpack.c.l.b16 %v1601
        %v2498 = vunpack.c.l.b16 %v1602
        %v2499 = vunpack.c.l.b16 %v1603
        %v2500 = vunpack.c.l.b16 %v1604
        %v2501 = vunpack.c.l.b16 %v1605
        %v2502 = vunpack.c.l.b16 %v1606
        %v2503 = vunpack.c.l.b16 %v1607
        %v2504 = vunpack.c.l.b16 %v1608
        %v2505 = vunpack.c.l.b16 %v1609
        %v2506 = vunpack.c.l.b16 %v1610
        %v2507 = vunpack.c.l.b16 %v1611
        %v2508 = vunpack.c.l.b16 %v1612
        %v2509 = vunpack.c.l.b16 %v1613
        %v2510 = vunpack.c.l.b16 %v1614
        %v2511 = vunpack.c.l.b16 %v1615
        %v2512 = vunpack.c.l.b16 %v1616
        %v2513 = vunpack.c.l.b16 %v1617
        %v2514 = vunpack.c.l.b16 %v1618
        %v2515 = vunpack.c.l.b16 %v1619
        %v2516 = vunpack.c.l.b16 %v1620
        %v2517 = vunpack.c.l.b16 %v1621
        %v2518 = vunpack.c.l.b16 %v1622
        %v2519 = vunpack.c.l.b16 %v1623
        %v2520 = vunpack.c.l.b16 %v1624
        %v2521 = vunpack.c.l.b16 %v1625
        %v2522 = vunpack.c.l.b16 %v1626
        %v2523 = vunpack.c.l.b16 %v1627
        %v2524 = vunpack.c.l.b16 %v1628
        %v2525 = vunpack.c.l.b16 %v1629
        %v2526 = vunpack.c.l.b16 %v1630
        %v2527 = vunpack.c.l.b16 %v1631
        %v2528 = vunpack.c.l.b16 %v1632
        %v2529 = vunpack.c.l.b16 %v1633
        %v2530 = vunpack.c.l.b16 %v1634
        %v2531 = vunpack.c.l.b16 %v1635
        %v2532 = vunpack.c.l.b16 %v1636
        %v2533 = vunpack.c.l.b16 %v1637
        %v2534 = vunpack.c.l.b16 %v1638
        %v2535 = vunpack.c.l.b16 %v1639
        %v2536 = vunpack.c.l.b16 %v1640
        %v2537 = vunpack.c.l.b16 %v1641
        %v2538 = vunpack.c.l.b16 %v1642
        %v2539 = vunpack.c.l.b16 %v1643
        %v2540 = vunpack.c.l.b16 %v1644
        %v2541 = vunpack.c.l.b16 %v1645
        %v2542 = vunpack.c.l.b16 %v1646
        %v2543 = vunpack.c.l.b16 %v1647
        %v2544 = vunpack.c.l.b16 %v1648
        %v2545 = vunpack.c.l.b16 %v1649
        %v2546 = vunpack.c.l.b16 %v1650
        %v2547 = vunpack.c.l.b16 %v1651
        %v2548 = vunpack.c.l.b16 %v1652
        %v2549 = vunpack.c.l.b16 %v1653
        %v2550 = vunpack.c.l.b16 %v1654
        %v2551 = vpack.c.b16 %v2424, %v2423
        %v2552 = vpack.c.b16 %v2426, %v2425
        %v2553 = vpack.c.b16 %v2428, %v2427
        %v2554 = vpack.c.b16 %v2430, %v2429
        %v2555 = vpack.c.b16 %v2432, %v2431
        %v2556 = vpack.c.b16 %v2434, %v2433
        %v2557 = vpack.c.b16 %v2436, %v2435
        %v2558 = vpack.c.b16 %v2438, %v2437
        %v2559 = vpack.c.b16 %v2440, %v2439
        %v2560 = vpack.c.b16 %v2442, %v2441
        %v2561 = vpack.c.b16 %v2444, %v2443
        %v2562 = vpack.c.b16 %v2446, %v2445
        %v2563 = vpack.c.b16 %v2448, %v2447
        %v2564 = vpack.c.b16 %v2450, %v2449
        %v2565 = vpack.c.b16 %v2452, %v2451
        %v2566 = vpack.c.b16 %v2454, %v2453
        %v2567 = vpack.c.b16 %v2456, %v2455
        %v2568 = vpack.c.b16 %v2458, %v2457
        %v2569 = vpack.c.b16 %v2460, %v2459
        %v2570 = vpack.c.b16 %v2462, %v2461
        %v2571 = vpack.c.b16 %v2464, %v2463
        %v2572 = vpack.c.b16 %v2466, %v2465
        %v2573 = vpack.c.b16 %v2468, %v2467
        %v2574 = vpack.c.b16 %v2470, %v2469
        %v2575 = vpack.c.b16 %v2472, %v2471
        %v2576 = vpack.c.b16 %v2474, %v2473
        %v2577 = vpack.c.b16 %v2476, %v2475
        %v2578 = vpack.c.b16 %v2478, %v2477
        %v2579 = vpack.c.b16 %v2480, %v2479
        %v2580 = vpack.c.b16 %v2482, %v2481
        %v2581 = vpack.c.b16 %v2484, %v2483
        %v2582 = vpack.c.b16 %v2486, %v2485
        %v2583 = vpack.c.b16 %v2488, %v2487
        %v2584 = vpack.c.b16 %v2490, %v2489
        %v2585 = vpack.c.b16 %v2492, %v2491
        %v2586 = vpack.c.b16 %v2494, %v2493
        %v2587 = vpack.c.b16 %v2496, %v2495
        %v2588 = vpack.c.b16 %v2498, %v2497
        %v2589 = vpack.c.b16 %v2500, %v2499
        %v2590 = vpack.c.b16 %v2502, %v2501
        %v2591 = vpack.c.b16 %v2504, %v2503
        %v2592 = vpack.c.b16 %v2506, %v2505
        %v2593 = vpack.c.b16 %v2508, %v2507
        %v2594 = vpack.c.b16 %v2510, %v2509
        %v2595 = vpack.c.b16 %v2512, %v2511
        %v2596 = vpack.c.b16 %v2514, %v2513
        %v2597 = vpack.c.b16 %v2516, %v2515
        %v2598 = vpack.c.b16 %v2518, %v2517
        %v2599 = vpack.c.b16 %v2520, %v2519
        %v2600 = vpack.c.b16 %v2522, %v2521
        %v2601 = vpack.c.b16 %v2524, %v2523
        %v2602 = vpack.c.b16 %v2526, %v2525
        %v2603 = vpack.c.b16 %v2528, %v2527
        %v2604 = vpack.c.b16 %v2530, %v2529
        %v2605 = vpack.c.b16 %v2532, %v2531
        %v2606 = vpack.c.b16 %v2534, %v2533
        %v2607 = vpack.c.b16 %v2536, %v2535
        %v2608 = vpack.c.b16 %v2538, %v2537
        %v2609 = vpack.c.b16 %v2540, %v2539
        %v2610 = vpack.c.b16 %v2542, %v2541
        %v2611 = vpack.c.b16 %v2544, %v2543
        %v2612 = vpack.c.b16 %v2546, %v2545
        %v2613 = vpack.c.b16 %v2548, %v2547
        %v2614 = vpack.c.b16 %v2550, %v2549
        %2679 = vmatpush.bf16.msra.mxu0 %v2558
        %2680 = vmatpush.bf16.msra.mxu0 %v2557
        %2681 = vmatpush.bf16.msra.mxu0 %v2556
        %2682 = vmatpush.bf16.msra.mxu0 %v2555
        %2683 = vmatpush.bf16.msra.mxu0 %v2554
        %2684 = vmatpush.bf16.msra.mxu0 %v2553
        %2685 = vmatpush.bf16.msra.mxu0 %v2552
        %2686 = vmatpush.bf16.msra.mxu0 %v2551
        %2687 = vmatmul.bf16.gmra.mxu0 %v2039
        %v2688 = vpop.f32.mrf.mxu0
        %v2689 = vadd.f32 0.0, %v2688
        %v2690 = vpop.f32.mrf.mxu0
        %v2691 = vadd.f32 0.0, %v2690
        %2692 = vmatmul.bf16.gmra.mxu0 %v2047
        %v2693 = vpop.f32.mrf.mxu0
        %v2694 = vadd.f32 0.0, %v2693
        %v2695 = vpop.f32.mrf.mxu0
        %v2696 = vadd.f32 0.0, %v2695
        %2697 = vmatmul.bf16.gmra.mxu0 %v2055
        %v2698 = vpop.f32.mrf.mxu0
        %v2699 = vadd.f32 0.0, %v2698
        %v2700 = vpop.f32.mrf.mxu0
        %v2701 = vadd.f32 0.0, %v2700
        %2702 = vmatmul.bf16.gmra.mxu0 %v2063
        %v2703 = vpop.f32.mrf.mxu0
        %v2704 = vadd.f32 0.0, %v2703
        %v2705 = vpop.f32.mrf.mxu0
        %v2706 = vadd.f32 0.0, %v2705
        %2707 = vmatmul.bf16.gmra.mxu0 %v2071
        %v2708 = vpop.f32.mrf.mxu0
        %v2709 = vadd.f32 0.0, %v2708
        %v2710 = vpop.f32.mrf.mxu0
        %v2711 = vadd.f32 0.0, %v2710
        %2712 = vmatmul.bf16.gmra.mxu0 %v2079
        %v2713 = vpop.f32.mrf.mxu0
        %v2714 = vadd.f32 0.0, %v2713
        %v2715 = vpop.f32.mrf.mxu0
        %v2716 = vadd.f32 0.0, %v2715
        %2717 = vmatmul.bf16.gmra.mxu0 %v2087
        %v2718 = vpop.f32.mrf.mxu0
        %v2719 = vadd.f32 0.0, %v2718
        %v2720 = vpop.f32.mrf.mxu0
        %v2721 = vadd.f32 0.0, %v2720
        %2722 = vmatmul.bf16.gmra.mxu0 %v2095
        %v2723 = vpop.f32.mrf.mxu0
        %v2724 = vadd.f32 0.0, %v2723
        %v2725 = vpop.f32.mrf.mxu0
        %v2726 = vadd.f32 0.0, %v2725
        %2727 = vmatmul.bf16.gmra.mxu0 %v2103
        %v2728 = vpop.f32.mrf.mxu0
        %v2729 = vadd.f32 0.0, %v2728
        %v2730 = vpop.f32.mrf.mxu0
        %v2731 = vadd.f32 0.0, %v2730
        %2732 = vmatmul.bf16.gmra.mxu0 %v2111
        %v2733 = vpop.f32.mrf.mxu0
        %v2734 = vadd.f32 0.0, %v2733
        %v2735 = vpop.f32.mrf.mxu0
        %v2736 = vadd.f32 0.0, %v2735
        %2737 = vmatmul.bf16.gmra.mxu0 %v2119
        %v2738 = vpop.f32.mrf.mxu0
        %v2739 = vadd.f32 0.0, %v2738
        %v2740 = vpop.f32.mrf.mxu0
        %v2741 = vadd.f32 0.0, %v2740
        %2742 = vmatmul.bf16.gmra.mxu0 %v2127
        %v2743 = vpop.f32.mrf.mxu0
        %v2744 = vadd.f32 0.0, %v2743
        %v2745 = vpop.f32.mrf.mxu0
        %v2746 = vadd.f32 0.0, %v2745
        %2747 = vmatmul.bf16.gmra.mxu0 %v2135
        %v2748 = vpop.f32.mrf.mxu0
        %v2749 = vadd.f32 0.0, %v2748
        %v2750 = vpop.f32.mrf.mxu0
        %v2751 = vadd.f32 0.0, %v2750
        %2752 = vmatmul.bf16.gmra.mxu0 %v2143
        %v2753 = vpop.f32.mrf.mxu0
        %v2754 = vadd.f32 0.0, %v2753
        %v2755 = vpop.f32.mrf.mxu0
        %v2756 = vadd.f32 0.0, %v2755
        %2757 = vmatmul.bf16.gmra.mxu0 %v2151
        %v2758 = vpop.f32.mrf.mxu0
        %v2759 = vadd.f32 0.0, %v2758
        %v2760 = vpop.f32.mrf.mxu0
        %v2761 = vadd.f32 0.0, %v2760
        %2762 = vmatmul.bf16.gmra.mxu0 %v2159
        %v2763 = vpop.f32.mrf.mxu0
        %v2764 = vadd.f32 0.0, %v2763
        %v2765 = vpop.f32.mrf.mxu0
        %v2766 = vadd.f32 0.0, %v2765
        %2767 = vdwg.mxu0
        %2768 = vmatpush.bf16.msra.mxu0 %v2566
        %2769 = vmatpush.bf16.msra.mxu0 %v2565
        %2770 = vmatpush.bf16.msra.mxu0 %v2564
        %2771 = vmatpush.bf16.msra.mxu0 %v2563
        %2772 = vmatpush.bf16.msra.mxu0 %v2562
        %2773 = vmatpush.bf16.msra.mxu0 %v2561
        %2774 = vmatpush.bf16.msra.mxu0 %v2560
        %2775 = vmatpush.bf16.msra.mxu0 %v2559
        %2776 = vmatmul.bf16.gmra.mxu0 %v2040
        %v2777 = vpop.f32.mrf.mxu0
        %v2778 = vadd.f32 %v2689, %v2777
        %v2779 = vpop.f32.mrf.mxu0
        %v2780 = vadd.f32 %v2691, %v2779
        %2781 = vmatmul.bf16.gmra.mxu0 %v2048
        %v2782 = vpop.f32.mrf.mxu0
        %v2783 = vadd.f32 %v2694, %v2782
        %v2784 = vpop.f32.mrf.mxu0
        %v2785 = vadd.f32 %v2696, %v2784
        %2786 = vmatmul.bf16.gmra.mxu0 %v2056
        %v2787 = vpop.f32.mrf.mxu0
        %v2788 = vadd.f32 %v2699, %v2787
        %v2789 = vpop.f32.mrf.mxu0
        %v2790 = vadd.f32 %v2701, %v2789
        %2791 = vmatmul.bf16.gmra.mxu0 %v2064
        %v2792 = vpop.f32.mrf.mxu0
        %v2793 = vadd.f32 %v2704, %v2792
        %v2794 = vpop.f32.mrf.mxu0
        %v2795 = vadd.f32 %v2706, %v2794
        %2796 = vmatmul.bf16.gmra.mxu0 %v2072
        %v2797 = vpop.f32.mrf.mxu0
        %v2798 = vadd.f32 %v2709, %v2797
        %v2799 = vpop.f32.mrf.mxu0
        %v2800 = vadd.f32 %v2711, %v2799
        %2801 = vmatmul.bf16.gmra.mxu0 %v2080
        %v2802 = vpop.f32.mrf.mxu0
        %v2803 = vadd.f32 %v2714, %v2802
        %v2804 = vpop.f32.mrf.mxu0
        %v2805 = vadd.f32 %v2716, %v2804
        %2806 = vmatmul.bf16.gmra.mxu0 %v2088
        %v2807 = vpop.f32.mrf.mxu0
        %v2808 = vadd.f32 %v2719, %v2807
        %v2809 = vpop.f32.mrf.mxu0
        %v2810 = vadd.f32 %v2721, %v2809
        %2811 = vmatmul.bf16.gmra.mxu0 %v2096
        %v2812 = vpop.f32.mrf.mxu0
        %v2813 = vadd.f32 %v2724, %v2812
        %v2814 = vpop.f32.mrf.mxu0
        %v2815 = vadd.f32 %v2726, %v2814
        %2816 = vmatmul.bf16.gmra.mxu0 %v2104
        %v2817 = vpop.f32.mrf.mxu0
        %v2818 = vadd.f32 %v2729, %v2817
        %v2819 = vpop.f32.mrf.mxu0
        %v2820 = vadd.f32 %v2731, %v2819
        %2821 = vmatmul.bf16.gmra.mxu0 %v2112
        %v2822 = vpop.f32.mrf.mxu0
        %v2823 = vadd.f32 %v2734, %v2822
        %v2824 = vpop.f32.mrf.mxu0
        %v2825 = vadd.f32 %v2736, %v2824
        %2826 = vmatmul.bf16.gmra.mxu0 %v2120
        %v2827 = vpop.f32.mrf.mxu0
        %v2828 = vadd.f32 %v2739, %v2827
        %v2829 = vpop.f32.mrf.mxu0
        %v2830 = vadd.f32 %v2741, %v2829
        %2831 = vmatmul.bf16.gmra.mxu0 %v2128
        %v2832 = vpop.f32.mrf.mxu0
        %v2833 = vadd.f32 %v2744, %v2832
        %v2834 = vpop.f32.mrf.mxu0
        %v2835 = vadd.f32 %v2746, %v2834
        %2836 = vmatmul.bf16.gmra.mxu0 %v2136
        %v2837 = vpop.f32.mrf.mxu0
        %v2838 = vadd.f32 %v2749, %v2837
        %v2839 = vpop.f32.mrf.mxu0
        %v2840 = vadd.f32 %v2751, %v2839
        %2841 = vmatmul.bf16.gmra.mxu0 %v2144
        %v2842 = vpop.f32.mrf.mxu0
        %v2843 = vadd.f32 %v2754, %v2842
        %v2844 = vpop.f32.mrf.mxu0
        %v2845 = vadd.f32 %v2756, %v2844
        %2846 = vmatmul.bf16.gmra.mxu0 %v2152
        %v2847 = vpop.f32.mrf.mxu0
        %v2848 = vadd.f32 %v2759, %v2847
        %v2849 = vpop.f32.mrf.mxu0
        %v2850 = vadd.f32 %v2761, %v2849
        %2851 = vmatmul.bf16.gmra.mxu0 %v2160
        %v2852 = vpop.f32.mrf.mxu0
        %v2853 = vadd.f32 %v2764, %v2852
        %v2854 = vpop.f32.mrf.mxu0
        %v2855 = vadd.f32 %v2766, %v2854
        %2856 = vdwg.mxu0
        %2857 = vmatpush.bf16.msra.mxu0 %v2574
        %2858 = vmatpush.bf16.msra.mxu0 %v2573
        %2859 = vmatpush.bf16.msra.mxu0 %v2572
        %2860 = vmatpush.bf16.msra.mxu0 %v2571
        %2861 = vmatpush.bf16.msra.mxu0 %v2570
        %2862 = vmatpush.bf16.msra.mxu0 %v2569
        %2863 = vmatpush.bf16.msra.mxu0 %v2568
        %2864 = vmatpush.bf16.msra.mxu0 %v2567
        %2865 = vmatmul.bf16.gmra.mxu0 %v2041
        %v2866 = vpop.f32.mrf.mxu0
        %v2867 = vadd.f32 %v2778, %v2866
        %v2868 = vpop.f32.mrf.mxu0
        %v2869 = vadd.f32 %v2780, %v2868
        %2870 = vmatmul.bf16.gmra.mxu0 %v2049
        %v2871 = vpop.f32.mrf.mxu0
        %v2872 = vadd.f32 %v2783, %v2871
        %v2873 = vpop.f32.mrf.mxu0
        %v2874 = vadd.f32 %v2785, %v2873
        %2875 = vmatmul.bf16.gmra.mxu0 %v2057
        %v2876 = vpop.f32.mrf.mxu0
        %v2877 = vadd.f32 %v2788, %v2876
        %v2878 = vpop.f32.mrf.mxu0
        %v2879 = vadd.f32 %v2790, %v2878
        %2880 = vmatmul.bf16.gmra.mxu0 %v2065
        %v2881 = vpop.f32.mrf.mxu0
        %v2882 = vadd.f32 %v2793, %v2881
        %v2883 = vpop.f32.mrf.mxu0
        %v2884 = vadd.f32 %v2795, %v2883
        %2885 = vmatmul.bf16.gmra.mxu0 %v2073
        %v2886 = vpop.f32.mrf.mxu0
        %v2887 = vadd.f32 %v2798, %v2886
        %v2888 = vpop.f32.mrf.mxu0
        %v2889 = vadd.f32 %v2800, %v2888
        %2890 = vmatmul.bf16.gmra.mxu0 %v2081
        %v2891 = vpop.f32.mrf.mxu0
        %v2892 = vadd.f32 %v2803, %v2891
        %v2893 = vpop.f32.mrf.mxu0
        %v2894 = vadd.f32 %v2805, %v2893
        %2895 = vmatmul.bf16.gmra.mxu0 %v2089
        %v2896 = vpop.f32.mrf.mxu0
        %v2897 = vadd.f32 %v2808, %v2896
        %v2898 = vpop.f32.mrf.mxu0
        %v2899 = vadd.f32 %v2810, %v2898
        %2900 = vmatmul.bf16.gmra.mxu0 %v2097
        %v2901 = vpop.f32.mrf.mxu0
        %v2902 = vadd.f32 %v2813, %v2901
        %v2903 = vpop.f32.mrf.mxu0
        %v2904 = vadd.f32 %v2815, %v2903
        %2905 = vmatmul.bf16.gmra.mxu0 %v2105
        %v2906 = vpop.f32.mrf.mxu0
        %v2907 = vadd.f32 %v2818, %v2906
        %v2908 = vpop.f32.mrf.mxu0
        %v2909 = vadd.f32 %v2820, %v2908
        %2910 = vmatmul.bf16.gmra.mxu0 %v2113
        %v2911 = vpop.f32.mrf.mxu0
        %v2912 = vadd.f32 %v2823, %v2911
        %v2913 = vpop.f32.mrf.mxu0
        %v2914 = vadd.f32 %v2825, %v2913
        %2915 = vmatmul.bf16.gmra.mxu0 %v2121
        %v2916 = vpop.f32.mrf.mxu0
        %v2917 = vadd.f32 %v2828, %v2916
        %v2918 = vpop.f32.mrf.mxu0
        %v2919 = vadd.f32 %v2830, %v2918
        %2920 = vmatmul.bf16.gmra.mxu0 %v2129
        %v2921 = vpop.f32.mrf.mxu0
        %v2922 = vadd.f32 %v2833, %v2921
        %v2923 = vpop.f32.mrf.mxu0
        %v2924 = vadd.f32 %v2835, %v2923
        %2925 = vmatmul.bf16.gmra.mxu0 %v2137
        %v2926 = vpop.f32.mrf.mxu0
        %v2927 = vadd.f32 %v2838, %v2926
        %v2928 = vpop.f32.mrf.mxu0
        %v2929 = vadd.f32 %v2840, %v2928
        %2930 = vmatmul.bf16.gmra.mxu0 %v2145
        %v2931 = vpop.f32.mrf.mxu0
        %v2932 = vadd.f32 %v2843, %v2931
        %v2933 = vpop.f32.mrf.mxu0
        %v2934 = vadd.f32 %v2845, %v2933
        %2935 = vmatmul.bf16.gmra.mxu0 %v2153
        %v2936 = vpop.f32.mrf.mxu0
        %v2937 = vadd.f32 %v2848, %v2936
        %v2938 = vpop.f32.mrf.mxu0
        %v2939 = vadd.f32 %v2850, %v2938
        %2940 = vmatmul.bf16.gmra.mxu0 %v2161
        %v2941 = vpop.f32.mrf.mxu0
        %v2942 = vadd.f32 %v2853, %v2941
        %v2943 = vpop.f32.mrf.mxu0
        %v2944 = vadd.f32 %v2855, %v2943
        %2945 = vdwg.mxu0
        %2946 = vmatpush.bf16.msra.mxu0 %v2582
        %2947 = vmatpush.bf16.msra.mxu0 %v2581
        %2948 = vmatpush.bf16.msra.mxu0 %v2580
        %2949 = vmatpush.bf16.msra.mxu0 %v2579
        %2950 = vmatpush.bf16.msra.mxu0 %v2578
        %2951 = vmatpush.bf16.msra.mxu0 %v2577
        %2952 = vmatpush.bf16.msra.mxu0 %v2576
        %2953 = vmatpush.bf16.msra.mxu0 %v2575
        %2954 = vmatmul.bf16.gmra.mxu0 %v2042
        %v2955 = vpop.f32.mrf.mxu0
        %v2956 = vadd.f32 %v2867, %v2955
        %v2957 = vpop.f32.mrf.mxu0
        %v2958 = vadd.f32 %v2869, %v2957
        %2959 = vmatmul.bf16.gmra.mxu0 %v2050
        %v2960 = vpop.f32.mrf.mxu0
        %v2961 = vadd.f32 %v2872, %v2960
        %v2962 = vpop.f32.mrf.mxu0
        %v2963 = vadd.f32 %v2874, %v2962
        %2964 = vmatmul.bf16.gmra.mxu0 %v2058
        %v2965 = vpop.f32.mrf.mxu0
        %v2966 = vadd.f32 %v2877, %v2965
        %v2967 = vpop.f32.mrf.mxu0
        %v2968 = vadd.f32 %v2879, %v2967
        %2969 = vmatmul.bf16.gmra.mxu0 %v2066
        %v2970 = vpop.f32.mrf.mxu0
        %v2971 = vadd.f32 %v2882, %v2970
        %v2972 = vpop.f32.mrf.mxu0
        %v2973 = vadd.f32 %v2884, %v2972
        %2974 = vmatmul.bf16.gmra.mxu0 %v2074
        %v2975 = vpop.f32.mrf.mxu0
        %v2976 = vadd.f32 %v2887, %v2975
        %v2977 = vpop.f32.mrf.mxu0
        %v2978 = vadd.f32 %v2889, %v2977
        %2979 = vmatmul.bf16.gmra.mxu0 %v2082
        %v2980 = vpop.f32.mrf.mxu0
        %v2981 = vadd.f32 %v2892, %v2980
        %v2982 = vpop.f32.mrf.mxu0
        %v2983 = vadd.f32 %v2894, %v2982
        %2984 = vmatmul.bf16.gmra.mxu0 %v2090
        %v2985 = vpop.f32.mrf.mxu0
        %v2986 = vadd.f32 %v2897, %v2985
        %v2987 = vpop.f32.mrf.mxu0
        %v2988 = vadd.f32 %v2899, %v2987
        %2989 = vmatmul.bf16.gmra.mxu0 %v2098
        %v2990 = vpop.f32.mrf.mxu0
        %v2991 = vadd.f32 %v2902, %v2990
        %v2992 = vpop.f32.mrf.mxu0
        %v2993 = vadd.f32 %v2904, %v2992
        %2994 = vmatmul.bf16.gmra.mxu0 %v2106
        %v2995 = vpop.f32.mrf.mxu0
        %v2996 = vadd.f32 %v2907, %v2995
        %v2997 = vpop.f32.mrf.mxu0
        %v2998 = vadd.f32 %v2909, %v2997
        %2999 = vmatmul.bf16.gmra.mxu0 %v2114
        %v3000 = vpop.f32.mrf.mxu0
        %v3001 = vadd.f32 %v2912, %v3000
        %v3002 = vpop.f32.mrf.mxu0
        %v3003 = vadd.f32 %v2914, %v3002
        %3004 = vmatmul.bf16.gmra.mxu0 %v2122
        %v3005 = vpop.f32.mrf.mxu0
        %v3006 = vadd.f32 %v2917, %v3005
        %v3007 = vpop.f32.mrf.mxu0
        %v3008 = vadd.f32 %v2919, %v3007
        %3009 = vmatmul.bf16.gmra.mxu0 %v2130
        %v3010 = vpop.f32.mrf.mxu0
        %v3011 = vadd.f32 %v2922, %v3010
        %v3012 = vpop.f32.mrf.mxu0
        %v3013 = vadd.f32 %v2924, %v3012
        %3014 = vmatmul.bf16.gmra.mxu0 %v2138
        %v3015 = vpop.f32.mrf.mxu0
        %v3016 = vadd.f32 %v2927, %v3015
        %v3017 = vpop.f32.mrf.mxu0
        %v3018 = vadd.f32 %v2929, %v3017
        %3019 = vmatmul.bf16.gmra.mxu0 %v2146
        %v3020 = vpop.f32.mrf.mxu0
        %v3021 = vadd.f32 %v2932, %v3020
        %v3022 = vpop.f32.mrf.mxu0
        %v3023 = vadd.f32 %v2934, %v3022
        %3024 = vmatmul.bf16.gmra.mxu0 %v2154
        %v3025 = vpop.f32.mrf.mxu0
        %v3026 = vadd.f32 %v2937, %v3025
        %v3027 = vpop.f32.mrf.mxu0
        %v3028 = vadd.f32 %v2939, %v3027
        %3029 = vmatmul.bf16.gmra.mxu0 %v2162
        %v3030 = vpop.f32.mrf.mxu0
        %v3031 = vadd.f32 %v2942, %v3030
        %v3032 = vpop.f32.mrf.mxu0
        %v3033 = vadd.f32 %v2944, %v3032
        %3034 = vdwg.mxu0
        %3035 = vmatpush.bf16.msra.mxu0 %v2590
        %3036 = vmatpush.bf16.msra.mxu0 %v2589
        %3037 = vmatpush.bf16.msra.mxu0 %v2588
        %3038 = vmatpush.bf16.msra.mxu0 %v2587
        %3039 = vmatpush.bf16.msra.mxu0 %v2586
        %3040 = vmatpush.bf16.msra.mxu0 %v2585
        %3041 = vmatpush.bf16.msra.mxu0 %v2584
        %3042 = vmatpush.bf16.msra.mxu0 %v2583
        %3043 = vmatmul.bf16.gmra.mxu0 %v2043
        %v3044 = vpop.f32.mrf.mxu0
        %v3045 = vadd.f32 %v2956, %v3044
        %v3046 = vpop.f32.mrf.mxu0
        %v3047 = vadd.f32 %v2958, %v3046
        %3048 = vmatmul.bf16.gmra.mxu0 %v2051
        %v3049 = vpop.f32.mrf.mxu0
        %v3050 = vadd.f32 %v2961, %v3049
        %v3051 = vpop.f32.mrf.mxu0
        %v3052 = vadd.f32 %v2963, %v3051
        %3053 = vmatmul.bf16.gmra.mxu0 %v2059
        %v3054 = vpop.f32.mrf.mxu0
        %v3055 = vadd.f32 %v2966, %v3054
        %v3056 = vpop.f32.mrf.mxu0
        %v3057 = vadd.f32 %v2968, %v3056
        %3058 = vmatmul.bf16.gmra.mxu0 %v2067
        %v3059 = vpop.f32.mrf.mxu0
        %v3060 = vadd.f32 %v2971, %v3059
        %v3061 = vpop.f32.mrf.mxu0
        %v3062 = vadd.f32 %v2973, %v3061
        %3063 = vmatmul.bf16.gmra.mxu0 %v2075
        %v3064 = vpop.f32.mrf.mxu0
        %v3065 = vadd.f32 %v2976, %v3064
        %v3066 = vpop.f32.mrf.mxu0
        %v3067 = vadd.f32 %v2978, %v3066
        %3068 = vmatmul.bf16.gmra.mxu0 %v2083
        %v3069 = vpop.f32.mrf.mxu0
        %v3070 = vadd.f32 %v2981, %v3069
        %v3071 = vpop.f32.mrf.mxu0
        %v3072 = vadd.f32 %v2983, %v3071
        %3073 = vmatmul.bf16.gmra.mxu0 %v2091
        %v3074 = vpop.f32.mrf.mxu0
        %v3075 = vadd.f32 %v2986, %v3074
        %v3076 = vpop.f32.mrf.mxu0
        %v3077 = vadd.f32 %v2988, %v3076
        %3078 = vmatmul.bf16.gmra.mxu0 %v2099
        %v3079 = vpop.f32.mrf.mxu0
        %v3080 = vadd.f32 %v2991, %v3079
        %v3081 = vpop.f32.mrf.mxu0
        %v3082 = vadd.f32 %v2993, %v3081
        %3083 = vmatmul.bf16.gmra.mxu0 %v2107
        %v3084 = vpop.f32.mrf.mxu0
        %v3085 = vadd.f32 %v2996, %v3084
        %v3086 = vpop.f32.mrf.mxu0
        %v3087 = vadd.f32 %v2998, %v3086
        %3088 = vmatmul.bf16.gmra.mxu0 %v2115
        %v3089 = vpop.f32.mrf.mxu0
        %v3090 = vadd.f32 %v3001, %v3089
        %v3091 = vpop.f32.mrf.mxu0
        %v3092 = vadd.f32 %v3003, %v3091
        %3093 = vmatmul.bf16.gmra.mxu0 %v2123
        %v3094 = vpop.f32.mrf.mxu0
        %v3095 = vadd.f32 %v3006, %v3094
        %v3096 = vpop.f32.mrf.mxu0
        %v3097 = vadd.f32 %v3008, %v3096
        %3098 = vmatmul.bf16.gmra.mxu0 %v2131
        %v3099 = vpop.f32.mrf.mxu0
        %v3100 = vadd.f32 %v3011, %v3099
        %v3101 = vpop.f32.mrf.mxu0
        %v3102 = vadd.f32 %v3013, %v3101
        %3103 = vmatmul.bf16.gmra.mxu0 %v2139
        %v3104 = vpop.f32.mrf.mxu0
        %v3105 = vadd.f32 %v3016, %v3104
        %v3106 = vpop.f32.mrf.mxu0
        %v3107 = vadd.f32 %v3018, %v3106
        %3108 = vmatmul.bf16.gmra.mxu0 %v2147
        %v3109 = vpop.f32.mrf.mxu0
        %v3110 = vadd.f32 %v3021, %v3109
        %v3111 = vpop.f32.mrf.mxu0
        %v3112 = vadd.f32 %v3023, %v3111
        %3113 = vmatmul.bf16.gmra.mxu0 %v2155
        %v3114 = vpop.f32.mrf.mxu0
        %v3115 = vadd.f32 %v3026, %v3114
        %v3116 = vpop.f32.mrf.mxu0
        %v3117 = vadd.f32 %v3028, %v3116
        %3118 = vmatmul.bf16.gmra.mxu0 %v2163
        %v3119 = vpop.f32.mrf.mxu0
        %v3120 = vadd.f32 %v3031, %v3119
        %v3121 = vpop.f32.mrf.mxu0
        %v3122 = vadd.f32 %v3033, %v3121
        %3123 = vdwg.mxu0
        %3124 = vmatpush.bf16.msra.mxu0 %v2598
        %3125 = vmatpush.bf16.msra.mxu0 %v2597
        %3126 = vmatpush.bf16.msra.mxu0 %v2596
        %3127 = vmatpush.bf16.msra.mxu0 %v2595
        %3128 = vmatpush.bf16.msra.mxu0 %v2594
        %3129 = vmatpush.bf16.msra.mxu0 %v2593
        %3130 = vmatpush.bf16.msra.mxu0 %v2592
        %3131 = vmatpush.bf16.msra.mxu0 %v2591
        %3132 = vmatmul.bf16.gmra.mxu0 %v2044
        %v3133 = vpop.f32.mrf.mxu0
        %v3134 = vadd.f32 %v3045, %v3133
        %v3135 = vpop.f32.mrf.mxu0
        %v3136 = vadd.f32 %v3047, %v3135
        %3137 = vmatmul.bf16.gmra.mxu0 %v2052
        %v3138 = vpop.f32.mrf.mxu0
        %v3139 = vadd.f32 %v3050, %v3138
        %v3140 = vpop.f32.mrf.mxu0
        %v3141 = vadd.f32 %v3052, %v3140
        %3142 = vmatmul.bf16.gmra.mxu0 %v2060
        %v3143 = vpop.f32.mrf.mxu0
        %v3144 = vadd.f32 %v3055, %v3143
        %v3145 = vpop.f32.mrf.mxu0
        %v3146 = vadd.f32 %v3057, %v3145
        %3147 = vmatmul.bf16.gmra.mxu0 %v2068
        %v3148 = vpop.f32.mrf.mxu0
        %v3149 = vadd.f32 %v3060, %v3148
        %v3150 = vpop.f32.mrf.mxu0
        %v3151 = vadd.f32 %v3062, %v3150
        %3152 = vmatmul.bf16.gmra.mxu0 %v2076
        %v3153 = vpop.f32.mrf.mxu0
        %v3154 = vadd.f32 %v3065, %v3153
        %v3155 = vpop.f32.mrf.mxu0
        %v3156 = vadd.f32 %v3067, %v3155
        %3157 = vmatmul.bf16.gmra.mxu0 %v2084
        %v3158 = vpop.f32.mrf.mxu0
        %v3159 = vadd.f32 %v3070, %v3158
        %v3160 = vpop.f32.mrf.mxu0
        %v3161 = vadd.f32 %v3072, %v3160
        %3162 = vmatmul.bf16.gmra.mxu0 %v2092
        %v3163 = vpop.f32.mrf.mxu0
        %v3164 = vadd.f32 %v3075, %v3163
        %v3165 = vpop.f32.mrf.mxu0
        %v3166 = vadd.f32 %v3077, %v3165
        %3167 = vmatmul.bf16.gmra.mxu0 %v2100
        %v3168 = vpop.f32.mrf.mxu0
        %v3169 = vadd.f32 %v3080, %v3168
        %v3170 = vpop.f32.mrf.mxu0
        %v3171 = vadd.f32 %v3082, %v3170
        %3172 = vmatmul.bf16.gmra.mxu0 %v2108
        %v3173 = vpop.f32.mrf.mxu0
        %v3174 = vadd.f32 %v3085, %v3173
        %v3175 = vpop.f32.mrf.mxu0
        %v3176 = vadd.f32 %v3087, %v3175
        %3177 = vmatmul.bf16.gmra.mxu0 %v2116
        %v3178 = vpop.f32.mrf.mxu0
        %v3179 = vadd.f32 %v3090, %v3178
        %v3180 = vpop.f32.mrf.mxu0
        %v3181 = vadd.f32 %v3092, %v3180
        %3182 = vmatmul.bf16.gmra.mxu0 %v2124
        %v3183 = vpop.f32.mrf.mxu0
        %v3184 = vadd.f32 %v3095, %v3183
        %v3185 = vpop.f32.mrf.mxu0
        %v3186 = vadd.f32 %v3097, %v3185
        %3187 = vmatmul.bf16.gmra.mxu0 %v2132
        %v3188 = vpop.f32.mrf.mxu0
        %v3189 = vadd.f32 %v3100, %v3188
        %v3190 = vpop.f32.mrf.mxu0
        %v3191 = vadd.f32 %v3102, %v3190
        %3192 = vmatmul.bf16.gmra.mxu0 %v2140
        %v3193 = vpop.f32.mrf.mxu0
        %v3194 = vadd.f32 %v3105, %v3193
        %v3195 = vpop.f32.mrf.mxu0
        %v3196 = vadd.f32 %v3107, %v3195
        %3197 = vmatmul.bf16.gmra.mxu0 %v2148
        %v3198 = vpop.f32.mrf.mxu0
        %v3199 = vadd.f32 %v3110, %v3198
        %v3200 = vpop.f32.mrf.mxu0
        %v3201 = vadd.f32 %v3112, %v3200
        %3202 = vmatmul.bf16.gmra.mxu0 %v2156
        %v3203 = vpop.f32.mrf.mxu0
        %v3204 = vadd.f32 %v3115, %v3203
        %v3205 = vpop.f32.mrf.mxu0
        %v3206 = vadd.f32 %v3117, %v3205
        %3207 = vmatmul.bf16.gmra.mxu0 %v2164
        %v3208 = vpop.f32.mrf.mxu0
        %v3209 = vadd.f32 %v3120, %v3208
        %v3210 = vpop.f32.mrf.mxu0
        %v3211 = vadd.f32 %v3122, %v3210
        %3212 = vdwg.mxu0
        %3213 = vmatpush.bf16.msra.mxu0 %v2606
        %3214 = vmatpush.bf16.msra.mxu0 %v2605
        %3215 = vmatpush.bf16.msra.mxu0 %v2604
        %3216 = vmatpush.bf16.msra.mxu0 %v2603
        %3217 = vmatpush.bf16.msra.mxu0 %v2602
        %3218 = vmatpush.bf16.msra.mxu0 %v2601
        %3219 = vmatpush.bf16.msra.mxu0 %v2600
        %3220 = vmatpush.bf16.msra.mxu0 %v2599
        %3221 = vmatmul.bf16.gmra.mxu0 %v2045
        %v3222 = vpop.f32.mrf.mxu0
        %v3223 = vadd.f32 %v3134, %v3222
        %v3224 = vpop.f32.mrf.mxu0
        %v3225 = vadd.f32 %v3136, %v3224
        %3226 = vmatmul.bf16.gmra.mxu0 %v2053
        %v3227 = vpop.f32.mrf.mxu0
        %v3228 = vadd.f32 %v3139, %v3227
        %v3229 = vpop.f32.mrf.mxu0
        %v3230 = vadd.f32 %v3141, %v3229
        %3231 = vmatmul.bf16.gmra.mxu0 %v2061
        %v3232 = vpop.f32.mrf.mxu0
        %v3233 = vadd.f32 %v3144, %v3232
        %v3234 = vpop.f32.mrf.mxu0
        %v3235 = vadd.f32 %v3146, %v3234
        %3236 = vmatmul.bf16.gmra.mxu0 %v2069
        %v3237 = vpop.f32.mrf.mxu0
        %v3238 = vadd.f32 %v3149, %v3237
        %v3239 = vpop.f32.mrf.mxu0
        %v3240 = vadd.f32 %v3151, %v3239
        %3241 = vmatmul.bf16.gmra.mxu0 %v2077
        %v3242 = vpop.f32.mrf.mxu0
        %v3243 = vadd.f32 %v3154, %v3242
        %v3244 = vpop.f32.mrf.mxu0
        %v3245 = vadd.f32 %v3156, %v3244
        %3246 = vmatmul.bf16.gmra.mxu0 %v2085
        %v3247 = vpop.f32.mrf.mxu0
        %v3248 = vadd.f32 %v3159, %v3247
        %v3249 = vpop.f32.mrf.mxu0
        %v3250 = vadd.f32 %v3161, %v3249
        %3251 = vmatmul.bf16.gmra.mxu0 %v2093
        %v3252 = vpop.f32.mrf.mxu0
        %v3253 = vadd.f32 %v3164, %v3252
        %v3254 = vpop.f32.mrf.mxu0
        %v3255 = vadd.f32 %v3166, %v3254
        %3256 = vmatmul.bf16.gmra.mxu0 %v2101
        %v3257 = vpop.f32.mrf.mxu0
        %v3258 = vadd.f32 %v3169, %v3257
        %v3259 = vpop.f32.mrf.mxu0
        %v3260 = vadd.f32 %v3171, %v3259
        %3261 = vmatmul.bf16.gmra.mxu0 %v2109
        %v3262 = vpop.f32.mrf.mxu0
        %v3263 = vadd.f32 %v3174, %v3262
        %v3264 = vpop.f32.mrf.mxu0
        %v3265 = vadd.f32 %v3176, %v3264
        %3266 = vmatmul.bf16.gmra.mxu0 %v2117
        %v3267 = vpop.f32.mrf.mxu0
        %v3268 = vadd.f32 %v3179, %v3267
        %v3269 = vpop.f32.mrf.mxu0
        %v3270 = vadd.f32 %v3181, %v3269
        %3271 = vmatmul.bf16.gmra.mxu0 %v2125
        %v3272 = vpop.f32.mrf.mxu0
        %v3273 = vadd.f32 %v3184, %v3272
        %v3274 = vpop.f32.mrf.mxu0
        %v3275 = vadd.f32 %v3186, %v3274
        %3276 = vmatmul.bf16.gmra.mxu0 %v2133
        %v3277 = vpop.f32.mrf.mxu0
        %v3278 = vadd.f32 %v3189, %v3277
        %v3279 = vpop.f32.mrf.mxu0
        %v3280 = vadd.f32 %v3191, %v3279
        %3281 = vmatmul.bf16.gmra.mxu0 %v2141
        %v3282 = vpop.f32.mrf.mxu0
        %v3283 = vadd.f32 %v3194, %v3282
        %v3284 = vpop.f32.mrf.mxu0
        %v3285 = vadd.f32 %v3196, %v3284
        %3286 = vmatmul.bf16.gmra.mxu0 %v2149
        %v3287 = vpop.f32.mrf.mxu0
        %v3288 = vadd.f32 %v3199, %v3287
        %v3289 = vpop.f32.mrf.mxu0
        %v3290 = vadd.f32 %v3201, %v3289
        %3291 = vmatmul.bf16.gmra.mxu0 %v2157
        %v3292 = vpop.f32.mrf.mxu0
        %v3293 = vadd.f32 %v3204, %v3292
        %v3294 = vpop.f32.mrf.mxu0
        %v3295 = vadd.f32 %v3206, %v3294
        %3296 = vmatmul.bf16.gmra.mxu0 %v2165
        %v3297 = vpop.f32.mrf.mxu0
        %v3298 = vadd.f32 %v3209, %v3297
        %v3299 = vpop.f32.mrf.mxu0
        %v3300 = vadd.f32 %v3211, %v3299
        %3301 = vdwg.mxu0
        %3302 = vmatpush.bf16.msra.mxu0 %v2614
        %3303 = vmatpush.bf16.msra.mxu0 %v2613
        %3304 = vmatpush.bf16.msra.mxu0 %v2612
        %3305 = vmatpush.bf16.msra.mxu0 %v2611
        %3306 = vmatpush.bf16.msra.mxu0 %v2610
        %3307 = vmatpush.bf16.msra.mxu0 %v2609
        %3308 = vmatpush.bf16.msra.mxu0 %v2608
        %3309 = vmatpush.bf16.msra.mxu0 %v2607
        %3310 = vmatmul.bf16.gmra.mxu0 %v2046
        %v3311 = vpop.f32.mrf.mxu0
        %v3312 = vadd.f32 %v3223, %v3311
        %v3313 = vpop.f32.mrf.mxu0
        %v3314 = vadd.f32 %v3225, %v3313
        %3315 = vmatmul.bf16.gmra.mxu0 %v2054
        %v3316 = vpop.f32.mrf.mxu0
        %v3317 = vadd.f32 %v3228, %v3316
        %v3318 = vpop.f32.mrf.mxu0
        %v3319 = vadd.f32 %v3230, %v3318
        %3320 = vmatmul.bf16.gmra.mxu0 %v2062
        %v3321 = vpop.f32.mrf.mxu0
        %v3322 = vadd.f32 %v3233, %v3321
        %v3323 = vpop.f32.mrf.mxu0
        %v3324 = vadd.f32 %v3235, %v3323
        %3325 = vmatmul.bf16.gmra.mxu0 %v2070
        %v3326 = vpop.f32.mrf.mxu0
        %v3327 = vadd.f32 %v3238, %v3326
        %v3328 = vpop.f32.mrf.mxu0
        %v3329 = vadd.f32 %v3240, %v3328
        %3330 = vmatmul.bf16.gmra.mxu0 %v2078
        %v3331 = vpop.f32.mrf.mxu0
        %v3332 = vadd.f32 %v3243, %v3331
        %v3333 = vpop.f32.mrf.mxu0
        %v3334 = vadd.f32 %v3245, %v3333
        %3335 = vmatmul.bf16.gmra.mxu0 %v2086
        %v3336 = vpop.f32.mrf.mxu0
        %v3337 = vadd.f32 %v3248, %v3336
        %v3338 = vpop.f32.mrf.mxu0
        %v3339 = vadd.f32 %v3250, %v3338
        %3340 = vmatmul.bf16.gmra.mxu0 %v2094
        %v3341 = vpop.f32.mrf.mxu0
        %v3342 = vadd.f32 %v3253, %v3341
        %v3343 = vpop.f32.mrf.mxu0
        %v3344 = vadd.f32 %v3255, %v3343
        %3345 = vmatmul.bf16.gmra.mxu0 %v2102
        %v3346 = vpop.f32.mrf.mxu0
        %v3347 = vadd.f32 %v3258, %v3346
        %v3348 = vpop.f32.mrf.mxu0
        %v3349 = vadd.f32 %v3260, %v3348
        %3350 = vmatmul.bf16.gmra.mxu0 %v2110
        %v3351 = vpop.f32.mrf.mxu0
        %v3352 = vadd.f32 %v3263, %v3351
        %v3353 = vpop.f32.mrf.mxu0
        %v3354 = vadd.f32 %v3265, %v3353
        %3355 = vmatmul.bf16.gmra.mxu0 %v2118
        %v3356 = vpop.f32.mrf.mxu0
        %v3357 = vadd.f32 %v3268, %v3356
        %v3358 = vpop.f32.mrf.mxu0
        %v3359 = vadd.f32 %v3270, %v3358
        %3360 = vmatmul.bf16.gmra.mxu0 %v2126
        %v3361 = vpop.f32.mrf.mxu0
        %v3362 = vadd.f32 %v3273, %v3361
        %v3363 = vpop.f32.mrf.mxu0
        %v3364 = vadd.f32 %v3275, %v3363
        %3365 = vmatmul.bf16.gmra.mxu0 %v2134
        %v3366 = vpop.f32.mrf.mxu0
        %v3367 = vadd.f32 %v3278, %v3366
        %v3368 = vpop.f32.mrf.mxu0
        %v3369 = vadd.f32 %v3280, %v3368
        %3370 = vmatmul.bf16.gmra.mxu0 %v2142
        %v3371 = vpop.f32.mrf.mxu0
        %v3372 = vadd.f32 %v3283, %v3371
        %v3373 = vpop.f32.mrf.mxu0
        %v3374 = vadd.f32 %v3285, %v3373
        %3375 = vmatmul.bf16.gmra.mxu0 %v2150
        %v3376 = vpop.f32.mrf.mxu0
        %v3377 = vadd.f32 %v3288, %v3376
        %v3378 = vpop.f32.mrf.mxu0
        %v3379 = vadd.f32 %v3290, %v3378
        %3380 = vmatmul.bf16.gmra.mxu0 %v2158
        %v3381 = vpop.f32.mrf.mxu0
        %v3382 = vadd.f32 %v3293, %v3381
        %v3383 = vpop.f32.mrf.mxu0
        %v3384 = vadd.f32 %v3295, %v3383
        %3385 = vmatmul.bf16.gmra.mxu0 %v2166
        %v3386 = vpop.f32.mrf.mxu0
        %v3387 = vadd.f32 %v3298, %v3386
        %v3388 = vpop.f32.mrf.mxu0
        %v3389 = vadd.f32 %v3300, %v3388
        %3390 = vdwg.mxu0
        %v3391 = vld [vmem:[%s4] sm:$0xff]
        %v3392 = vld [vmem:[%s4 + $0x8] sm:$0xff]
        %v3393 = vld [vmem:[%s4 + $0x10] sm:$0xff]
        %v3394 = vld [vmem:[%s4 + $0x18] sm:$0xff]
        %v3395 = vld [vmem:[%s4 + $0x20] sm:$0xff]
        %v3396 = vld [vmem:[%s4 + $0x28] sm:$0xff]
        %v3397 = vld [vmem:[%s4 + $0x30] sm:$0xff]
        %v3398 = vld [vmem:[%s4 + $0x38] sm:$0xff]
        %v3399 = vld [vmem:[%s4 + $0x40] sm:$0xff]
        %v3400 = vld [vmem:[%s4 + $0x48] sm:$0xff]
        %v3401 = vld [vmem:[%s4 + $0x50] sm:$0xff]
        %v3402 = vld [vmem:[%s4 + $0x58] sm:$0xff]
        %v3403 = vld [vmem:[%s4 + $0x60] sm:$0xff]
        %v3404 = vld [vmem:[%s4 + $0x68] sm:$0xff]
        %v3405 = vld [vmem:[%s4 + $0x70] sm:$0xff]
        %v3406 = vld [vmem:[%s4 + $0x78] sm:$0xff]
        %v3407 = vld [vmem:[%s5] sm:$0xff]
        %v3408 = vld [vmem:[%s5 + $0x8] sm:$0xff]
        %v3409 = vld [vmem:[%s5 + $0x10] sm:$0xff]
        %v3410 = vld [vmem:[%s5 + $0x18] sm:$0xff]
        %vm3411 = vcmask 130048
        %v3413 = vsel %vm3411, %v3312, 0
        %v3416 = vsel %vm3411, %v3314, 0
        %v3419 = vsel %vm3411, %v3317, 0
        %v3422 = vsel %vm3411, %v3319, 0
        %v3425 = vsel %vm3411, %v3322, 0
        %v3428 = vsel %vm3411, %v3324, 0
        %v3431 = vsel %vm3411, %v3327, 0
        %v3434 = vsel %vm3411, %v3329, 0
        %v3437 = vsel %vm3411, %v3332, 0
        %v3440 = vsel %vm3411, %v3334, 0
        %v3443 = vsel %vm3411, %v3337, 0
        %v3446 = vsel %vm3411, %v3339, 0
        %v3449 = vsel %vm3411, %v3342, 0
        %v3452 = vsel %vm3411, %v3344, 0
        %v3455 = vsel %vm3411, %v3347, 0
        %v3458 = vsel %vm3411, %v3349, 0
        %v3461 = vsel %vm3411, %v3352, 0
        %v3464 = vsel %vm3411, %v3354, 0
        %v3467 = vsel %vm3411, %v3357, 0
        %v3470 = vsel %vm3411, %v3359, 0
        %v3473 = vsel %vm3411, %v3362, 0
        %v3476 = vsel %vm3411, %v3364, 0
        %v3479 = vsel %vm3411, %v3367, 0
        %v3482 = vsel %vm3411, %v3369, 0
        %v3485 = vsel %vm3411, %v3372, 0
        %v3488 = vsel %vm3411, %v3374, 0
        %v3491 = vsel %vm3411, %v3377, 0
        %v3494 = vsel %vm3411, %v3379, 0
        %v3497 = vsel %vm3411, %v3382, 0
        %v3500 = vsel %vm3411, %v3384, 0
        %v3503 = vsel %vm3411, %v3387, 0
        %v3506 = vsel %vm3411, %v3389, 0
        %3508 = vmatpush.msra.mxu0 0.0
        %3509 = vmatpush.msra.mxu0 0.0
        %3510 = vmatpush.msra.mxu0 0.0
        %3511 = vmatpush.msra.mxu0 0.0
        %3512 = vmatpush.msra.mxu0 0.0
        %3513 = vmatpush.msra.mxu0 0.0
        %3514 = vmatpush.msra.mxu0 0.0
        %3515 = vmatpush.msra.mxu0 0.0
        %3516 = vmatpush.msra.mxu0 0.0
        %3517 = vmatpush.msra.mxu0 0.0
        %3518 = vmatpush.msra.mxu0 0.0
        %3519 = vmatpush.msra.mxu0 0.0
        %3520 = vmatpush.msra.mxu0 0.0
        %3521 = vmatpush.msra.mxu0 0.0
        %3522 = vmatpush.msra.mxu0 %v3409
        %3523 = vmatpush.msra.mxu0 %v3407
        %3524 = vmatmul.f32.gmra.mxu0 %v3413
        %v3525 = vpop.f32.mrf.mxu0
        %v3526 = vadd.f32 0.0, %v3525
        %3527 = vmatmul.f32.gmra.mxu0 %v3416
        %v3528 = vpop.f32.mrf.mxu0
        %v3529 = vadd.f32 0.0, %v3528
        %3530 = vmatmul.f32.gmra.mxu0 %v3419
        %v3531 = vpop.f32.mrf.mxu0
        %v3532 = vadd.f32 0.0, %v3531
        %3533 = vmatmul.f32.gmra.mxu0 %v3422
        %v3534 = vpop.f32.mrf.mxu0
        %v3535 = vadd.f32 0.0, %v3534
        %3536 = vmatmul.f32.gmra.mxu0 %v3425
        %v3537 = vpop.f32.mrf.mxu0
        %v3538 = vadd.f32 0.0, %v3537
        %3539 = vmatmul.f32.gmra.mxu0 %v3428
        %v3540 = vpop.f32.mrf.mxu0
        %v3541 = vadd.f32 0.0, %v3540
        %3542 = vmatmul.f32.gmra.mxu0 %v3431
        %v3543 = vpop.f32.mrf.mxu0
        %v3544 = vadd.f32 0.0, %v3543
        %3545 = vmatmul.f32.gmra.mxu0 %v3434
        %v3546 = vpop.f32.mrf.mxu0
        %v3547 = vadd.f32 0.0, %v3546
        %3548 = vmatmul.f32.gmra.mxu0 %v3437
        %v3549 = vpop.f32.mrf.mxu0
        %v3550 = vadd.f32 0.0, %v3549
        %3551 = vmatmul.f32.gmra.mxu0 %v3440
        %v3552 = vpop.f32.mrf.mxu0
        %v3553 = vadd.f32 0.0, %v3552
        %3554 = vmatmul.f32.gmra.mxu0 %v3443
        %v3555 = vpop.f32.mrf.mxu0
        %v3556 = vadd.f32 0.0, %v3555
        %3557 = vmatmul.f32.gmra.mxu0 %v3446
        %v3558 = vpop.f32.mrf.mxu0
        %v3559 = vadd.f32 0.0, %v3558
        %3560 = vmatmul.f32.gmra.mxu0 %v3449
        %v3561 = vpop.f32.mrf.mxu0
        %v3562 = vadd.f32 0.0, %v3561
        %3563 = vmatmul.f32.gmra.mxu0 %v3452
        %v3564 = vpop.f32.mrf.mxu0
        %v3565 = vadd.f32 0.0, %v3564
        %3566 = vmatmul.f32.gmra.mxu0 %v3455
        %v3567 = vpop.f32.mrf.mxu0
        %v3568 = vadd.f32 0.0, %v3567
        %3569 = vmatmul.f32.gmra.mxu0 %v3458
        %v3570 = vpop.f32.mrf.mxu0
        %v3571 = vadd.f32 0.0, %v3570
        %3572 = vmatmul.f32.gmra.mxu0 %v3461
        %v3573 = vpop.f32.mrf.mxu0
        %v3574 = vadd.f32 0.0, %v3573
        %3575 = vmatmul.f32.gmra.mxu0 %v3464
        %v3576 = vpop.f32.mrf.mxu0
        %v3577 = vadd.f32 0.0, %v3576
        %3578 = vmatmul.f32.gmra.mxu0 %v3467
        %v3579 = vpop.f32.mrf.mxu0
        %v3580 = vadd.f32 0.0, %v3579
        %3581 = vmatmul.f32.gmra.mxu0 %v3470
        %v3582 = vpop.f32.mrf.mxu0
        %v3583 = vadd.f32 0.0, %v3582
        %3584 = vmatmul.f32.gmra.mxu0 %v3473
        %v3585 = vpop.f32.mrf.mxu0
        %v3586 = vadd.f32 0.0, %v3585
        %3587 = vmatmul.f32.gmra.mxu0 %v3476
        %v3588 = vpop.f32.mrf.mxu0
        %v3589 = vadd.f32 0.0, %v3588
        %3590 = vmatmul.f32.gmra.mxu0 %v3479
        %v3591 = vpop.f32.mrf.mxu0
        %v3592 = vadd.f32 0.0, %v3591
        %3593 = vmatmul.f32.gmra.mxu0 %v3482
        %v3594 = vpop.f32.mrf.mxu0
        %v3595 = vadd.f32 0.0, %v3594
        %3596 = vmatmul.f32.gmra.mxu0 %v3485
        %v3597 = vpop.f32.mrf.mxu0
        %v3598 = vadd.f32 0.0, %v3597
        %3599 = vmatmul.f32.gmra.mxu0 %v3488
        %v3600 = vpop.f32.mrf.mxu0
        %v3601 = vadd.f32 0.0, %v3600
        %3602 = vmatmul.f32.gmra.mxu0 %v3491
        %v3603 = vpop.f32.mrf.mxu0
        %v3604 = vadd.f32 0.0, %v3603
        %3605 = vmatmul.f32.gmra.mxu0 %v3494
        %v3606 = vpop.f32.mrf.mxu0
        %v3607 = vadd.f32 0.0, %v3606
        %3608 = vmatmul.f32.gmra.mxu0 %v3497
        %v3609 = vpop.f32.mrf.mxu0
        %v3610 = vadd.f32 0.0, %v3609
        %3611 = vmatmul.f32.gmra.mxu0 %v3500
        %v3612 = vpop.f32.mrf.mxu0
        %v3613 = vadd.f32 0.0, %v3612
        %3614 = vmatmul.f32.gmra.mxu0 %v3503
        %v3615 = vpop.f32.mrf.mxu0
        %v3616 = vadd.f32 0.0, %v3615
        %3617 = vmatmul.f32.gmra.mxu0 %v3506
        %v3618 = vpop.f32.mrf.mxu0
        %v3619 = vadd.f32 0.0, %v3618
        %3620 = vdwg.mxu0
        %3621 = vmatpush.msra.mxu0 0.0
        %3622 = vmatpush.msra.mxu0 0.0
        %3623 = vmatpush.msra.mxu0 0.0
        %3624 = vmatpush.msra.mxu0 0.0
        %3625 = vmatpush.msra.mxu0 0.0
        %3626 = vmatpush.msra.mxu0 0.0
        %3627 = vmatpush.msra.mxu0 0.0
        %3628 = vmatpush.msra.mxu0 0.0
        %3629 = vmatpush.msra.mxu0 0.0
        %3630 = vmatpush.msra.mxu0 0.0
        %3631 = vmatpush.msra.mxu0 0.0
        %3632 = vmatpush.msra.mxu0 0.0
        %3633 = vmatpush.msra.mxu0 0.0
        %3634 = vmatpush.msra.mxu0 0.0
        %3635 = vmatpush.msra.mxu0 %v3410
        %3636 = vmatpush.msra.mxu0 %v3408
        %3637 = vmatmul.f32.gmra.mxu0 %v3413
        %v3638 = vpop.f32.mrf.mxu0
        %v3639 = vadd.f32 0.0, %v3638
        %3640 = vmatmul.f32.gmra.mxu0 %v3416
        %v3641 = vpop.f32.mrf.mxu0
        %v3642 = vadd.f32 0.0, %v3641
        %3643 = vmatmul.f32.gmra.mxu0 %v3419
        %v3644 = vpop.f32.mrf.mxu0
        %v3645 = vadd.f32 0.0, %v3644
        %3646 = vmatmul.f32.gmra.mxu0 %v3422
        %v3647 = vpop.f32.mrf.mxu0
        %v3648 = vadd.f32 0.0, %v3647
        %3649 = vmatmul.f32.gmra.mxu0 %v3425
        %v3650 = vpop.f32.mrf.mxu0
        %v3651 = vadd.f32 0.0, %v3650
        %3652 = vmatmul.f32.gmra.mxu0 %v3428
        %v3653 = vpop.f32.mrf.mxu0
        %v3654 = vadd.f32 0.0, %v3653
        %3655 = vmatmul.f32.gmra.mxu0 %v3431
        %v3656 = vpop.f32.mrf.mxu0
        %v3657 = vadd.f32 0.0, %v3656
        %3658 = vmatmul.f32.gmra.mxu0 %v3434
        %v3659 = vpop.f32.mrf.mxu0
        %v3660 = vadd.f32 0.0, %v3659
        %3661 = vmatmul.f32.gmra.mxu0 %v3437
        %v3662 = vpop.f32.mrf.mxu0
        %v3663 = vadd.f32 0.0, %v3662
        %3664 = vmatmul.f32.gmra.mxu0 %v3440
        %v3665 = vpop.f32.mrf.mxu0
        %v3666 = vadd.f32 0.0, %v3665
        %3667 = vmatmul.f32.gmra.mxu0 %v3443
        %v3668 = vpop.f32.mrf.mxu0
        %v3669 = vadd.f32 0.0, %v3668
        %3670 = vmatmul.f32.gmra.mxu0 %v3446
        %v3671 = vpop.f32.mrf.mxu0
        %v3672 = vadd.f32 0.0, %v3671
        %3673 = vmatmul.f32.gmra.mxu0 %v3449
        %v3674 = vpop.f32.mrf.mxu0
        %v3675 = vadd.f32 0.0, %v3674
        %3676 = vmatmul.f32.gmra.mxu0 %v3452
        %v3677 = vpop.f32.mrf.mxu0
        %v3678 = vadd.f32 0.0, %v3677
        %3679 = vmatmul.f32.gmra.mxu0 %v3455
        %v3680 = vpop.f32.mrf.mxu0
        %v3681 = vadd.f32 0.0, %v3680
        %3682 = vmatmul.f32.gmra.mxu0 %v3458
        %v3683 = vpop.f32.mrf.mxu0
        %v3684 = vadd.f32 0.0, %v3683
        %3685 = vmatmul.f32.gmra.mxu0 %v3461
        %v3686 = vpop.f32.mrf.mxu0
        %v3687 = vadd.f32 0.0, %v3686
        %3688 = vmatmul.f32.gmra.mxu0 %v3464
        %v3689 = vpop.f32.mrf.mxu0
        %v3690 = vadd.f32 0.0, %v3689
        %3691 = vmatmul.f32.gmra.mxu0 %v3467
        %v3692 = vpop.f32.mrf.mxu0
        %v3693 = vadd.f32 0.0, %v3692
        %3694 = vmatmul.f32.gmra.mxu0 %v3470
        %v3695 = vpop.f32.mrf.mxu0
        %v3696 = vadd.f32 0.0, %v3695
        %3697 = vmatmul.f32.gmra.mxu0 %v3473
        %v3698 = vpop.f32.mrf.mxu0
        %v3699 = vadd.f32 0.0, %v3698
        %3700 = vmatmul.f32.gmra.mxu0 %v3476
        %v3701 = vpop.f32.mrf.mxu0
        %v3702 = vadd.f32 0.0, %v3701
        %3703 = vmatmul.f32.gmra.mxu0 %v3479
        %v3704 = vpop.f32.mrf.mxu0
        %v3705 = vadd.f32 0.0, %v3704
        %3706 = vmatmul.f32.gmra.mxu0 %v3482
        %v3707 = vpop.f32.mrf.mxu0
        %v3708 = vadd.f32 0.0, %v3707
        %3709 = vmatmul.f32.gmra.mxu0 %v3485
        %v3710 = vpop.f32.mrf.mxu0
        %v3711 = vadd.f32 0.0, %v3710
        %3712 = vmatmul.f32.gmra.mxu0 %v3488
        %v3713 = vpop.f32.mrf.mxu0
        %v3714 = vadd.f32 0.0, %v3713
        %3715 = vmatmul.f32.gmra.mxu0 %v3491
        %v3716 = vpop.f32.mrf.mxu0
        %v3717 = vadd.f32 0.0, %v3716
        %3718 = vmatmul.f32.gmra.mxu0 %v3494
        %v3719 = vpop.f32.mrf.mxu0
        %v3720 = vadd.f32 0.0, %v3719
        %3721 = vmatmul.f32.gmra.mxu0 %v3497
        %v3722 = vpop.f32.mrf.mxu0
        %v3723 = vadd.f32 0.0, %v3722
        %3724 = vmatmul.f32.gmra.mxu0 %v3500
        %v3725 = vpop.f32.mrf.mxu0
        %v3726 = vadd.f32 0.0, %v3725
        %3727 = vmatmul.f32.gmra.mxu0 %v3503
        %v3728 = vpop.f32.mrf.mxu0
        %v3729 = vadd.f32 0.0, %v3728
        %3730 = vmatmul.f32.gmra.mxu0 %v3506
        %v3731 = vpop.f32.mrf.mxu0
        %v3732 = vadd.f32 0.0, %v3731
        %3733 = vdwg.mxu0
        %vm3734 = vcmask 523264
        %v3736 = vsel %vm3734, %v1320, 0
        %v3739 = vsel %vm3734, %v1322, 0
        %v3742 = vsel %vm3734, %v1325, 0
        %v3745 = vsel %vm3734, %v1327, 0
        %v3748 = vsel %vm3734, %v1330, 0
        %v3751 = vsel %vm3734, %v1332, 0
        %v3754 = vsel %vm3734, %v1335, 0
        %v3757 = vsel %vm3734, %v1337, 0
        %v3760 = vsel %vm3734, %v1340, 0
        %v3763 = vsel %vm3734, %v1342, 0
        %v3766 = vsel %vm3734, %v1345, 0
        %v3769 = vsel %vm3734, %v1347, 0
        %v3772 = vsel %vm3734, %v1350, 0
        %v3775 = vsel %vm3734, %v1352, 0
        %v3778 = vsel %vm3734, %v1355, 0
        %v3781 = vsel %vm3734, %v1357, 0
        %v3784 = vsel %vm3734, %v1360, 0
        %v3787 = vsel %vm3734, %v1362, 0
        %v3790 = vsel %vm3734, %v1365, 0
        %v3793 = vsel %vm3734, %v1367, 0
        %v3796 = vsel %vm3734, %v1370, 0
        %v3799 = vsel %vm3734, %v1372, 0
        %v3802 = vsel %vm3734, %v1375, 0
        %v3805 = vsel %vm3734, %v1377, 0
        %v3808 = vsel %vm3734, %v1380, 0
        %v3811 = vsel %vm3734, %v1382, 0
        %v3814 = vsel %vm3734, %v1385, 0
        %v3817 = vsel %vm3734, %v1387, 0
        %v3820 = vsel %vm3734, %v1390, 0
        %v3823 = vsel %vm3734, %v1392, 0
        %v3826 = vsel %vm3734, %v1395, 0
        %v3829 = vsel %vm3734, %v1397, 0
        %3831 = vmatpush.msra.mxu0 0.0
        %3832 = vmatpush.msra.mxu0 0.0
        %3833 = vmatpush.msra.mxu0 0.0
        %3834 = vmatpush.msra.mxu0 0.0
        %3835 = vmatpush.msra.mxu0 0.0
        %3836 = vmatpush.msra.mxu0 0.0
        %3837 = vmatpush.msra.mxu0 0.0
        %3838 = vmatpush.msra.mxu0 0.0
        %3839 = vmatpush.msra.mxu0 %v3405
        %3840 = vmatpush.msra.mxu0 %v3403
        %3841 = vmatpush.msra.mxu0 %v3401
        %3842 = vmatpush.msra.mxu0 %v3399
        %3843 = vmatpush.msra.mxu0 %v3397
        %3844 = vmatpush.msra.mxu0 %v3395
        %3845 = vmatpush.msra.mxu0 %v3393
        %3846 = vmatpush.msra.mxu0 %v3391
        %3847 = vmatmul.f32.gmra.mxu0 %v3736
        %v3848 = vpop.f32.mrf.mxu0
        %v3849 = vadd.f32 %v3526, %v3848
        %3850 = vmatmul.f32.gmra.mxu0 %v3739
        %v3851 = vpop.f32.mrf.mxu0
        %v3852 = vadd.f32 %v3529, %v3851
        %3853 = vmatmul.f32.gmra.mxu0 %v3742
        %v3854 = vpop.f32.mrf.mxu0
        %v3855 = vadd.f32 %v3532, %v3854
        %3856 = vmatmul.f32.gmra.mxu0 %v3745
        %v3857 = vpop.f32.mrf.mxu0
        %v3858 = vadd.f32 %v3535, %v3857
        %3859 = vmatmul.f32.gmra.mxu0 %v3748
        %v3860 = vpop.f32.mrf.mxu0
        %v3861 = vadd.f32 %v3538, %v3860
        %3862 = vmatmul.f32.gmra.mxu0 %v3751
        %v3863 = vpop.f32.mrf.mxu0
        %v3864 = vadd.f32 %v3541, %v3863
        %3865 = vmatmul.f32.gmra.mxu0 %v3754
        %v3866 = vpop.f32.mrf.mxu0
        %v3867 = vadd.f32 %v3544, %v3866
        %3868 = vmatmul.f32.gmra.mxu0 %v3757
        %v3869 = vpop.f32.mrf.mxu0
        %v3870 = vadd.f32 %v3547, %v3869
        %3871 = vmatmul.f32.gmra.mxu0 %v3760
        %v3872 = vpop.f32.mrf.mxu0
        %v3873 = vadd.f32 %v3550, %v3872
        %3874 = vmatmul.f32.gmra.mxu0 %v3763
        %v3875 = vpop.f32.mrf.mxu0
        %v3876 = vadd.f32 %v3553, %v3875
        %3877 = vmatmul.f32.gmra.mxu0 %v3766
        %v3878 = vpop.f32.mrf.mxu0
        %v3879 = vadd.f32 %v3556, %v3878
        %3880 = vmatmul.f32.gmra.mxu0 %v3769
        %v3881 = vpop.f32.mrf.mxu0
        %v3882 = vadd.f32 %v3559, %v3881
        %3883 = vmatmul.f32.gmra.mxu0 %v3772
        %v3884 = vpop.f32.mrf.mxu0
        %v3885 = vadd.f32 %v3562, %v3884
        %3886 = vmatmul.f32.gmra.mxu0 %v3775
        %v3887 = vpop.f32.mrf.mxu0
        %v3888 = vadd.f32 %v3565, %v3887
        %3889 = vmatmul.f32.gmra.mxu0 %v3778
        %v3890 = vpop.f32.mrf.mxu0
        %v3891 = vadd.f32 %v3568, %v3890
        %3892 = vmatmul.f32.gmra.mxu0 %v3781
        %v3893 = vpop.f32.mrf.mxu0
        %v3894 = vadd.f32 %v3571, %v3893
        %3895 = vmatmul.f32.gmra.mxu0 %v3784
        %v3896 = vpop.f32.mrf.mxu0
        %v3897 = vadd.f32 %v3574, %v3896
        %3898 = vmatmul.f32.gmra.mxu0 %v3787
        %v3899 = vpop.f32.mrf.mxu0
        %v3900 = vadd.f32 %v3577, %v3899
        %3901 = vmatmul.f32.gmra.mxu0 %v3790
        %v3902 = vpop.f32.mrf.mxu0
        %v3903 = vadd.f32 %v3580, %v3902
        %3904 = vmatmul.f32.gmra.mxu0 %v3793
        %v3905 = vpop.f32.mrf.mxu0
        %v3906 = vadd.f32 %v3583, %v3905
        %3907 = vmatmul.f32.gmra.mxu0 %v3796
        %v3908 = vpop.f32.mrf.mxu0
        %v3909 = vadd.f32 %v3586, %v3908
        %3910 = vmatmul.f32.gmra.mxu0 %v3799
        %v3911 = vpop.f32.mrf.mxu0
        %v3912 = vadd.f32 %v3589, %v3911
        %3913 = vmatmul.f32.gmra.mxu0 %v3802
        %v3914 = vpop.f32.mrf.mxu0
        %v3915 = vadd.f32 %v3592, %v3914
        %3916 = vmatmul.f32.gmra.mxu0 %v3805
        %v3917 = vpop.f32.mrf.mxu0
        %v3918 = vadd.f32 %v3595, %v3917
        %3919 = vmatmul.f32.gmra.mxu0 %v3808
        %v3920 = vpop.f32.mrf.mxu0
        %v3921 = vadd.f32 %v3598, %v3920
        %3922 = vmatmul.f32.gmra.mxu0 %v3811
        %v3923 = vpop.f32.mrf.mxu0
        %v3924 = vadd.f32 %v3601, %v3923
        %3925 = vmatmul.f32.gmra.mxu0 %v3814
        %v3926 = vpop.f32.mrf.mxu0
        %v3927 = vadd.f32 %v3604, %v3926
        %3928 = vmatmul.f32.gmra.mxu0 %v3817
        %v3929 = vpop.f32.mrf.mxu0
        %v3930 = vadd.f32 %v3607, %v3929
        %3931 = vmatmul.f32.gmra.mxu0 %v3820
        %v3932 = vpop.f32.mrf.mxu0
        %v3933 = vadd.f32 %v3610, %v3932
        %3934 = vmatmul.f32.gmra.mxu0 %v3823
        %v3935 = vpop.f32.mrf.mxu0
        %v3936 = vadd.f32 %v3613, %v3935
        %3937 = vmatmul.f32.gmra.mxu0 %v3826
        %v3938 = vpop.f32.mrf.mxu0
        %v3939 = vadd.f32 %v3616, %v3938
        %3940 = vmatmul.f32.gmra.mxu0 %v3829
        %v3941 = vpop.f32.mrf.mxu0
        %v3942 = vadd.f32 %v3619, %v3941
        %3943 = vdwg.mxu0
        %3944 = vmatpush.msra.mxu0 0.0
        %3945 = vmatpush.msra.mxu0 0.0
        %3946 = vmatpush.msra.mxu0 0.0
        %3947 = vmatpush.msra.mxu0 0.0
        %3948 = vmatpush.msra.mxu0 0.0
        %3949 = vmatpush.msra.mxu0 0.0
        %3950 = vmatpush.msra.mxu0 0.0
        %3951 = vmatpush.msra.mxu0 0.0
        %3952 = vmatpush.msra.mxu0 %v3406
        %3953 = vmatpush.msra.mxu0 %v3404
        %3954 = vmatpush.msra.mxu0 %v3402
        %3955 = vmatpush.msra.mxu0 %v3400
        %3956 = vmatpush.msra.mxu0 %v3398
        %3957 = vmatpush.msra.mxu0 %v3396
        %3958 = vmatpush.msra.mxu0 %v3394
        %3959 = vmatpush.msra.mxu0 %v3392
        %3960 = vmatmul.f32.gmra.mxu0 %v3736
        %v3961 = vpop.f32.mrf.mxu0
        %v3962 = vadd.f32 %v3639, %v3961
        %3963 = vmatmul.f32.gmra.mxu0 %v3739
        %v3964 = vpop.f32.mrf.mxu0
        %v3965 = vadd.f32 %v3642, %v3964
        %3966 = vmatmul.f32.gmra.mxu0 %v3742
        %v3967 = vpop.f32.mrf.mxu0
        %v3968 = vadd.f32 %v3645, %v3967
        %3969 = vmatmul.f32.gmra.mxu0 %v3745
        %v3970 = vpop.f32.mrf.mxu0
        %v3971 = vadd.f32 %v3648, %v3970
        %3972 = vmatmul.f32.gmra.mxu0 %v3748
        %v3973 = vpop.f32.mrf.mxu0
        %v3974 = vadd.f32 %v3651, %v3973
        %3975 = vmatmul.f32.gmra.mxu0 %v3751
        %v3976 = vpop.f32.mrf.mxu0
        %v3977 = vadd.f32 %v3654, %v3976
        %3978 = vmatmul.f32.gmra.mxu0 %v3754
        %v3979 = vpop.f32.mrf.mxu0
        %v3980 = vadd.f32 %v3657, %v3979
        %3981 = vmatmul.f32.gmra.mxu0 %v3757
        %v3982 = vpop.f32.mrf.mxu0
        %v3983 = vadd.f32 %v3660, %v3982
        %3984 = vmatmul.f32.gmra.mxu0 %v3760
        %v3985 = vpop.f32.mrf.mxu0
        %v3986 = vadd.f32 %v3663, %v3985
        %3987 = vmatmul.f32.gmra.mxu0 %v3763
        %v3988 = vpop.f32.mrf.mxu0
        %v3989 = vadd.f32 %v3666, %v3988
        %3990 = vmatmul.f32.gmra.mxu0 %v3766
        %v3991 = vpop.f32.mrf.mxu0
        %v3992 = vadd.f32 %v3669, %v3991
        %3993 = vmatmul.f32.gmra.mxu0 %v3769
        %v3994 = vpop.f32.mrf.mxu0
        %v3995 = vadd.f32 %v3672, %v3994
        %3996 = vmatmul.f32.gmra.mxu0 %v3772
        %v3997 = vpop.f32.mrf.mxu0
        %v3998 = vadd.f32 %v3675, %v3997
        %3999 = vmatmul.f32.gmra.mxu0 %v3775
        %v4000 = vpop.f32.mrf.mxu0
        %v4001 = vadd.f32 %v3678, %v4000
        %4002 = vmatmul.f32.gmra.mxu0 %v3778
        %v4003 = vpop.f32.mrf.mxu0
        %v4004 = vadd.f32 %v3681, %v4003
        %4005 = vmatmul.f32.gmra.mxu0 %v3781
        %v4006 = vpop.f32.mrf.mxu0
        %v4007 = vadd.f32 %v3684, %v4006
        %4008 = vmatmul.f32.gmra.mxu0 %v3784
        %v4009 = vpop.f32.mrf.mxu0
        %v4010 = vadd.f32 %v3687, %v4009
        %4011 = vmatmul.f32.gmra.mxu0 %v3787
        %v4012 = vpop.f32.mrf.mxu0
        %v4013 = vadd.f32 %v3690, %v4012
        %4014 = vmatmul.f32.gmra.mxu0 %v3790
        %v4015 = vpop.f32.mrf.mxu0
        %v4016 = vadd.f32 %v3693, %v4015
        %4017 = vmatmul.f32.gmra.mxu0 %v3793
        %v4018 = vpop.f32.mrf.mxu0
        %v4019 = vadd.f32 %v3696, %v4018
        %4020 = vmatmul.f32.gmra.mxu0 %v3796
        %v4021 = vpop.f32.mrf.mxu0
        %v4022 = vadd.f32 %v3699, %v4021
        %4023 = vmatmul.f32.gmra.mxu0 %v3799
        %v4024 = vpop.f32.mrf.mxu0
        %v4025 = vadd.f32 %v3702, %v4024
        %4026 = vmatmul.f32.gmra.mxu0 %v3802
        %v4027 = vpop.f32.mrf.mxu0
        %v4028 = vadd.f32 %v3705, %v4027
        %4029 = vmatmul.f32.gmra.mxu0 %v3805
        %v4030 = vpop.f32.mrf.mxu0
        %v4031 = vadd.f32 %v3708, %v4030
        %4032 = vmatmul.f32.gmra.mxu0 %v3808
        %v4033 = vpop.f32.mrf.mxu0
        %v4034 = vadd.f32 %v3711, %v4033
        %4035 = vmatmul.f32.gmra.mxu0 %v3811
        %v4036 = vpop.f32.mrf.mxu0
        %v4037 = vadd.f32 %v3714, %v4036
        %4038 = vmatmul.f32.gmra.mxu0 %v3814
        %v4039 = vpop.f32.mrf.mxu0
        %v4040 = vadd.f32 %v3717, %v4039
        %4041 = vmatmul.f32.gmra.mxu0 %v3817
        %v4042 = vpop.f32.mrf.mxu0
        %v4043 = vadd.f32 %v3720, %v4042
        %4044 = vmatmul.f32.gmra.mxu0 %v3820
        %v4045 = vpop.f32.mrf.mxu0
        %v4046 = vadd.f32 %v3723, %v4045
        %4047 = vmatmul.f32.gmra.mxu0 %v3823
        %v4048 = vpop.f32.mrf.mxu0
        %v4049 = vadd.f32 %v3726, %v4048
        %4050 = vmatmul.f32.gmra.mxu0 %v3826
        %v4051 = vpop.f32.mrf.mxu0
        %v4052 = vadd.f32 %v3729, %v4051
        %4053 = vmatmul.f32.gmra.mxu0 %v3829
        %v4054 = vpop.f32.mrf.mxu0
        %v4055 = vadd.f32 %v3732, %v4054
        %4056 = vdwg.mxu0
        %v4057 = vld [vmem:[%s400] sm:$0xff]
        %v4058 = vld [vmem:[%s400 + $0x8] sm:$0xff]
        %v4059 = vld [vmem:[%s400 + $0x10] sm:$0xff]
        %v4060 = vld [vmem:[%s400 + $0x18] sm:$0xff]
        %v4061 = vld [vmem:[%s400 + $0x20] sm:$0xff]
        %v4062 = vld [vmem:[%s400 + $0x28] sm:$0xff]
        %v4063 = vld [vmem:[%s400 + $0x30] sm:$0xff]
        %v4064 = vld [vmem:[%s400 + $0x38] sm:$0xff]
        %v4065 = vld [vmem:[%s400 + $0x40] sm:$0xff]
        %v4066 = vld [vmem:[%s400 + $0x48] sm:$0xff]
        %v4067 = vld [vmem:[%s400 + $0x50] sm:$0xff]
        %v4068 = vld [vmem:[%s400 + $0x58] sm:$0xff]
        %v4069 = vld [vmem:[%s400 + $0x60] sm:$0xff]
        %v4070 = vld [vmem:[%s400 + $0x68] sm:$0xff]
        %v4071 = vld [vmem:[%s400 + $0x70] sm:$0xff]
        %v4072 = vld [vmem:[%s400 + $0x78] sm:$0xff]
        %v4073 = vld [vmem:[%s400 + $0x80] sm:$0xff]
        %v4074 = vld [vmem:[%s400 + $0x88] sm:$0xff]
        %v4075 = vld [vmem:[%s400 + $0x90] sm:$0xff]
        %v4076 = vld [vmem:[%s400 + $0x98] sm:$0xff]
        %v4077 = vld [vmem:[%s400 + $0xa0] sm:$0xff]
        %v4078 = vld [vmem:[%s400 + $0xa8] sm:$0xff]
        %v4079 = vld [vmem:[%s400 + $0xb0] sm:$0xff]
        %v4080 = vld [vmem:[%s400 + $0xb8] sm:$0xff]
        %v4081 = vld [vmem:[%s400 + $0xc0] sm:$0xff]
        %v4082 = vld [vmem:[%s400 + $0xc8] sm:$0xff]
        %v4083 = vld [vmem:[%s400 + $0xd0] sm:$0xff]
        %v4084 = vld [vmem:[%s400 + $0xd8] sm:$0xff]
        %v4085 = vld [vmem:[%s400 + $0xe0] sm:$0xff]
        %v4086 = vld [vmem:[%s400 + $0xe8] sm:$0xff]
        %v4087 = vld [vmem:[%s400 + $0xf0] sm:$0xff]
        %v4088 = vld [vmem:[%s400 + $0xf8] sm:$0xff]
        %4090 = vset.pattern.permute.xlu0 0
        %4091 = vperm.xlu0 %4090, %v4057
        %v4092 = vpop.permute.xlu0 %4091
        %4095 = vset.pattern.permute.xlu0 0
        %4096 = vperm.xlu0 %4095, %v4058
        %v4097 = vpop.permute.xlu0 %4096
        %4100 = vset.pattern.permute.xlu0 0
        %4101 = vperm.xlu0 %4100, %v4059
        %v4102 = vpop.permute.xlu0 %4101
        %4105 = vset.pattern.permute.xlu0 0
        %4106 = vperm.xlu0 %4105, %v4060
        %v4107 = vpop.permute.xlu0 %4106
        %4110 = vset.pattern.permute.xlu0 0
        %4111 = vperm.xlu0 %4110, %v4061
        %v4112 = vpop.permute.xlu0 %4111
        %4115 = vset.pattern.permute.xlu0 0
        %4116 = vperm.xlu0 %4115, %v4062
        %v4117 = vpop.permute.xlu0 %4116
        %4120 = vset.pattern.permute.xlu0 0
        %4121 = vperm.xlu0 %4120, %v4063
        %v4122 = vpop.permute.xlu0 %4121
        %4125 = vset.pattern.permute.xlu0 0
        %4126 = vperm.xlu0 %4125, %v4064
        %v4127 = vpop.permute.xlu0 %4126
        %4130 = vset.pattern.permute.xlu0 0
        %4131 = vperm.xlu0 %4130, %v4065
        %v4132 = vpop.permute.xlu0 %4131
        %4135 = vset.pattern.permute.xlu0 0
        %4136 = vperm.xlu0 %4135, %v4066
        %v4137 = vpop.permute.xlu0 %4136
        %4140 = vset.pattern.permute.xlu0 0
        %4141 = vperm.xlu0 %4140, %v4067
        %v4142 = vpop.permute.xlu0 %4141
        %4145 = vset.pattern.permute.xlu0 0
        %4146 = vperm.xlu0 %4145, %v4068
        %v4147 = vpop.permute.xlu0 %4146
        %4150 = vset.pattern.permute.xlu0 0
        %4151 = vperm.xlu0 %4150, %v4069
        %v4152 = vpop.permute.xlu0 %4151
        %4155 = vset.pattern.permute.xlu0 0
        %4156 = vperm.xlu0 %4155, %v4070
        %v4157 = vpop.permute.xlu0 %4156
        %4160 = vset.pattern.permute.xlu0 0
        %4161 = vperm.xlu0 %4160, %v4071
        %v4162 = vpop.permute.xlu0 %4161
        %4165 = vset.pattern.permute.xlu0 0
        %4166 = vperm.xlu0 %4165, %v4072
        %v4167 = vpop.permute.xlu0 %4166
        %4170 = vset.pattern.permute.xlu0 0
        %4171 = vperm.xlu0 %4170, %v4073
        %v4172 = vpop.permute.xlu0 %4171
        %4175 = vset.pattern.permute.xlu0 0
        %4176 = vperm.xlu0 %4175, %v4074
        %v4177 = vpop.permute.xlu0 %4176
        %4180 = vset.pattern.permute.xlu0 0
        %4181 = vperm.xlu0 %4180, %v4075
        %v4182 = vpop.permute.xlu0 %4181
        %4185 = vset.pattern.permute.xlu0 0
        %4186 = vperm.xlu0 %4185, %v4076
        %v4187 = vpop.permute.xlu0 %4186
        %4190 = vset.pattern.permute.xlu0 0
        %4191 = vperm.xlu0 %4190, %v4077
        %v4192 = vpop.permute.xlu0 %4191
        %4195 = vset.pattern.permute.xlu0 0
        %4196 = vperm.xlu0 %4195, %v4078
        %v4197 = vpop.permute.xlu0 %4196
        %4200 = vset.pattern.permute.xlu0 0
        %4201 = vperm.xlu0 %4200, %v4079
        %v4202 = vpop.permute.xlu0 %4201
        %4205 = vset.pattern.permute.xlu0 0
        %4206 = vperm.xlu0 %4205, %v4080
        %v4207 = vpop.permute.xlu0 %4206
        %4210 = vset.pattern.permute.xlu0 0
        %4211 = vperm.xlu0 %4210, %v4081
        %v4212 = vpop.permute.xlu0 %4211
        %4215 = vset.pattern.permute.xlu0 0
        %4216 = vperm.xlu0 %4215, %v4082
        %v4217 = vpop.permute.xlu0 %4216
        %4220 = vset.pattern.permute.xlu0 0
        %4221 = vperm.xlu0 %4220, %v4083
        %v4222 = vpop.permute.xlu0 %4221
        %4225 = vset.pattern.permute.xlu0 0
        %4226 = vperm.xlu0 %4225, %v4084
        %v4227 = vpop.permute.xlu0 %4226
        %4230 = vset.pattern.permute.xlu0 0
        %4231 = vperm.xlu0 %4230, %v4085
        %v4232 = vpop.permute.xlu0 %4231
        %4235 = vset.pattern.permute.xlu0 0
        %4236 = vperm.xlu0 %4235, %v4086
        %v4237 = vpop.permute.xlu0 %4236
        %4240 = vset.pattern.permute.xlu0 0
        %4241 = vperm.xlu0 %4240, %v4087
        %v4242 = vpop.permute.xlu0 %4241
        %4245 = vset.pattern.permute.xlu0 0
        %4246 = vperm.xlu0 %4245, %v4088
        %v4247 = vpop.permute.xlu0 %4246
        %v4249 = vadd.f32 %v3849, %v4092
        %v4250 = vadd.f32 %v3962, %v4092
        %v4251 = vadd.f32 %v3852, %v4097
        %v4252 = vadd.f32 %v3965, %v4097
        %v4253 = vadd.f32 %v3855, %v4102
        %v4254 = vadd.f32 %v3968, %v4102
        %v4255 = vadd.f32 %v3858, %v4107
        %v4256 = vadd.f32 %v3971, %v4107
        %v4257 = vadd.f32 %v3861, %v4112
        %v4258 = vadd.f32 %v3974, %v4112
        %v4259 = vadd.f32 %v3864, %v4117
        %v4260 = vadd.f32 %v3977, %v4117
        %v4261 = vadd.f32 %v3867, %v4122
        %v4262 = vadd.f32 %v3980, %v4122
        %v4263 = vadd.f32 %v3870, %v4127
        %v4264 = vadd.f32 %v3983, %v4127
        %v4265 = vadd.f32 %v3873, %v4132
        %v4266 = vadd.f32 %v3986, %v4132
        %v4267 = vadd.f32 %v3876, %v4137
        %v4268 = vadd.f32 %v3989, %v4137
        %v4269 = vadd.f32 %v3879, %v4142
        %v4270 = vadd.f32 %v3992, %v4142
        %v4271 = vadd.f32 %v3882, %v4147
        %v4272 = vadd.f32 %v3995, %v4147
        %v4273 = vadd.f32 %v3885, %v4152
        %v4274 = vadd.f32 %v3998, %v4152
        %v4275 = vadd.f32 %v3888, %v4157
        %v4276 = vadd.f32 %v4001, %v4157
        %v4277 = vadd.f32 %v3891, %v4162
        %v4278 = vadd.f32 %v4004, %v4162
        %v4279 = vadd.f32 %v3894, %v4167
        %v4280 = vadd.f32 %v4007, %v4167
        %v4281 = vadd.f32 %v3897, %v4172
        %v4282 = vadd.f32 %v4010, %v4172
        %v4283 = vadd.f32 %v3900, %v4177
        %v4284 = vadd.f32 %v4013, %v4177
        %v4285 = vadd.f32 %v3903, %v4182
        %v4286 = vadd.f32 %v4016, %v4182
        %v4287 = vadd.f32 %v3906, %v4187
        %v4288 = vadd.f32 %v4019, %v4187
        %v4289 = vadd.f32 %v3909, %v4192
        %v4290 = vadd.f32 %v4022, %v4192
        %v4291 = vadd.f32 %v3912, %v4197
        %v4292 = vadd.f32 %v4025, %v4197
        %v4293 = vadd.f32 %v3915, %v4202
        %v4294 = vadd.f32 %v4028, %v4202
        %v4295 = vadd.f32 %v3918, %v4207
        %v4296 = vadd.f32 %v4031, %v4207
        %v4297 = vadd.f32 %v3921, %v4212
        %v4298 = vadd.f32 %v4034, %v4212
        %v4299 = vadd.f32 %v3924, %v4217
        %v4300 = vadd.f32 %v4037, %v4217
        %v4301 = vadd.f32 %v3927, %v4222
        %v4302 = vadd.f32 %v4040, %v4222
        %v4303 = vadd.f32 %v3930, %v4227
        %v4304 = vadd.f32 %v4043, %v4227
        %v4305 = vadd.f32 %v3933, %v4232
        %v4306 = vadd.f32 %v4046, %v4232
        %v4307 = vadd.f32 %v3936, %v4237
        %v4308 = vadd.f32 %v4049, %v4237
        %v4309 = vadd.f32 %v3939, %v4242
        %v4310 = vadd.f32 %v4052, %v4242
        %v4311 = vadd.f32 %v3942, %v4247
        %v4312 = vadd.f32 %v4055, %v4247
        %4313 = vst [vmem:[%s377] sm:$0xff] %v4249
        %4314 = vst [vmem:[%s377 + $0x8] sm:$0xff] %v4250
        %4315 = vst [vmem:[%s377 + $0x10] sm:$0xff] %v4251
        %4316 = vst [vmem:[%s377 + $0x18] sm:$0xff] %v4252
        %4317 = vst [vmem:[%s377 + $0x20] sm:$0xff] %v4253
        %4318 = vst [vmem:[%s377 + $0x28] sm:$0xff] %v4254
        %4319 = vst [vmem:[%s377 + $0x30] sm:$0xff] %v4255
        %4320 = vst [vmem:[%s377 + $0x38] sm:$0xff] %v4256
        %4321 = vst [vmem:[%s377 + $0x40] sm:$0xff] %v4257
        %4322 = vst [vmem:[%s377 + $0x48] sm:$0xff] %v4258
        %4323 = vst [vmem:[%s377 + $0x50] sm:$0xff] %v4259
        %4324 = vst [vmem:[%s377 + $0x58] sm:$0xff] %v4260
        %4325 = vst [vmem:[%s377 + $0x60] sm:$0xff] %v4261
        %4326 = vst [vmem:[%s377 + $0x68] sm:$0xff] %v4262
        %4327 = vst [vmem:[%s377 + $0x70] sm:$0xff] %v4263
        %4328 = vst [vmem:[%s377 + $0x78] sm:$0xff] %v4264
        %4329 = vst [vmem:[%s377 + $0x80] sm:$0xff] %v4265
        %4330 = vst [vmem:[%s377 + $0x88] sm:$0xff] %v4266
        %4331 = vst [vmem:[%s377 + $0x90] sm:$0xff] %v4267
        %4332 = vst [vmem:[%s377 + $0x98] sm:$0xff] %v4268
        %4333 = vst [vmem:[%s377 + $0xa0] sm:$0xff] %v4269
        %4334 = vst [vmem:[%s377 + $0xa8] sm:$0xff] %v4270
        %4335 = vst [vmem:[%s377 + $0xb0] sm:$0xff] %v4271
        %4336 = vst [vmem:[%s377 + $0xb8] sm:$0xff] %v4272
        %4337 = vst [vmem:[%s377 + $0xc0] sm:$0xff] %v4273
        %4338 = vst [vmem:[%s377 + $0xc8] sm:$0xff] %v4274
        %4339 = vst [vmem:[%s377 + $0xd0] sm:$0xff] %v4275
        %4340 = vst [vmem:[%s377 + $0xd8] sm:$0xff] %v4276
        %4341 = vst [vmem:[%s377 + $0xe0] sm:$0xff] %v4277
        %4342 = vst [vmem:[%s377 + $0xe8] sm:$0xff] %v4278
        %4343 = vst [vmem:[%s377 + $0xf0] sm:$0xff] %v4279
        %4344 = vst [vmem:[%s377 + $0xf8] sm:$0xff] %v4280
        %4345 = vst [vmem:[%s377 + $0x100] sm:$0xff] %v4281
        %4346 = vst [vmem:[%s377 + $0x108] sm:$0xff] %v4282
        %4347 = vst [vmem:[%s377 + $0x110] sm:$0xff] %v4283
        %4348 = vst [vmem:[%s377 + $0x118] sm:$0xff] %v4284
        %4349 = vst [vmem:[%s377 + $0x120] sm:$0xff] %v4285
        %4350 = vst [vmem:[%s377 + $0x128] sm:$0xff] %v4286
        %4351 = vst [vmem:[%s377 + $0x130] sm:$0xff] %v4287
        %4352 = vst [vmem:[%s377 + $0x138] sm:$0xff] %v4288
        %4353 = vst [vmem:[%s377 + $0x140] sm:$0xff] %v4289
        %4354 = vst [vmem:[%s377 + $0x148] sm:$0xff] %v4290
        %4355 = vst [vmem:[%s377 + $0x150] sm:$0xff] %v4291
        %4356 = vst [vmem:[%s377 + $0x158] sm:$0xff] %v4292
        %4357 = vst [vmem:[%s377 + $0x160] sm:$0xff] %v4293
        %4358 = vst [vmem:[%s377 + $0x168] sm:$0xff] %v4294
        %4359 = vst [vmem:[%s377 + $0x170] sm:$0xff] %v4295
        %4360 = vst [vmem:[%s377 + $0x178] sm:$0xff] %v4296
        %4361 = vst [vmem:[%s377 + $0x180] sm:$0xff] %v4297
        %4362 = vst [vmem:[%s377 + $0x188] sm:$0xff] %v4298
        %4363 = vst [vmem:[%s377 + $0x190] sm:$0xff] %v4299
        %4364 = vst [vmem:[%s377 + $0x198] sm:$0xff] %v4300
        %4365 = vst [vmem:[%s377 + $0x1a0] sm:$0xff] %v4301
        %4366 = vst [vmem:[%s377 + $0x1a8] sm:$0xff] %v4302
        %4367 = vst [vmem:[%s377 + $0x1b0] sm:$0xff] %v4303
        %4368 = vst [vmem:[%s377 + $0x1b8] sm:$0xff] %v4304
        %4369 = vst [vmem:[%s377 + $0x1c0] sm:$0xff] %v4305
        %4370 = vst [vmem:[%s377 + $0x1c8] sm:$0xff] %v4306
        %4371 = vst [vmem:[%s377 + $0x1d0] sm:$0xff] %v4307
        %4372 = vst [vmem:[%s377 + $0x1d8] sm:$0xff] %v4308
        %4373 = vst [vmem:[%s377 + $0x1e0] sm:$0xff] %v4309
        %4374 = vst [vmem:[%s377 + $0x1e8] sm:$0xff] %v4310
        %4375 = vst [vmem:[%s377 + $0x1f0] sm:$0xff] %v4311
        %4376 = vst [vmem:[%s377 + $0x1f8] sm:$0xff] %v4312
        %s4377 = sand.u32 %s218, 1
        %s4378 = scalar_lea.sflag [#allocation4], %s4377
        %s4379 = sand.u32 %s218, 1
        %s4380 = smul.addr %s4379, 512
        %s4381 = scalar_lea.vmem [#allocation5], %s4380
        // Predicated region
        $region53: #{tpu_custom_call.1} parent=47 // pred_check
          %p4382 = pneg %p228
        $region54: #{tpu_custom_call.1} parent=47 // pred_check_branch
          %4384 = sbr.rel (%p4382) target = $region56
        $region55: #{tpu_custom_call.1} parent=47 // pred_region
          %s4385 = smul.u32 32, %s29
          %4387 = vsyncadd %s4378, 0
          %s4388 = smul.addr %s4385, 2
          %s4389 = smul.addr %s28, 128
          %s4390 = sadd.s32 %s4388, %s4389
          %s4391 = smul.addr %s4390, 8
          %s4392 = scalar_lea.hbm %s7, %s4391
          %s4393 = sshll.u32 %s4381, 4
          %s4394 = int_to_ptr.vmem [resolvable:$true] %s4393
          %s4395 = sshll.u32 %s4392, 4
          %s4396 = int_to_ptr.hbm [resolvable:$true] %s4395
          %4401 = dma.vmem_to_hbm [thread:$0]  %s4394, 8192, %s4396, %s4378, 256, 256, 16
        $region56: #{tpu_custom_call.1} parent=47 // pred_fallthru
          _
      $region48: #{tpu_custom_call.1} parent=5 // pred_fallthru
        _
      %p4402 = scmp.le.s32.totalorder 2, %s19
      // Predicated region
      $region57: #{tpu_custom_call.1} parent=5 // pred_check
        %p4403 = pneg %p4402
      $region58: #{tpu_custom_call.1} parent=5 // pred_check_branch
        %4405 = sbr.rel (%p4403) target = $region60
      $region59: #{tpu_custom_call.1} parent=5 // pred_region
        %s4406 = ssub.s32 %s19, 2
        // Predicated region
        $region61: #{tpu_custom_call.1} parent=59 // pred_check
          %p4407 = pneg %p234
        $region62: #{tpu_custom_call.1} parent=59 // pred_check_branch
          %4409 = sbr.rel (%p4407) target = $region64
        $region63: #{tpu_custom_call.1} parent=59 // pred_region
          %s4410 = sand.u32 %s219, 1
          %s4411 = scalar_lea.sflag [#allocation4], %s4410
          %s4412 = sand.u32 %s219, 1
          %s4413 = smul.addr %s4412, 512
          %s4414 = scalar_lea.vmem [#allocation5], %s4413
          %4416 = dma.done %s4411, 8192
        $region64: #{tpu_custom_call.1} parent=59 // pred_fallthru
          _
      $region60: #{tpu_custom_call.1} parent=5 // pred_fallthru
        _
    $region6: #{tpu_custom_call.1} parent=1 // loop_footer
      %s23 = sadd.s32 1, %s19
    $region7: #{tpu_custom_call.1} parent=1 // loop_footer_branch
      %18 = sbr.rel target = $region3
    $region8: #{tpu_custom_call.1} parent=1 // loop_exit
      _
    %4417 = vsyncpa [#allocation3], 1
    %s4418 = scalar_lea.sflag [#allocation3], 1
    %4419 = vsyncpa %s4418, 1
    %4420 = vsyncpa [#allocation4], 1
    %s4421 = scalar_lea.sflag [#allocation4], 1
    %4422 = vsyncpa %s4421, 1

</llo_original>
